<compile_context>
chip_gen: v6e
topology: v6e:2x2x1
jax: 0.10.0
libtpu: 0.0.40
codegen_flags: <defaults>
</compile_context>

<pallas_src>
import math

import jax
import jax.numpy as jnp
import numpy as np
from jax.experimental import pallas as pl
from jax.experimental.pallas import tpu as pltpu

# ---------------------------------------------------------------------------
# structural constants of the PyTorch module
# ---------------------------------------------------------------------------
HID = 32                       # channels (Cin == Cout == 32)
K1, S = 15, 5                  # layer-1 kernel size / stride
K2 = 27                        # layer-2 kernel size (stride 1)
assert K1 % S == 0
T1 = K1 // S                   # 3 taps per layer-1 output phase
D2 = (K2 + S - 2) // S + 1     # 7 phase-major taps for layer 2
HDR = 8                        # zero header rows in the intermediate (>= D2-1, 8-aligned)


# ---------------------------------------------------------------------------
# fused kernel: both ConvTranspose1d layers for one batch tile
# ---------------------------------------------------------------------------
def fused_convtranspose_kernel(xs_ref, w1_ref, w2_ref, b2_ref, o_ref, inter_ref):
    """Phase-major fused forward for one batch tile.

      xs_ref   : (R, T1*C + 1)   layer-1 im2col slab (+ ones column folding bias1).
                                 Rows are (example, slot) with U slots per example;
                                 slots >= Lp1 are all-zero spacer rows.
      w1_ref   : (T1*C + 1, S*C) phase-folded layer-1 weight; last row = bias1 tiled.
      w2_ref   : (D2, S*C, S*C)  phase-folded layer-2 weights (invalid taps zeroed).
      b2_ref   : (1, S*C)        bias2 tiled over the S phases.
      o_ref    : (R, S*C)        phase-major output: row b*U+u, lane q*C+c holds
                                 y2[b, S*u + q, c].
      inter_ref: (HDR + R, S*C)  VMEM scratch for the (zero-padded) layer-1 output.
    """
    R, SC = o_ref.shape
    hdr = inter_ref.shape[0] - R
    d2 = w2_ref.shape[0]

    # ---- layer 1: a single matmul (bias folded in via the ones column) ------
    inter_ref[0:hdr, :] = jnp.zeros((hdr, SC), jnp.float32)
    inter_ref[hdr:, :] = jax.lax.dot_general(
        xs_ref[...], w1_ref[...], (((1,), (0,)), ((), ())),
        preferred_element_type=jnp.float32)

    # ---- layer 2: D2 shifted-window matmuls accumulated into the output -----
    o_ref[...] = jnp.broadcast_to(b2_ref[...], (R, SC))      # bias2, hoisted once
    for d in range(d2):                                      # static unroll (D2 == 7)
        win = inter_ref[hdr - d:hdr - d + R, :]              # (R, S*C) shifted window
        o_ref[...] += jax.lax.dot_general(
            win, w2_ref[d], (((1,), (0,)), ((), ())),
            preferred_element_type=jnp.float32)


# ---------------------------------------------------------------------------
# one-time weight plumbing (layout only, done outside the per-call forward)
# ---------------------------------------------------------------------------
def fold_params(params):
    C = HID
    w1 = params["conv_w"].astype(jnp.float32)      # (Cin, Cout, K1) torch layout
    b1 = params["conv_b"].astype(jnp.float32)
    w2 = params["conv2_w"].astype(jnp.float32)     # (Cin, Cout, K2)
    b2 = params["conv2_b"].astype(jnp.float32)

    # layer 1: W1f[t*C+ci, p*C+co] = w1[ci, co, S*t + p]; appended row = bias1 tiled.
    w1k = jnp.transpose(w1, (2, 0, 1))                                   # (K1, Cin, Cout)
    w1f = w1k.reshape(T1, S, C, C).transpose(0, 2, 1, 3).reshape(T1 * C, S * C)
    w1f = jnp.concatenate([w1f, jnp.tile(b1, S)[None, :]], axis=0)       # (T1*C+1, S*C)

    # layer 2 (phase-major): W2m[d, p*C+cm, q*C+co] = w2[cm, co, S*d + q - p] (masked).
    d = np.arange(D2)[:, None, None]
    p = np.arange(S)[None, :, None]
    q = np.arange(S)[None, None, :]
    k = S * d + q - p                                                    # (D2, S, S)
    valid = jnp.asarray((k >= 0) & (k < K2), jnp.float32)
    w2k = jnp.transpose(w2, (2, 0, 1))                                   # (K2, Cin, Cout)
    w2g = w2k[np.clip(k, 0, K2 - 1)] * valid[..., None, None]            # (D2,S,S,Ci,Co)
    w2m = w2g.transpose(0, 1, 3, 2, 4).reshape(D2, S * C, S * C)

    b2f = jnp.tile(b2, S)[None, :]                                       # (1, S*C)
    return {"w1f": w1f, "w2m": w2m, "b2f": b2f}


def _num_batch_tiles(B):
    """2 'parallel' grid steps only on dual-TensorCore chips (v7x); 1 elsewhere."""
    try:
        kind = jax.devices()[0].device_kind.lower()
    except Exception:
        kind = ""
    return 2 if ("v7" in kind and B % 2 == 0) else 1


# ---------------------------------------------------------------------------
# forward
# ---------------------------------------------------------------------------
def out_model_forward(x, folded):
    """x: (B, C, L) as in PyTorch; returns (B, C, (L-1)*5 + 15 + 26)."""
    B, C, L = x.shape
    assert C == HID
    Lp1 = L + T1 - 1                      # layer-1 phase-major length
    U = Lp1 + (D2 - 1)                    # layer-2 phase-major length (= ceil(Lout2/S))
    Lout2 = (L - 1) * S + K1 + K2 - 1     # 5L + 36
    SC = S * C

    # layer-1 im2col slab in "slot" layout: U rows / example, rows >= Lp1 are zero.
    x_nlc = jnp.transpose(x, (0, 2, 1)).astype(jnp.float32)              # (B, L, C)
    xp = jnp.pad(x_nlc, ((0, 0), (T1 - 1, T1 - 1), (0, 0)))              # (B, L+2(T1-1), C)
    taps = [xp[:, (T1 - 1 - t):(T1 - 1 - t) + Lp1, :] for t in range(T1)]
    ones = jnp.ones((B, Lp1, 1), jnp.float32)                            # folds bias1
    slab = jnp.concatenate(taps + [ones], axis=-1)                       # (B, Lp1, T1*C+1)
    slab = jnp.pad(slab, ((0, 0), (0, U - Lp1), (0, 0)))                 # (B, U, T1*C+1)
    slab = slab.reshape(B * U, T1 * C + 1)

    n_tiles = _num_batch_tiles(B)
    bt = B // n_tiles
    rows = bt * U

    cost = pl.CostEstimate(
        flops=2 * B * U * ((T1 * C + 1) * SC + D2 * SC * SC),
        transcendentals=0,
        bytes_accessed=4 * (B * U * (T1 * C + 1) + (T1 * C + 1) * SC
                            + D2 * SC * SC + SC + B * U * SC),
    )

    out_ph = pl.pallas_call(
        fused_convtranspose_kernel,
        out_shape=jax.ShapeDtypeStruct((B * U, SC), jnp.float32),
        grid=(n_tiles,),
        in_specs=[
            pl.BlockSpec((rows, T1 * C + 1), lambda i: (i, 0)),   # batch tile of the slab
            pl.BlockSpec((T1 * C + 1, SC), lambda i: (0, 0)),     # resident layer-1 weight
            pl.BlockSpec((D2, SC, SC), lambda i: (0, 0, 0)),      # resident layer-2 weights
            pl.BlockSpec((1, SC), lambda i: (0, 0)),              # resident bias2
        ],
        out_specs=pl.BlockSpec((rows, SC), lambda i: (i, 0)),
        scratch_shapes=[pltpu.VMEM((HDR + rows, SC), jnp.float32)],
        compiler_params=pltpu.CompilerParams(dimension_semantics=("parallel",)),
        cost_estimate=cost,
    )(slab, folded["w1f"], folded["w2m"], folded["b2f"])

    # de-interleave the phases: row b*U+u, lane q*C+c -> y[b, S*u+q, c] (pure reshape)
    y = out_ph.reshape(B, U * S, C)[:, :Lout2, :]
    return jnp.transpose(y, (0, 2, 1))


# ---------------------------------------------------------------------------
# pure-JAX reference (PyTorch ConvTranspose1d semantics, f32 HIGHEST precision)
# ---------------------------------------------------------------------------
def _conv_transpose1d_ref(x, w, b, stride):
    B, Cin, L = x.shape
    _, Cout, K = w.shape
    Lout = (L - 1) * stride + K
    j = np.arange(Lout)[:, None]
    i = np.arange(L)[None, :]
    k = j - stride * i
    valid = (k >= 0) & (k < K)
    kc = np.clip(k, 0, K - 1)
    wg = w[:, :, kc] * jnp.asarray(valid, jnp.float32)       # (Cin, Cout, Lout, L)
    out = jnp.einsum("bci,coji->boj", x, wg,
                     precision=jax.lax.Precision.HIGHEST)
    return out + b[None, :, None]


def reference(x, p):
    y = _conv_transpose1d_ref(x, p["conv_w"], p["conv_b"], S)
    return _conv_transpose1d_ref(y, p["conv2_w"], p["conv2_b"], 1)


# ---------------------------------------------------------------------------
# main
# ---------------------------------------------------------------------------
if __name__ == "__main__":
    key = jax.random.PRNGKey(0)
    kw1, kb1, kw2, kb2, kx = jax.random.split(key, 5)

    B, C, L = 4, HID, 16
    a1 = 1.0 / math.sqrt(C * K1)
    a2 = 1.0 / math.sqrt(C * K2)
    params = dict(
        conv_w=jax.random.uniform(kw1, (C, C, K1), jnp.float32, -a1, a1),
        conv_b=jax.random.uniform(kb1, (C,), jnp.float32, -a1, a1),
        conv2_w=jax.random.uniform(kw2, (C, C, K2), jnp.float32, -a2, a2),
        conv2_b=jax.random.uniform(kb2, (C,), jnp.float32, -a2, a2),
    )
    x = jax.random.normal(kx, (B, C, L), dtype=jnp.float32)

    folded = fold_params(params)                 # one-time weight layout plumbing
    forward = jax.jit(out_model_forward)
    out = jax.block_until_ready(forward(x, folded))

    Lout2 = (L - 1) * S + K1 + K2 - 1            # 5*L + 36 = 116
    assert out.shape == (B, C, Lout2) and out.dtype == jnp.float32

    ref = jax.block_until_ready(reference(x, params))
    # Kernel matmuls use the MXU default (single-pass bf16 multiply, f32 accumulate)
    # instead of HIGHEST, so compare against the f32 reference at a matching tolerance.
    np.testing.assert_allclose(np.asarray(out), np.asarray(ref),
                               rtol=2e-3, atol=2e-3)

    print("KERNEL_OK")
</pallas_src>

<mosaic_0001>
module attributes {stable_mosaic.version = 11 : i64} {
  func.func @fused_convtranspose_kernel(%arg0: i32, %arg1: memref<96x97xf32, #tpu.memory_space<vmem>>, %arg2: memref<97x160xf32, #tpu.memory_space<vmem>>, %arg3: memref<7x160x160xf32, #tpu.memory_space<vmem>>, %arg4: memref<1x160xf32, #tpu.memory_space<vmem>>, %arg5: memref<96x160xf32, #tpu.memory_space<vmem>>, %arg6: memref<104x160xf32, #tpu.memory_space<vmem>>) attributes {dimension_semantics = [#tpu.dimension_semantics<parallel>], iteration_bounds = array<i64: 1>, scalar_prefetch = 0 : i64, scratch_operands = 1 : i64, tpu.core_type = #tpu.core_type<tc>, window_params = [{transform_indices = @transform_0, window_bounds = array<i64: 96, 97>}, {pipeline_mode = #tpu.pipeline_mode<synchronous>, transform_indices = @transform_1, window_bounds = array<i64: 97, 160>}, {pipeline_mode = #tpu.pipeline_mode<synchronous>, transform_indices = @transform_2, window_bounds = array<i64: 7, 160, 160>}, {pipeline_mode = #tpu.pipeline_mode<synchronous>, transform_indices = @transform_3, window_bounds = array<i64: 1, 160>}, {transform_indices = @transform_4, window_bounds = array<i64: 96, 160>}]} {
    %cst = arith.constant 0.000000e+00 : f32
    %0 = vector.broadcast %cst : f32 to vector<8x160xf32>
    %c0 = arith.constant 0 : index
    %c0_0 = arith.constant 0 : index
    %1 = vector.load %arg6[%c0, %c0_0] : memref<104x160xf32, #tpu.memory_space<vmem>>, vector<8x160xf32>
    tpu.vector_store %arg6[%c0, %c0_0], %0 {strides = array<i32>} : memref<104x160xf32, #tpu.memory_space<vmem>>, vector<8x160xf32>,
    %c0_1 = arith.constant 0 : index
    %c0_2 = arith.constant 0 : index
    %2 = vector.load %arg1[%c0_1, %c0_2] : memref<96x97xf32, #tpu.memory_space<vmem>>, vector<96x97xf32>
    %c0_3 = arith.constant 0 : index
    %c0_4 = arith.constant 0 : index
    %3 = vector.load %arg2[%c0_3, %c0_4] : memref<97x160xf32, #tpu.memory_space<vmem>>, vector<97x160xf32>
    %cst_5 = arith.constant dense<0.000000e+00> : vector<96x160xf32>
    %4 = tpu.matmul %2, %3, %cst_5 {dimension_numbers = #tpu.dot_dimension_numbers<[1], [0], [0], [1], [0, 0, 1, 1], [], []>} : vector<96x97xf32>, vector<97x160xf32>, vector<96x160xf32> -> vector<96x160xf32>
    %c8 = arith.constant 8 : index
    %c0_6 = arith.constant 0 : index
    %5 = vector.load %arg6[%c8, %c0_6] : memref<104x160xf32, #tpu.memory_space<vmem>>, vector<96x160xf32>
    tpu.vector_store %arg6[%c8, %c0_6], %4 {strides = array<i32>} : memref<104x160xf32, #tpu.memory_space<vmem>>, vector<96x160xf32>,
    %c0_7 = arith.constant 0 : index
    %c0_8 = arith.constant 0 : index
    %6 = vector.load %arg4[%c0_7, %c0_8] : memref<1x160xf32, #tpu.memory_space<vmem>>, vector<1x160xf32>
    %7 = vector.shape_cast %6 : vector<1x160xf32> to vector<1x160xf32>
    %8 = vector.broadcast %7 : vector<1x160xf32> to vector<96x160xf32>
    %c0_9 = arith.constant 0 : index
    %c0_10 = arith.constant 0 : index
    %9 = vector.load %arg5[%c0_9, %c0_10] : memref<96x160xf32, #tpu.memory_space<vmem>>, vector<96x160xf32>
    tpu.vector_store %arg5[%c0_9, %c0_10], %8 {strides = array<i32>} : memref<96x160xf32, #tpu.memory_space<vmem>>, vector<96x160xf32>,
    %c8_11 = arith.constant 8 : index
    %c0_12 = arith.constant 0 : index
    %10 = vector.load %arg6[%c8_11, %c0_12] : memref<104x160xf32, #tpu.memory_space<vmem>>, vector<96x160xf32>
    %c0_13 = arith.constant 0 : index
    %c0_14 = arith.constant 0 : index
    %11 = vector.load %arg5[%c0_13, %c0_14] : memref<96x160xf32, #tpu.memory_space<vmem>>, vector<96x160xf32>
    %c0_15 = arith.constant 0 : index
    %c0_16 = arith.constant 0 : index
    %c0_17 = arith.constant 0 : index
    %12 = vector.load %arg3[%c0_15, %c0_16, %c0_17] : memref<7x160x160xf32, #tpu.memory_space<vmem>>, vector<1x160x160xf32>
    %13 = vector.shape_cast %12 : vector<1x160x160xf32> to vector<160x160xf32>
    %cst_18 = arith.constant dense<0.000000e+00> : vector<96x160xf32>
    %14 = tpu.matmul %10, %13, %cst_18 {dimension_numbers = #tpu.dot_dimension_numbers<[1], [0], [0], [1], [0, 0, 1, 1], [], []>} : vector<96x160xf32>, vector<160x160xf32>, vector<96x160xf32> -> vector<96x160xf32>
    %15 = arith.addf %11, %14 : vector<96x160xf32>
    %c0_19 = arith.constant 0 : index
    %c0_20 = arith.constant 0 : index
    %16 = vector.load %arg5[%c0_19, %c0_20] : memref<96x160xf32, #tpu.memory_space<vmem>>, vector<96x160xf32>
    tpu.vector_store %arg5[%c0_19, %c0_20], %15 {strides = array<i32>} : memref<96x160xf32, #tpu.memory_space<vmem>>, vector<96x160xf32>,
    %c7 = arith.constant 7 : index
    %c0_21 = arith.constant 0 : index
    %17 = vector.load %arg6[%c7, %c0_21] : memref<104x160xf32, #tpu.memory_space<vmem>>, vector<96x160xf32>
    %c0_22 = arith.constant 0 : index
    %c0_23 = arith.constant 0 : index
    %18 = vector.load %arg5[%c0_22, %c0_23] : memref<96x160xf32, #tpu.memory_space<vmem>>, vector<96x160xf32>
    %c1 = arith.constant 1 : index
    %c0_24 = arith.constant 0 : index
    %c0_25 = arith.constant 0 : index
    %19 = vector.load %arg3[%c1, %c0_24, %c0_25] : memref<7x160x160xf32, #tpu.memory_space<vmem>>, vector<1x160x160xf32>
    %20 = vector.shape_cast %19 : vector<1x160x160xf32> to vector<160x160xf32>
    %cst_26 = arith.constant dense<0.000000e+00> : vector<96x160xf32>
    %21 = tpu.matmul %17, %20, %cst_26 {dimension_numbers = #tpu.dot_dimension_numbers<[1], [0], [0], [1], [0, 0, 1, 1], [], []>} : vector<96x160xf32>, vector<160x160xf32>, vector<96x160xf32> -> vector<96x160xf32>
    %22 = arith.addf %18, %21 : vector<96x160xf32>
    %c0_27 = arith.constant 0 : index
    %c0_28 = arith.constant 0 : index
    %23 = vector.load %arg5[%c0_27, %c0_28] : memref<96x160xf32, #tpu.memory_space<vmem>>, vector<96x160xf32>
    tpu.vector_store %arg5[%c0_27, %c0_28], %22 {strides = array<i32>} : memref<96x160xf32, #tpu.memory_space<vmem>>, vector<96x160xf32>,
    %c6 = arith.constant 6 : index
    %c0_29 = arith.constant 0 : index
    %24 = vector.load %arg6[%c6, %c0_29] : memref<104x160xf32, #tpu.memory_space<vmem>>, vector<96x160xf32>
    %c0_30 = arith.constant 0 : index
    %c0_31 = arith.constant 0 : index
    %25 = vector.load %arg5[%c0_30, %c0_31] : memref<96x160xf32, #tpu.memory_space<vmem>>, vector<96x160xf32>
    %c2 = arith.constant 2 : index
    %c0_32 = arith.constant 0 : index
    %c0_33 = arith.constant 0 : index
    %26 = vector.load %arg3[%c2, %c0_32, %c0_33] : memref<7x160x160xf32, #tpu.memory_space<vmem>>, vector<1x160x160xf32>
    %27 = vector.shape_cast %26 : vector<1x160x160xf32> to vector<160x160xf32>
    %cst_34 = arith.constant dense<0.000000e+00> : vector<96x160xf32>
    %28 = tpu.matmul %24, %27, %cst_34 {dimension_numbers = #tpu.dot_dimension_numbers<[1], [0], [0], [1], [0, 0, 1, 1], [], []>} : vector<96x160xf32>, vector<160x160xf32>, vector<96x160xf32> -> vector<96x160xf32>
    %29 = arith.addf %25, %28 : vector<96x160xf32>
    %c0_35 = arith.constant 0 : index
    %c0_36 = arith.constant 0 : index
    %30 = vector.load %arg5[%c0_35, %c0_36] : memref<96x160xf32, #tpu.memory_space<vmem>>, vector<96x160xf32>
    tpu.vector_store %arg5[%c0_35, %c0_36], %29 {strides = array<i32>} : memref<96x160xf32, #tpu.memory_space<vmem>>, vector<96x160xf32>,
    %c5 = arith.constant 5 : index
    %c0_37 = arith.constant 0 : index
    %31 = vector.load %arg6[%c5, %c0_37] : memref<104x160xf32, #tpu.memory_space<vmem>>, vector<96x160xf32>
    %c0_38 = arith.constant 0 : index
    %c0_39 = arith.constant 0 : index
    %32 = vector.load %arg5[%c0_38, %c0_39] : memref<96x160xf32, #tpu.memory_space<vmem>>, vector<96x160xf32>
    %c3 = arith.constant 3 : index
    %c0_40 = arith.constant 0 : index
    %c0_41 = arith.constant 0 : index
    %33 = vector.load %arg3[%c3, %c0_40, %c0_41] : memref<7x160x160xf32, #tpu.memory_space<vmem>>, vector<1x160x160xf32>
    %34 = vector.shape_cast %33 : vector<1x160x160xf32> to vector<160x160xf32>
    %cst_42 = arith.constant dense<0.000000e+00> : vector<96x160xf32>
    %35 = tpu.matmul %31, %34, %cst_42 {dimension_numbers = #tpu.dot_dimension_numbers<[1], [0], [0], [1], [0, 0, 1, 1], [], []>} : vector<96x160xf32>, vector<160x160xf32>, vector<96x160xf32> -> vector<96x160xf32>
    %36 = arith.addf %32, %35 : vector<96x160xf32>
    %c0_43 = arith.constant 0 : index
    %c0_44 = arith.constant 0 : index
    %37 = vector.load %arg5[%c0_43, %c0_44] : memref<96x160xf32, #tpu.memory_space<vmem>>, vector<96x160xf32>
    tpu.vector_store %arg5[%c0_43, %c0_44], %36 {strides = array<i32>} : memref<96x160xf32, #tpu.memory_space<vmem>>, vector<96x160xf32>,
    %c4 = arith.constant 4 : index
    %c0_45 = arith.constant 0 : index
    %38 = vector.load %arg6[%c4, %c0_45] : memref<104x160xf32, #tpu.memory_space<vmem>>, vector<96x160xf32>
    %c0_46 = arith.constant 0 : index
    %c0_47 = arith.constant 0 : index
    %39 = vector.load %arg5[%c0_46, %c0_47] : memref<96x160xf32, #tpu.memory_space<vmem>>, vector<96x160xf32>
    %c4_48 = arith.constant 4 : index
    %c0_49 = arith.constant 0 : index
    %c0_50 = arith.constant 0 : index
    %40 = vector.load %arg3[%c4_48, %c0_49, %c0_50] : memref<7x160x160xf32, #tpu.memory_space<vmem>>, vector<1x160x160xf32>
    %41 = vector.shape_cast %40 : vector<1x160x160xf32> to vector<160x160xf32>
    %cst_51 = arith.constant dense<0.000000e+00> : vector<96x160xf32>
    %42 = tpu.matmul %38, %41, %cst_51 {dimension_numbers = #tpu.dot_dimension_numbers<[1], [0], [0], [1], [0, 0, 1, 1], [], []>} : vector<96x160xf32>, vector<160x160xf32>, vector<96x160xf32> -> vector<96x160xf32>
    %43 = arith.addf %39, %42 : vector<96x160xf32>
    %c0_52 = arith.constant 0 : index
    %c0_53 = arith.constant 0 : index
    %44 = vector.load %arg5[%c0_52, %c0_53] : memref<96x160xf32, #tpu.memory_space<vmem>>, vector<96x160xf32>
    tpu.vector_store %arg5[%c0_52, %c0_53], %43 {strides = array<i32>} : memref<96x160xf32, #tpu.memory_space<vmem>>, vector<96x160xf32>,
    %c3_54 = arith.constant 3 : index
    %c0_55 = arith.constant 0 : index
    %45 = vector.load %arg6[%c3_54, %c0_55] : memref<104x160xf32, #tpu.memory_space<vmem>>, vector<96x160xf32>
    %c0_56 = arith.constant 0 : index
    %c0_57 = arith.constant 0 : index
    %46 = vector.load %arg5[%c0_56, %c0_57] : memref<96x160xf32, #tpu.memory_space<vmem>>, vector<96x160xf32>
    %c5_58 = arith.constant 5 : index
    %c0_59 = arith.constant 0 : index
    %c0_60 = arith.constant 0 : index
    %47 = vector.load %arg3[%c5_58, %c0_59, %c0_60] : memref<7x160x160xf32, #tpu.memory_space<vmem>>, vector<1x160x160xf32>
    %48 = vector.shape_cast %47 : vector<1x160x160xf32> to vector<160x160xf32>
    %cst_61 = arith.constant dense<0.000000e+00> : vector<96x160xf32>
    %49 = tpu.matmul %45, %48, %cst_61 {dimension_numbers = #tpu.dot_dimension_numbers<[1], [0], [0], [1], [0, 0, 1, 1], [], []>} : vector<96x160xf32>, vector<160x160xf32>, vector<96x160xf32> -> vector<96x160xf32>
    %50 = arith.addf %46, %49 : vector<96x160xf32>
    %c0_62 = arith.constant 0 : index
    %c0_63 = arith.constant 0 : index
    %51 = vector.load %arg5[%c0_62, %c0_63] : memref<96x160xf32, #tpu.memory_space<vmem>>, vector<96x160xf32>
    tpu.vector_store %arg5[%c0_62, %c0_63], %50 {strides = array<i32>} : memref<96x160xf32, #tpu.memory_space<vmem>>, vector<96x160xf32>,
    %c2_64 = arith.constant 2 : index
    %c0_65 = arith.constant 0 : index
    %52 = vector.load %arg6[%c2_64, %c0_65] : memref<104x160xf32, #tpu.memory_space<vmem>>, vector<96x160xf32>
    %c0_66 = arith.constant 0 : index
    %c0_67 = arith.constant 0 : index
    %53 = vector.load %arg5[%c0_66, %c0_67] : memref<96x160xf32, #tpu.memory_space<vmem>>, vector<96x160xf32>
    %c6_68 = arith.constant 6 : index
    %c0_69 = arith.constant 0 : index
    %c0_70 = arith.constant 0 : index
    %54 = vector.load %arg3[%c6_68, %c0_69, %c0_70] : memref<7x160x160xf32, #tpu.memory_space<vmem>>, vector<1x160x160xf32>
    %55 = vector.shape_cast %54 : vector<1x160x160xf32> to vector<160x160xf32>
    %cst_71 = arith.constant dense<0.000000e+00> : vector<96x160xf32>
    %56 = tpu.matmul %52, %55, %cst_71 {dimension_numbers = #tpu.dot_dimension_numbers<[1], [0], [0], [1], [0, 0, 1, 1], [], []>} : vector<96x160xf32>, vector<160x160xf32>, vector<96x160xf32> -> vector<96x160xf32>
    %57 = arith.addf %53, %56 : vector<96x160xf32>
    %c0_72 = arith.constant 0 : index
    %c0_73 = arith.constant 0 : index
    %58 = vector.load %arg5[%c0_72, %c0_73] : memref<96x160xf32, #tpu.memory_space<vmem>>, vector<96x160xf32>
    tpu.vector_store %arg5[%c0_72, %c0_73], %57 {strides = array<i32>} : memref<96x160xf32, #tpu.memory_space<vmem>>, vector<96x160xf32>,
    return
  }
  func.func @transform_0(%arg0: i32) -> (i32, i32) {
    %c0_i32 = arith.constant 0 : i32
    %c0_i32_0 = arith.constant 0 : i32
    return %arg0, %c0_i32 : i32, i32
  }
  func.func @transform_1(%arg0: i32) -> (i32, i32) {
    %c0_i32 = arith.constant 0 : i32
    %c0_i32_0 = arith.constant 0 : i32
    %c0_i32_1 = arith.constant 0 : i32
    return %c0_i32, %c0_i32_0 : i32, i32
  }
  func.func @transform_2(%arg0: i32) -> (i32, i32, i32) {
    %c0_i32 = arith.constant 0 : i32
    %c0_i32_0 = arith.constant 0 : i32
    %c0_i32_1 = arith.constant 0 : i32
    %c0_i32_2 = arith.constant 0 : i32
    return %c0_i32, %c0_i32_0, %c0_i32_1 : i32, i32, i32
  }
  func.func @transform_3(%arg0: i32) -> (i32, i32) {
    %c0_i32 = arith.constant 0 : i32
    %c0_i32_0 = arith.constant 0 : i32
    %c0_i32_1 = arith.constant 0 : i32
    return %c0_i32, %c0_i32_0 : i32, i32
  }
  func.func @transform_4(%arg0: i32) -> (i32, i32) {
    %c0_i32 = arith.constant 0 : i32
    %c0_i32_0 = arith.constant 0 : i32
    return %arg0, %c0_i32 : i32, i32
  }
}

</mosaic_0001>

<llo_original>
// kernel: out_model_forward.1
$region0: #{out_model_forward.1}
  #allocation0 [shape = 'u32[]', space=smem, size = 0x4, offset = 0x4, fixed_abs, tag = 'smem constant byte address 0x4 - core index']
  #allocation1 [shape = 'u32[144,128]{1,0:T(1,128)}', space=vmem, size = 0x12000, scoped, tag = 'internal scratch']
  #allocation2 [shape = 'f32[104,160]{1,0:T(8,128)}', space=vmem, size = 0x1a000, scoped, tag = 'scratch operand']
  %s0 = inlined_call_operand.vmem [shape: f32[96,97], index: 0, kind: input, shape index: {}]
  %s1 = inlined_call_operand.vmem [shape: f32[97,160], index: 1, kind: input, shape index: {}]
  %s2 = inlined_call_operand.hbm [shape: f32[7,160,160], index: 2, kind: input, shape index: {}]
  %s3 = inlined_call_operand.hbm [shape: f32[1,160], index: 3, kind: input, shape index: {}]
  %s4 = inlined_call_operand.vmem [shape: f32[96,160], index: 4, kind: output, shape index: {}]
  %s5 = sld [smem:[#allocation0]]
  $region34: #{out_model_forward.1} parent=0
    _
  %s7 = ssub.s32 1, %s5
  %s8 = scalar_select 0, %s7, %s5
  $region1: #{out_model_forward.1} parent=0
    #allocation3 [shape = 'u8[1146880]{0}', space=vmem, size = 0x118000, scoped, tag = 'input window, operand 2, single buffered']
    #allocation4 [shape = 's32[1]{0}', space=sflag, size = 0x4, scoped, tag = 'scoped memory for out_model_forward.1']
    #allocation5 [shape = 'u8[1024]{0}', space=vmem, size = 0x400, scoped, tag = 'input window, operand 3, single buffered']
    #allocation6 [shape = 's32[1]{0}', space=sflag, size = 0x4, scoped, tag = 'scoped memory for out_model_forward.1']
    %9 = vsyncpa [#allocation4], 0
    %10 = vsyncpa [#allocation6], 0
    // Predicated region
    $region2: #{out_model_forward.1} parent=1 // pred_check
      _
    $region3: #{out_model_forward.1} parent=1 // pred_check_branch
      %12 = sbr.rel (0) target = $region5
    $region4: #{out_model_forward.1} parent=1 // pred_region
      _
    $region5: #{out_model_forward.1} parent=1 // pred_fallthru
      _
    // Predicated region
    $region6: #{out_model_forward.1} parent=1 // pred_check
      _
    $region7: #{out_model_forward.1} parent=1 // pred_check_branch
      %14 = sbr.rel (0) target = $region9
    $region8: #{out_model_forward.1} parent=1 // pred_region
      _
    $region9: #{out_model_forward.1} parent=1 // pred_fallthru
      _
    // Predicated region
    $region10: #{out_model_forward.1} parent=1 // pred_check
      _
    $region11: #{out_model_forward.1} parent=1 // pred_check_branch
      %16 = sbr.rel (0) target = $region13
    $region12: #{out_model_forward.1} parent=1 // pred_region
      %s18 = ssub.s32 35840, 35840
      %19 = vsyncadd [#allocation4], %s18
      %s20 = sshll.u32 [#allocation3], 4
      %s21 = int_to_ptr.vmem [resolvable:$true] %s20
      %26 = dma.hbm_to_vmem [thread:$0]  %s2, 35840, %s21, [#allocation4], 256, 256, 16
    $region13: #{out_model_forward.1} parent=1 // pred_fallthru
      _
    // Predicated region
    $region14: #{out_model_forward.1} parent=1 // pred_check
      _
    $region15: #{out_model_forward.1} parent=1 // pred_check_branch
      %28 = sbr.rel (0) target = $region17
    $region16: #{out_model_forward.1} parent=1 // pred_region
      %s30 = ssub.s32 32, 32
      %31 = vsyncadd [#allocation6], %s30
      %s33 = sshll.u32 [#allocation5], 4
      %s34 = int_to_ptr.vmem [resolvable:$true] %s33
      %36 = dma.hbm_to_vmem [thread:$0]  %s3, 32, %s34, [#allocation6]
    $region17: #{out_model_forward.1} parent=1 // pred_fallthru
      _
    // Predicated region
    $region18: #{out_model_forward.1} parent=1 // pred_check
      _
    $region19: #{out_model_forward.1} parent=1 // pred_check_branch
      %38 = sbr.rel (0) target = $region21
    $region20: #{out_model_forward.1} parent=1 // pred_region
      %39 = dma.done [#allocation4], 35840
    $region21: #{out_model_forward.1} parent=1 // pred_fallthru
      _
    // Predicated region
    $region22: #{out_model_forward.1} parent=1 // pred_check
      _
    $region23: #{out_model_forward.1} parent=1 // pred_check_branch
      %41 = sbr.rel (0) target = $region25
    $region24: #{out_model_forward.1} parent=1 // pred_region
      %42 = dma.done [#allocation6], 32
    $region25: #{out_model_forward.1} parent=1 // pred_fallthru
      _
    %43 = vst [vmem:[#allocation2] sm:$0xff] 0.0
    %vm44 = vcmask 261120
    %45 = vst.msk [vmem:[#allocation2 + $0x8] sm:$0xff] %vm44, 0.0
    %v46 = vld [vmem:[%s0] sm:$0xff]
    %v47 = vld [vmem:[%s0 + $0x8] sm:$0xff]
    %v48 = vld [vmem:[%s0 + $0x10] sm:$0xff]
    %v49 = vld [vmem:[%s0 + $0x18] sm:$0xff]
    %v50 = vld [vmem:[%s0 + $0x20] sm:$0xff]
    %v51 = vld [vmem:[%s0 + $0x28] sm:$0xff]
    %v52 = vld [vmem:[%s0 + $0x30] sm:$0xff]
    %v53 = vld [vmem:[%s0 + $0x38] sm:$0xff]
    %v54 = vld [vmem:[%s0 + $0x40] sm:$0xff]
    %v55 = vld [vmem:[%s0 + $0x48] sm:$0xff]
    %v56 = vld [vmem:[%s0 + $0x50] sm:$0xff]
    %v57 = vld [vmem:[%s0 + $0x58] sm:$0xff]
    %v58 = vld [vmem:[%s1] sm:$0xff]
    %v59 = vld [vmem:[%s1 + $0x8] sm:$0xff]
    %v60 = vld [vmem:[%s1 + $0x10] sm:$0xff]
    %v61 = vld [vmem:[%s1 + $0x18] sm:$0xff]
    %v62 = vld [vmem:[%s1 + $0x20] sm:$0xff]
    %v63 = vld [vmem:[%s1 + $0x28] sm:$0xff]
    %v64 = vld [vmem:[%s1 + $0x30] sm:$0xff]
    %v65 = vld [vmem:[%s1 + $0x38] sm:$0xff]
    %v66 = vld [vmem:[%s1 + $0x40] sm:$0xff]
    %v67 = vld [vmem:[%s1 + $0x48] sm:$0xff]
    %v68 = vld [vmem:[%s1 + $0x50] sm:$0xff]
    %v69 = vld [vmem:[%s1 + $0x58] sm:$0xff]
    %v70 = vld [vmem:[%s1 + $0x60] sm:$0xff]
    %v71 = vld [vmem:[%s1 + $0x68] sm:$0xff]
    %v72 = vld [vmem:[%s1 + $0x70] sm:$0xff]
    %v73 = vld [vmem:[%s1 + $0x78] sm:$0xff]
    %v74 = vld [vmem:[%s1 + $0x80] sm:$0xff]
    %v75 = vld [vmem:[%s1 + $0x88] sm:$0xff]
    %v76 = vld [vmem:[%s1 + $0x90] sm:$0xff]
    %v77 = vld [vmem:[%s1 + $0x98] sm:$0xff]
    %v78 = vld [vmem:[%s1 + $0xa0] sm:$0xff]
    %v79 = vld [vmem:[%s1 + $0xa8] sm:$0xff]
    %v80 = vld [vmem:[%s1 + $0xb0] sm:$0xff]
    %v81 = vld [vmem:[%s1 + $0xb8] sm:$0xff]
    %v82 = vld [vmem:[%s1 + $0xc0] sm:$0x1]
    %v83 = vld [vmem:[%s1 + $0xc8] sm:$0x1]
    %vm84 = vcmask 793600
    %v86 = vsel %vm84, %v46, 0
    %v89 = vsel %vm84, %v47, 0
    %v92 = vsel %vm84, %v48, 0
    %v95 = vsel %vm84, %v49, 0
    %v98 = vsel %vm84, %v50, 0
    %v101 = vsel %vm84, %v51, 0
    %v104 = vsel %vm84, %v52, 0
    %v107 = vsel %vm84, %v53, 0
    %v110 = vsel %vm84, %v54, 0
    %v113 = vsel %vm84, %v55, 0
    %v116 = vsel %vm84, %v56, 0
    %v119 = vsel %vm84, %v57, 0
    %vm121 = vcmask 1040384
    %v123 = vsel %vm121, %v82, 0
    %v126 = vsel %vm121, %v83, 0
    %128 = vmatprep.subr.mxu0 0.0
    %129 = vmatpush1.msra.mxu0 0.0
    %130 = vmatprep.subr.mxu0 0.0
    %131 = vmatpush1.msra.mxu0 0.0
    %132 = vmatprep.subr.mxu0 0.0
    %133 = vmatpush1.msra.mxu0 0.0
    %134 = vmatprep.subr.mxu0 %v126
    %135 = vmatpush1.msra.mxu0 %v123
    %136 = vmatprep.subr.mxu0 %v81
    %137 = vmatpush1.msra.mxu0 %v80
    %138 = vmatprep.subr.mxu0 %v79
    %139 = vmatpush1.msra.mxu0 %v78
    %140 = vmatprep.subr.mxu0 %v77
    %141 = vmatpush1.msra.mxu0 %v76
    %142 = vmatprep.subr.mxu0 %v75
    %143 = vmatpush1.msra.mxu0 %v74
    %144 = vmatprep.subr.mxu0 %v73
    %145 = vmatpush1.msra.mxu0 %v72
    %146 = vmatprep.subr.mxu0 %v71
    %147 = vmatpush1.msra.mxu0 %v70
    %148 = vmatprep.subr.mxu0 %v69
    %149 = vmatpush1.msra.mxu0 %v68
    %150 = vmatprep.subr.mxu0 %v67
    %151 = vmatpush1.msra.mxu0 %v66
    %152 = vmatprep.subr.mxu0 %v65
    %153 = vmatpush1.msra.mxu0 %v64
    %154 = vmatprep.subr.mxu0 %v63
    %155 = vmatpush1.msra.mxu0 %v62
    %156 = vmatprep.subr.mxu0 %v61
    %157 = vmatpush1.msra.mxu0 %v60
    %158 = vmatprep.subr.mxu0 %v59
    %159 = vmatpush1.msra.mxu0 %v58
    %160 = vmatprep.subr.mxu0 0.0
    %161 = vmatpush2.msra.mxu0 0.0
    %162 = vmatprep.subr.mxu0 0.0
    %163 = vmatpush2.msra.mxu0 0.0
    %164 = vmatprep.subr.mxu0 0.0
    %165 = vmatpush2.msra.mxu0 0.0
    %166 = vmatprep.subr.mxu0 0.0
    %167 = vmatpush2.msra.mxu0 0.0
    %168 = vmatprep.subr.mxu0 0.0
    %169 = vmatpush2.msra.mxu0 0.0
    %170 = vmatprep.subr.mxu0 0.0
    %171 = vmatpush2.msra.mxu0 0.0
    %172 = vmatprep.subr.mxu0 0.0
    %173 = vmatpush2.msra.mxu0 0.0
    %174 = vmatprep.subr.mxu0 0.0
    %175 = vmatpush2.msra.mxu0 0.0
    %176 = vmatprep.subr.mxu0 0.0
    %177 = vmatpush2.msra.mxu0 0.0
    %178 = vmatprep.subr.mxu0 0.0
    %179 = vmatpush2.msra.mxu0 0.0
    %180 = vmatprep.subr.mxu0 0.0
    %181 = vmatpush2.msra.mxu0 0.0
    %182 = vmatprep.subr.mxu0 0.0
    %183 = vmatpush2.msra.mxu0 0.0
    %184 = vmatprep.subr.mxu0 0.0
    %185 = vmatpush2.msra.mxu0 0.0
    %186 = vmatprep.subr.mxu0 0.0
    %187 = vmatpush2.msra.mxu0 0.0
    %188 = vmatprep.subr.mxu0 0.0
    %189 = vmatpush2.msra.mxu0 0.0
    %190 = vmatprep.subr.mxu0 0.0
    %191 = vmatpush2.msra.mxu0 0.0
    %192 = vmatprep.mubr.f32.mxu0 0.0
    %193 = vmatmul.mubr.f32.gmra.mxu0 %v86
    %v194 = vpop.f32.mrf.mxu0
    %v195 = vadd.f32 0.0, %v194
    %v196 = vpop.f32.mrf.mxu0
    %v197 = vadd.f32 0.0, %v196
    %198 = vmatprep.mubr.f32.mxu0 0.0
    %199 = vmatmul.mubr.f32.gmra.mxu0 %v89
    %v200 = vpop.f32.mrf.mxu0
    %v201 = vadd.f32 0.0, %v200
    %v202 = vpop.f32.mrf.mxu0
    %v203 = vadd.f32 0.0, %v202
    %204 = vmatprep.mubr.f32.mxu0 0.0
    %205 = vmatmul.mubr.f32.gmra.mxu0 %v92
    %v206 = vpop.f32.mrf.mxu0
    %v207 = vadd.f32 0.0, %v206
    %v208 = vpop.f32.mrf.mxu0
    %v209 = vadd.f32 0.0, %v208
    %210 = vmatprep.mubr.f32.mxu0 0.0
    %211 = vmatmul.mubr.f32.gmra.mxu0 %v95
    %v212 = vpop.f32.mrf.mxu0
    %v213 = vadd.f32 0.0, %v212
    %v214 = vpop.f32.mrf.mxu0
    %v215 = vadd.f32 0.0, %v214
    %216 = vmatprep.mubr.f32.mxu0 0.0
    %217 = vmatmul.mubr.f32.gmra.mxu0 %v98
    %v218 = vpop.f32.mrf.mxu0
    %v219 = vadd.f32 0.0, %v218
    %v220 = vpop.f32.mrf.mxu0
    %v221 = vadd.f32 0.0, %v220
    %222 = vmatprep.mubr.f32.mxu0 0.0
    %223 = vmatmul.mubr.f32.gmra.mxu0 %v101
    %v224 = vpop.f32.mrf.mxu0
    %v225 = vadd.f32 0.0, %v224
    %v226 = vpop.f32.mrf.mxu0
    %v227 = vadd.f32 0.0, %v226
    %228 = vmatprep.mubr.f32.mxu0 0.0
    %229 = vmatmul.mubr.f32.gmra.mxu0 %v104
    %v230 = vpop.f32.mrf.mxu0
    %v231 = vadd.f32 0.0, %v230
    %v232 = vpop.f32.mrf.mxu0
    %v233 = vadd.f32 0.0, %v232
    %234 = vmatprep.mubr.f32.mxu0 0.0
    %235 = vmatmul.mubr.f32.gmra.mxu0 %v107
    %v236 = vpop.f32.mrf.mxu0
    %v237 = vadd.f32 0.0, %v236
    %v238 = vpop.f32.mrf.mxu0
    %v239 = vadd.f32 0.0, %v238
    %240 = vmatprep.mubr.f32.mxu0 0.0
    %241 = vmatmul.mubr.f32.gmra.mxu0 %v110
    %v242 = vpop.f32.mrf.mxu0
    %v243 = vadd.f32 0.0, %v242
    %v244 = vpop.f32.mrf.mxu0
    %v245 = vadd.f32 0.0, %v244
    %246 = vmatprep.mubr.f32.mxu0 0.0
    %247 = vmatmul.mubr.f32.gmra.mxu0 %v113
    %v248 = vpop.f32.mrf.mxu0
    %v249 = vadd.f32 0.0, %v248
    %v250 = vpop.f32.mrf.mxu0
    %v251 = vadd.f32 0.0, %v250
    %252 = vmatprep.mubr.f32.mxu0 0.0
    %253 = vmatmul.mubr.f32.gmra.mxu0 %v116
    %v254 = vpop.f32.mrf.mxu0
    %v255 = vadd.f32 0.0, %v254
    %v256 = vpop.f32.mrf.mxu0
    %v257 = vadd.f32 0.0, %v256
    %258 = vmatprep.mubr.f32.mxu0 0.0
    %259 = vmatmul.mubr.f32.gmra.mxu0 %v119
    %v260 = vpop.f32.mrf.mxu0
    %v261 = vadd.f32 0.0, %v260
    %v262 = vpop.f32.mrf.mxu0
    %v263 = vadd.f32 0.0, %v262
    %264 = vdwg.mxu0
    %265 = vst [vmem:[#allocation2 + $0x10] sm:$0xff] %v195
    %266 = vst.msk [vmem:[#allocation2 + $0x18] sm:$0xff] %vm44, %v197
    %267 = vst [vmem:[#allocation2 + $0x20] sm:$0xff] %v201
    %268 = vst.msk [vmem:[#allocation2 + $0x28] sm:$0xff] %vm44, %v203
    %269 = vst [vmem:[#allocation2 + $0x30] sm:$0xff] %v207
    %270 = vst.msk [vmem:[#allocation2 + $0x38] sm:$0xff] %vm44, %v209
    %271 = vst [vmem:[#allocation2 + $0x40] sm:$0xff] %v213
    %272 = vst.msk [vmem:[#allocation2 + $0x48] sm:$0xff] %vm44, %v215
    %273 = vst [vmem:[#allocation2 + $0x50] sm:$0xff] %v219
    %274 = vst.msk [vmem:[#allocation2 + $0x58] sm:$0xff] %vm44, %v221
    %275 = vst [vmem:[#allocation2 + $0x60] sm:$0xff] %v225
    %276 = vst.msk [vmem:[#allocation2 + $0x68] sm:$0xff] %vm44, %v227
    %277 = vst [vmem:[#allocation2 + $0x70] sm:$0xff] %v231
    %278 = vst.msk [vmem:[#allocation2 + $0x78] sm:$0xff] %vm44, %v233
    %279 = vst [vmem:[#allocation2 + $0x80] sm:$0xff] %v237
    %280 = vst.msk [vmem:[#allocation2 + $0x88] sm:$0xff] %vm44, %v239
    %281 = vst [vmem:[#allocation2 + $0x90] sm:$0xff] %v243
    %282 = vst.msk [vmem:[#allocation2 + $0x98] sm:$0xff] %vm44, %v245
    %283 = vst [vmem:[#allocation2 + $0xa0] sm:$0xff] %v249
    %284 = vst.msk [vmem:[#allocation2 + $0xa8] sm:$0xff] %vm44, %v251
    %285 = vst [vmem:[#allocation2 + $0xb0] sm:$0xff] %v255
    %286 = vst.msk [vmem:[#allocation2 + $0xb8] sm:$0xff] %vm44, %v257
    %287 = vst [vmem:[#allocation2 + $0xc0] sm:$0xff] %v261
    %288 = vst.msk [vmem:[#allocation2 + $0xc8] sm:$0xff] %vm44, %v263
    %v289 = vld [vmem:[#allocation5] sm:$0x3]
    %v291 = vlaneseq
    %v292 = vshrl.u32 %v291, 7
    %v293 = vsub.s32 0, %v292
    %v294 = vrot.slane %v289, %v293
    %v295 = vlaneseq
    %v296 = vshrl.u32 %v295, 7
    %v297 = vsub.s32 1, %v296
    %v298 = vrot.slane %v289, %v297
    %301 = vst [vmem:[%s4] sm:$0xff] %v294
    %302 = vst.msk [vmem:[%s4 + $0x8] sm:$0xff] %vm44, %v298
    %303 = vst [vmem:[%s4 + $0x10] sm:$0xff] %v294
    %304 = vst.msk [vmem:[%s4 + $0x18] sm:$0xff] %vm44, %v298
    %305 = vst [vmem:[%s4 + $0x20] sm:$0xff] %v294
    %306 = vst.msk [vmem:[%s4 + $0x28] sm:$0xff] %vm44, %v298
    %307 = vst [vmem:[%s4 + $0x30] sm:$0xff] %v294
    %308 = vst.msk [vmem:[%s4 + $0x38] sm:$0xff] %vm44, %v298
    %309 = vst [vmem:[%s4 + $0x40] sm:$0xff] %v294
    %310 = vst.msk [vmem:[%s4 + $0x48] sm:$0xff] %vm44, %v298
    %311 = vst [vmem:[%s4 + $0x50] sm:$0xff] %v294
    %312 = vst.msk [vmem:[%s4 + $0x58] sm:$0xff] %vm44, %v298
    %313 = vst [vmem:[%s4 + $0x60] sm:$0xff] %v294
    %314 = vst.msk [vmem:[%s4 + $0x68] sm:$0xff] %vm44, %v298
    %315 = vst [vmem:[%s4 + $0x70] sm:$0xff] %v294
    %316 = vst.msk [vmem:[%s4 + $0x78] sm:$0xff] %vm44, %v298
    %317 = vst [vmem:[%s4 + $0x80] sm:$0xff] %v294
    %318 = vst.msk [vmem:[%s4 + $0x88] sm:$0xff] %vm44, %v298
    %319 = vst [vmem:[%s4 + $0x90] sm:$0xff] %v294
    %320 = vst.msk [vmem:[%s4 + $0x98] sm:$0xff] %vm44, %v298
    %321 = vst [vmem:[%s4 + $0xa0] sm:$0xff] %v294
    %322 = vst.msk [vmem:[%s4 + $0xa8] sm:$0xff] %vm44, %v298
    %323 = vst [vmem:[%s4 + $0xb0] sm:$0xff] %v294
    %324 = vst.msk [vmem:[%s4 + $0xb8] sm:$0xff] %vm44, %v298
    %v325 = vld [vmem:[#allocation2 + $0x10] sm:$0xff]
    %v326 = vld [vmem:[#allocation2 + $0x18] sm:$0xff]
    %v327 = vld [vmem:[#allocation2 + $0x20] sm:$0xff]
    %v328 = vld [vmem:[#allocation2 + $0x28] sm:$0xff]
    %v329 = vld [vmem:[#allocation2 + $0x30] sm:$0xff]
    %v330 = vld [vmem:[#allocation2 + $0x38] sm:$0xff]
    %v331 = vld [vmem:[#allocation2 + $0x40] sm:$0xff]
    %v332 = vld [vmem:[#allocation2 + $0x48] sm:$0xff]
    %v333 = vld [vmem:[#allocation2 + $0x50] sm:$0xff]
    %v334 = vld [vmem:[#allocation2 + $0x58] sm:$0xff]
    %v335 = vld [vmem:[#allocation2 + $0x60] sm:$0xff]
    %v336 = vld [vmem:[#allocation2 + $0x68] sm:$0xff]
    %v337 = vld [vmem:[#allocation2 + $0x70] sm:$0xff]
    %v338 = vld [vmem:[#allocation2 + $0x78] sm:$0xff]
    %v339 = vld [vmem:[#allocation2 + $0x80] sm:$0xff]
    %v340 = vld [vmem:[#allocation2 + $0x88] sm:$0xff]
    %v341 = vld [vmem:[#allocation2 + $0x90] sm:$0xff]
    %v342 = vld [vmem:[#allocation2 + $0x98] sm:$0xff]
    %v343 = vld [vmem:[#allocation2 + $0xa0] sm:$0xff]
    %v344 = vld [vmem:[#allocation2 + $0xa8] sm:$0xff]
    %v345 = vld [vmem:[#allocation2 + $0xb0] sm:$0xff]
    %v346 = vld [vmem:[#allocation2 + $0xb8] sm:$0xff]
    %v347 = vld [vmem:[#allocation2 + $0xc0] sm:$0xff]
    %v348 = vld [vmem:[#allocation2 + $0xc8] sm:$0xff]
    %v349 = vld [vmem:[%s4] sm:$0xff]
    %v350 = vld [vmem:[%s4 + $0x8] sm:$0xff]
    %v351 = vld [vmem:[%s4 + $0x10] sm:$0xff]
    %v352 = vld [vmem:[%s4 + $0x18] sm:$0xff]
    %v353 = vld [vmem:[%s4 + $0x20] sm:$0xff]
    %v354 = vld [vmem:[%s4 + $0x28] sm:$0xff]
    %v355 = vld [vmem:[%s4 + $0x30] sm:$0xff]
    %v356 = vld [vmem:[%s4 + $0x38] sm:$0xff]
    %v357 = vld [vmem:[%s4 + $0x40] sm:$0xff]
    %v358 = vld [vmem:[%s4 + $0x48] sm:$0xff]
    %v359 = vld [vmem:[%s4 + $0x50] sm:$0xff]
    %v360 = vld [vmem:[%s4 + $0x58] sm:$0xff]
    %v361 = vld [vmem:[%s4 + $0x60] sm:$0xff]
    %v362 = vld [vmem:[%s4 + $0x68] sm:$0xff]
    %v363 = vld [vmem:[%s4 + $0x70] sm:$0xff]
    %v364 = vld [vmem:[%s4 + $0x78] sm:$0xff]
    %v365 = vld [vmem:[%s4 + $0x80] sm:$0xff]
    %v366 = vld [vmem:[%s4 + $0x88] sm:$0xff]
    %v367 = vld [vmem:[%s4 + $0x90] sm:$0xff]
    %v368 = vld [vmem:[%s4 + $0x98] sm:$0xff]
    %v369 = vld [vmem:[%s4 + $0xa0] sm:$0xff]
    %v370 = vld [vmem:[%s4 + $0xa8] sm:$0xff]
    %v371 = vld [vmem:[%s4 + $0xb0] sm:$0xff]
    %v372 = vld [vmem:[%s4 + $0xb8] sm:$0xff]
    %v373 = vld [vmem:[#allocation3] sm:$0xff]
    %v374 = vld [vmem:[#allocation3 + $0x8] sm:$0xff]
    %v375 = vld [vmem:[#allocation3 + $0x10] sm:$0xff]
    %v376 = vld [vmem:[#allocation3 + $0x18] sm:$0xff]
    %v377 = vld [vmem:[#allocation3 + $0x20] sm:$0xff]
    %v378 = vld [vmem:[#allocation3 + $0x28] sm:$0xff]
    %v379 = vld [vmem:[#allocation3 + $0x30] sm:$0xff]
    %v380 = vld [vmem:[#allocation3 + $0x38] sm:$0xff]
    %v381 = vld [vmem:[#allocation3 + $0x40] sm:$0xff]
    %v382 = vld [vmem:[#allocation3 + $0x48] sm:$0xff]
    %v383 = vld [vmem:[#allocation3 + $0x50] sm:$0xff]
    %v384 = vld [vmem:[#allocation3 + $0x58] sm:$0xff]
    %v385 = vld [vmem:[#allocation3 + $0x60] sm:$0xff]
    %v386 = vld [vmem:[#allocation3 + $0x68] sm:$0xff]
    %v387 = vld [vmem:[#allocation3 + $0x70] sm:$0xff]
    %v388 = vld [vmem:[#allocation3 + $0x78] sm:$0xff]
    %v389 = vld [vmem:[#allocation3 + $0x80] sm:$0xff]
    %v390 = vld [vmem:[#allocation3 + $0x88] sm:$0xff]
    %v391 = vld [vmem:[#allocation3 + $0x90] sm:$0xff]
    %v392 = vld [vmem:[#allocation3 + $0x98] sm:$0xff]
    %v393 = vld [vmem:[#allocation3 + $0xa0] sm:$0xff]
    %v394 = vld [vmem:[#allocation3 + $0xa8] sm:$0xff]
    %v395 = vld [vmem:[#allocation3 + $0xb0] sm:$0xff]
    %v396 = vld [vmem:[#allocation3 + $0xb8] sm:$0xff]
    %v397 = vld [vmem:[#allocation3 + $0xc0] sm:$0xff]
    %v398 = vld [vmem:[#allocation3 + $0xc8] sm:$0xff]
    %v399 = vld [vmem:[#allocation3 + $0xd0] sm:$0xff]
    %v400 = vld [vmem:[#allocation3 + $0xd8] sm:$0xff]
    %v401 = vld [vmem:[#allocation3 + $0xe0] sm:$0xff]
    %v402 = vld [vmem:[#allocation3 + $0xe8] sm:$0xff]
    %v403 = vld [vmem:[#allocation3 + $0xf0] sm:$0xff]
    %v404 = vld [vmem:[#allocation3 + $0xf8] sm:$0xff]
    %v405 = vld [vmem:[#allocation3 + $0x100] sm:$0xff]
    %v406 = vld [vmem:[#allocation3 + $0x108] sm:$0xff]
    %v407 = vld [vmem:[#allocation3 + $0x110] sm:$0xff]
    %v408 = vld [vmem:[#allocation3 + $0x118] sm:$0xff]
    %v409 = vld [vmem:[#allocation3 + $0x120] sm:$0xff]
    %v410 = vld [vmem:[#allocation3 + $0x128] sm:$0xff]
    %v411 = vld [vmem:[#allocation3 + $0x130] sm:$0xff]
    %v412 = vld [vmem:[#allocation3 + $0x138] sm:$0xff]
    %v414 = vsel %vm44, %v326, 0
    %v417 = vsel %vm44, %v328, 0
    %v420 = vsel %vm44, %v330, 0
    %v423 = vsel %vm44, %v332, 0
    %v426 = vsel %vm44, %v334, 0
    %v429 = vsel %vm44, %v336, 0
    %v432 = vsel %vm44, %v338, 0
    %v435 = vsel %vm44, %v340, 0
    %v438 = vsel %vm44, %v342, 0
    %v441 = vsel %vm44, %v344, 0
    %v444 = vsel %vm44, %v346, 0
    %v447 = vsel %vm44, %v348, 0
    %449 = vmatprep.subr.mxu0 %v404
    %450 = vmatpush1.msra.mxu0 %v403
    %451 = vmatprep.subr.mxu0 %v402
    %452 = vmatpush1.msra.mxu0 %v401
    %453 = vmatprep.subr.mxu0 %v400
    %454 = vmatpush1.msra.mxu0 %v399
    %455 = vmatprep.subr.mxu0 %v398
    %456 = vmatpush1.msra.mxu0 %v397
    %457 = vmatprep.subr.mxu0 %v396
    %458 = vmatpush1.msra.mxu0 %v395
    %459 = vmatprep.subr.mxu0 %v394
    %460 = vmatpush1.msra.mxu0 %v393
    %461 = vmatprep.subr.mxu0 %v392
    %462 = vmatpush1.msra.mxu0 %v391
    %463 = vmatprep.subr.mxu0 %v390
    %464 = vmatpush1.msra.mxu0 %v389
    %465 = vmatprep.subr.mxu0 %v388
    %466 = vmatpush1.msra.mxu0 %v387
    %467 = vmatprep.subr.mxu0 %v386
    %468 = vmatpush1.msra.mxu0 %v385
    %469 = vmatprep.subr.mxu0 %v384
    %470 = vmatpush1.msra.mxu0 %v383
    %471 = vmatprep.subr.mxu0 %v382
    %472 = vmatpush1.msra.mxu0 %v381
    %473 = vmatprep.subr.mxu0 %v380
    %474 = vmatpush1.msra.mxu0 %v379
    %475 = vmatprep.subr.mxu0 %v378
    %476 = vmatpush1.msra.mxu0 %v377
    %477 = vmatprep.subr.mxu0 %v376
    %478 = vmatpush1.msra.mxu0 %v375
    %479 = vmatprep.subr.mxu0 %v374
    %480 = vmatpush1.msra.mxu0 %v373
    %481 = vmatprep.subr.mxu0 0.0
    %482 = vmatpush2.msra.mxu0 0.0
    %483 = vmatprep.subr.mxu0 0.0
    %484 = vmatpush2.msra.mxu0 0.0
    %485 = vmatprep.subr.mxu0 0.0
    %486 = vmatpush2.msra.mxu0 0.0
    %487 = vmatprep.subr.mxu0 0.0
    %488 = vmatpush2.msra.mxu0 0.0
    %489 = vmatprep.subr.mxu0 0.0
    %490 = vmatpush2.msra.mxu0 0.0
    %491 = vmatprep.subr.mxu0 0.0
    %492 = vmatpush2.msra.mxu0 0.0
    %493 = vmatprep.subr.mxu0 0.0
    %494 = vmatpush2.msra.mxu0 0.0
    %495 = vmatprep.subr.mxu0 0.0
    %496 = vmatpush2.msra.mxu0 0.0
    %497 = vmatprep.subr.mxu0 0.0
    %498 = vmatpush2.msra.mxu0 0.0
    %499 = vmatprep.subr.mxu0 0.0
    %500 = vmatpush2.msra.mxu0 0.0
    %501 = vmatprep.subr.mxu0 0.0
    %502 = vmatpush2.msra.mxu0 0.0
    %503 = vmatprep.subr.mxu0 0.0
    %504 = vmatpush2.msra.mxu0 0.0
    %505 = vmatprep.subr.mxu0 %v412
    %506 = vmatpush2.msra.mxu0 %v411
    %507 = vmatprep.subr.mxu0 %v410
    %508 = vmatpush2.msra.mxu0 %v409
    %509 = vmatprep.subr.mxu0 %v408
    %510 = vmatpush2.msra.mxu0 %v407
    %511 = vmatprep.subr.mxu0 %v406
    %512 = vmatpush2.msra.mxu0 %v405
    %513 = vmatprep.mubr.f32.mxu0 %v414
    %514 = vmatmul.mubr.f32.gmra.mxu0 %v325
    %v515 = vpop.f32.mrf.mxu0
    %v516 = vadd.f32 0.0, %v515
    %v517 = vpop.f32.mrf.mxu0
    %v518 = vadd.f32 0.0, %v517
    %519 = vmatprep.mubr.f32.mxu0 %v417
    %520 = vmatmul.mubr.f32.gmra.mxu0 %v327
    %v521 = vpop.f32.mrf.mxu0
    %v522 = vadd.f32 0.0, %v521
    %v523 = vpop.f32.mrf.mxu0
    %v524 = vadd.f32 0.0, %v523
    %525 = vmatprep.mubr.f32.mxu0 %v420
    %526 = vmatmul.mubr.f32.gmra.mxu0 %v329
    %v527 = vpop.f32.mrf.mxu0
    %v528 = vadd.f32 0.0, %v527
    %v529 = vpop.f32.mrf.mxu0
    %v530 = vadd.f32 0.0, %v529
    %531 = vmatprep.mubr.f32.mxu0 %v423
    %532 = vmatmul.mubr.f32.gmra.mxu0 %v331
    %v533 = vpop.f32.mrf.mxu0
    %v534 = vadd.f32 0.0, %v533
    %v535 = vpop.f32.mrf.mxu0
    %v536 = vadd.f32 0.0, %v535
    %537 = vmatprep.mubr.f32.mxu0 %v426
    %538 = vmatmul.mubr.f32.gmra.mxu0 %v333
    %v539 = vpop.f32.mrf.mxu0
    %v540 = vadd.f32 0.0, %v539
    %v541 = vpop.f32.mrf.mxu0
    %v542 = vadd.f32 0.0, %v541
    %543 = vmatprep.mubr.f32.mxu0 %v429
    %544 = vmatmul.mubr.f32.gmra.mxu0 %v335
    %v545 = vpop.f32.mrf.mxu0
    %v546 = vadd.f32 0.0, %v545
    %v547 = vpop.f32.mrf.mxu0
    %v548 = vadd.f32 0.0, %v547
    %549 = vmatprep.mubr.f32.mxu0 %v432
    %550 = vmatmul.mubr.f32.gmra.mxu0 %v337
    %v551 = vpop.f32.mrf.mxu0
    %v552 = vadd.f32 0.0, %v551
    %v553 = vpop.f32.mrf.mxu0
    %v554 = vadd.f32 0.0, %v553
    %555 = vmatprep.mubr.f32.mxu0 %v435
    %556 = vmatmul.mubr.f32.gmra.mxu0 %v339
    %v557 = vpop.f32.mrf.mxu0
    %v558 = vadd.f32 0.0, %v557
    %v559 = vpop.f32.mrf.mxu0
    %v560 = vadd.f32 0.0, %v559
    %561 = vmatprep.mubr.f32.mxu0 %v438
    %562 = vmatmul.mubr.f32.gmra.mxu0 %v341
    %v563 = vpop.f32.mrf.mxu0
    %v564 = vadd.f32 0.0, %v563
    %v565 = vpop.f32.mrf.mxu0
    %v566 = vadd.f32 0.0, %v565
    %567 = vmatprep.mubr.f32.mxu0 %v441
    %568 = vmatmul.mubr.f32.gmra.mxu0 %v343
    %v569 = vpop.f32.mrf.mxu0
    %v570 = vadd.f32 0.0, %v569
    %v571 = vpop.f32.mrf.mxu0
    %v572 = vadd.f32 0.0, %v571
    %573 = vmatprep.mubr.f32.mxu0 %v444
    %574 = vmatmul.mubr.f32.gmra.mxu0 %v345
    %v575 = vpop.f32.mrf.mxu0
    %v576 = vadd.f32 0.0, %v575
    %v577 = vpop.f32.mrf.mxu0
    %v578 = vadd.f32 0.0, %v577
    %579 = vmatprep.mubr.f32.mxu0 %v447
    %580 = vmatmul.mubr.f32.gmra.mxu0 %v347
    %v581 = vpop.f32.mrf.mxu0
    %v582 = vadd.f32 0.0, %v581
    %v583 = vpop.f32.mrf.mxu0
    %v584 = vadd.f32 0.0, %v583
    %585 = vdwg.mxu0
    %v586 = vadd.f32 %v349, %v516
    %v587 = vadd.f32 %v350, %v518
    %v588 = vadd.f32 %v351, %v522
    %v589 = vadd.f32 %v352, %v524
    %v590 = vadd.f32 %v353, %v528
    %v591 = vadd.f32 %v354, %v530
    %v592 = vadd.f32 %v355, %v534
    %v593 = vadd.f32 %v356, %v536
    %v594 = vadd.f32 %v357, %v540
    %v595 = vadd.f32 %v358, %v542
    %v596 = vadd.f32 %v359, %v546
    %v597 = vadd.f32 %v360, %v548
    %v598 = vadd.f32 %v361, %v552
    %v599 = vadd.f32 %v362, %v554
    %v600 = vadd.f32 %v363, %v558
    %v601 = vadd.f32 %v364, %v560
    %v602 = vadd.f32 %v365, %v564
    %v603 = vadd.f32 %v366, %v566
    %v604 = vadd.f32 %v367, %v570
    %v605 = vadd.f32 %v368, %v572
    %v606 = vadd.f32 %v369, %v576
    %v607 = vadd.f32 %v370, %v578
    %v608 = vadd.f32 %v371, %v582
    %v609 = vadd.f32 %v372, %v584
    %610 = vst [vmem:[%s4] sm:$0xff] %v586
    %611 = vst.msk [vmem:[%s4 + $0x8] sm:$0xff] %vm44, %v587
    %612 = vst [vmem:[%s4 + $0x10] sm:$0xff] %v588
    %613 = vst.msk [vmem:[%s4 + $0x18] sm:$0xff] %vm44, %v589
    %614 = vst [vmem:[%s4 + $0x20] sm:$0xff] %v590
    %615 = vst.msk [vmem:[%s4 + $0x28] sm:$0xff] %vm44, %v591
    %616 = vst [vmem:[%s4 + $0x30] sm:$0xff] %v592
    %617 = vst.msk [vmem:[%s4 + $0x38] sm:$0xff] %vm44, %v593
    %618 = vst [vmem:[%s4 + $0x40] sm:$0xff] %v594
    %619 = vst.msk [vmem:[%s4 + $0x48] sm:$0xff] %vm44, %v595
    %620 = vst [vmem:[%s4 + $0x50] sm:$0xff] %v596
    %621 = vst.msk [vmem:[%s4 + $0x58] sm:$0xff] %vm44, %v597
    %622 = vst [vmem:[%s4 + $0x60] sm:$0xff] %v598
    %623 = vst.msk [vmem:[%s4 + $0x68] sm:$0xff] %vm44, %v599
    %624 = vst [vmem:[%s4 + $0x70] sm:$0xff] %v600
    %625 = vst.msk [vmem:[%s4 + $0x78] sm:$0xff] %vm44, %v601
    %626 = vst [vmem:[%s4 + $0x80] sm:$0xff] %v602
    %627 = vst.msk [vmem:[%s4 + $0x88] sm:$0xff] %vm44, %v603
    %628 = vst [vmem:[%s4 + $0x90] sm:$0xff] %v604
    %629 = vst.msk [vmem:[%s4 + $0x98] sm:$0xff] %vm44, %v605
    %630 = vst [vmem:[%s4 + $0xa0] sm:$0xff] %v606
    %631 = vst.msk [vmem:[%s4 + $0xa8] sm:$0xff] %vm44, %v607
    %632 = vst [vmem:[%s4 + $0xb0] sm:$0xff] %v608
    %633 = vst.msk [vmem:[%s4 + $0xb8] sm:$0xff] %vm44, %v609
    %v634 = vld [vmem:[#allocation2] sm:$0x80]
    %v635 = vld [vmem:[#allocation2 + $0x8] sm:$0x80]
    %v636 = vld [vmem:[#allocation2 + $0x10] sm:$0xff]
    %v637 = vld [vmem:[#allocation2 + $0x18] sm:$0xff]
    %v638 = vld [vmem:[#allocation2 + $0x20] sm:$0xff]
    %v639 = vld [vmem:[#allocation2 + $0x28] sm:$0xff]
    %v640 = vld [vmem:[#allocation2 + $0x30] sm:$0xff]
    %v641 = vld [vmem:[#allocation2 + $0x38] sm:$0xff]
    %v642 = vld [vmem:[#allocation2 + $0x40] sm:$0xff]
    %v643 = vld [vmem:[#allocation2 + $0x48] sm:$0xff]
    %v644 = vld [vmem:[#allocation2 + $0x50] sm:$0xff]
    %v645 = vld [vmem:[#allocation2 + $0x58] sm:$0xff]
    %v646 = vld [vmem:[#allocation2 + $0x60] sm:$0xff]
    %v647 = vld [vmem:[#allocation2 + $0x68] sm:$0xff]
    %v648 = vld [vmem:[#allocation2 + $0x70] sm:$0xff]
    %v649 = vld [vmem:[#allocation2 + $0x78] sm:$0xff]
    %v650 = vld [vmem:[#allocation2 + $0x80] sm:$0xff]
    %v651 = vld [vmem:[#allocation2 + $0x88] sm:$0xff]
    %v652 = vld [vmem:[#allocation2 + $0x90] sm:$0xff]
    %v653 = vld [vmem:[#allocation2 + $0x98] sm:$0xff]
    %v654 = vld [vmem:[#allocation2 + $0xa0] sm:$0xff]
    %v655 = vld [vmem:[#allocation2 + $0xa8] sm:$0xff]
    %v656 = vld [vmem:[#allocation2 + $0xb0] sm:$0xff]
    %v657 = vld [vmem:[#allocation2 + $0xb8] sm:$0xff]
    %v658 = vld [vmem:[#allocation2 + $0xc0] sm:$0x7f]
    %v659 = vld [vmem:[#allocation2 + $0xc8] sm:$0x7f]
    %v660 = vld [vmem:[%s4] sm:$0xff]
    %v661 = vld [vmem:[%s4 + $0x8] sm:$0xff]
    %v662 = vld [vmem:[%s4 + $0x10] sm:$0xff]
    %v663 = vld [vmem:[%s4 + $0x18] sm:$0xff]
    %v664 = vld [vmem:[%s4 + $0x20] sm:$0xff]
    %v665 = vld [vmem:[%s4 + $0x28] sm:$0xff]
    %v666 = vld [vmem:[%s4 + $0x30] sm:$0xff]
    %v667 = vld [vmem:[%s4 + $0x38] sm:$0xff]
    %v668 = vld [vmem:[%s4 + $0x40] sm:$0xff]
    %v669 = vld [vmem:[%s4 + $0x48] sm:$0xff]
    %v670 = vld [vmem:[%s4 + $0x50] sm:$0xff]
    %v671 = vld [vmem:[%s4 + $0x58] sm:$0xff]
    %v672 = vld [vmem:[%s4 + $0x60] sm:$0xff]
    %v673 = vld [vmem:[%s4 + $0x68] sm:$0xff]
    %v674 = vld [vmem:[%s4 + $0x70] sm:$0xff]
    %v675 = vld [vmem:[%s4 + $0x78] sm:$0xff]
    %v676 = vld [vmem:[%s4 + $0x80] sm:$0xff]
    %v677 = vld [vmem:[%s4 + $0x88] sm:$0xff]
    %v678 = vld [vmem:[%s4 + $0x90] sm:$0xff]
    %v679 = vld [vmem:[%s4 + $0x98] sm:$0xff]
    %v680 = vld [vmem:[%s4 + $0xa0] sm:$0xff]
    %v681 = vld [vmem:[%s4 + $0xa8] sm:$0xff]
    %v682 = vld [vmem:[%s4 + $0xb0] sm:$0xff]
    %v683 = vld [vmem:[%s4 + $0xb8] sm:$0xff]
    %s684 = scalar_lea.vmem [#allocation3], 320
    %v685 = vld [vmem:[%s684] sm:$0xff]
    %v686 = vld [vmem:[%s684 + $0x8] sm:$0xff]
    %v687 = vld [vmem:[%s684 + $0x10] sm:$0xff]
    %v688 = vld [vmem:[%s684 + $0x18] sm:$0xff]
    %v689 = vld [vmem:[%s684 + $0x20] sm:$0xff]
    %v690 = vld [vmem:[%s684 + $0x28] sm:$0xff]
    %v691 = vld [vmem:[%s684 + $0x30] sm:$0xff]
    %v692 = vld [vmem:[%s684 + $0x38] sm:$0xff]
    %v693 = vld [vmem:[%s684 + $0x40] sm:$0xff]
    %v694 = vld [vmem:[%s684 + $0x48] sm:$0xff]
    %v695 = vld [vmem:[%s684 + $0x50] sm:$0xff]
    %v696 = vld [vmem:[%s684 + $0x58] sm:$0xff]
    %v697 = vld [vmem:[%s684 + $0x60] sm:$0xff]
    %v698 = vld [vmem:[%s684 + $0x68] sm:$0xff]
    %v699 = vld [vmem:[%s684 + $0x70] sm:$0xff]
    %v700 = vld [vmem:[%s684 + $0x78] sm:$0xff]
    %v701 = vld [vmem:[%s684 + $0x80] sm:$0xff]
    %v702 = vld [vmem:[%s684 + $0x88] sm:$0xff]
    %v703 = vld [vmem:[%s684 + $0x90] sm:$0xff]
    %v704 = vld [vmem:[%s684 + $0x98] sm:$0xff]
    %v705 = vld [vmem:[%s684 + $0xa0] sm:$0xff]
    %v706 = vld [vmem:[%s684 + $0xa8] sm:$0xff]
    %v707 = vld [vmem:[%s684 + $0xb0] sm:$0xff]
    %v708 = vld [vmem:[%s684 + $0xb8] sm:$0xff]
    %v709 = vld [vmem:[%s684 + $0xc0] sm:$0xff]
    %v710 = vld [vmem:[%s684 + $0xc8] sm:$0xff]
    %v711 = vld [vmem:[%s684 + $0xd0] sm:$0xff]
    %v712 = vld [vmem:[%s684 + $0xd8] sm:$0xff]
    %v713 = vld [vmem:[%s684 + $0xe0] sm:$0xff]
    %v714 = vld [vmem:[%s684 + $0xe8] sm:$0xff]
    %v715 = vld [vmem:[%s684 + $0xf0] sm:$0xff]
    %v716 = vld [vmem:[%s684 + $0xf8] sm:$0xff]
    %v717 = vld [vmem:[%s684 + $0x100] sm:$0xff]
    %v718 = vld [vmem:[%s684 + $0x108] sm:$0xff]
    %v719 = vld [vmem:[%s684 + $0x110] sm:$0xff]
    %v720 = vld [vmem:[%s684 + $0x118] sm:$0xff]
    %v721 = vld [vmem:[%s684 + $0x120] sm:$0xff]
    %v722 = vld [vmem:[%s684 + $0x128] sm:$0xff]
    %v723 = vld [vmem:[%s684 + $0x130] sm:$0xff]
    %v724 = vld [vmem:[%s684 + $0x138] sm:$0xff]
    %v751 = vrot.slane %v634, 7
    %v752 = vrot.slane %v636, 7
    %v753 = vsel %vm121, %v751, %v752
    %v754 = vrot.slane %v635, 7
    %v755 = vrot.slane %v637, 7
    %v756 = vsel %vm121, %v754, %v755
    %v757 = vrot.slane %v638, 7
    %v758 = vsel %vm121, %v752, %v757
    %v759 = vrot.slane %v639, 7
    %v760 = vsel %vm121, %v755, %v759
    %v761 = vrot.slane %v640, 7
    %v762 = vsel %vm121, %v757, %v761
    %v763 = vrot.slane %v641, 7
    %v764 = vsel %vm121, %v759, %v763
    %v765 = vrot.slane %v642, 7
    %v766 = vsel %vm121, %v761, %v765
    %v767 = vrot.slane %v643, 7
    %v768 = vsel %vm121, %v763, %v767
    %v769 = vrot.slane %v644, 7
    %v770 = vsel %vm121, %v765, %v769
    %v771 = vrot.slane %v645, 7
    %v772 = vsel %vm121, %v767, %v771
    %v773 = vrot.slane %v646, 7
    %v774 = vsel %vm121, %v769, %v773
    %v775 = vrot.slane %v647, 7
    %v776 = vsel %vm121, %v771, %v775
    %v777 = vrot.slane %v648, 7
    %v778 = vsel %vm121, %v773, %v777
    %v779 = vrot.slane %v649, 7
    %v780 = vsel %vm121, %v775, %v779
    %v781 = vrot.slane %v650, 7
    %v782 = vsel %vm121, %v777, %v781
    %v783 = vrot.slane %v651, 7
    %v784 = vsel %vm121, %v779, %v783
    %v785 = vrot.slane %v652, 7
    %v786 = vsel %vm121, %v781, %v785
    %v787 = vrot.slane %v653, 7
    %v788 = vsel %vm121, %v783, %v787
    %v789 = vrot.slane %v654, 7
    %v790 = vsel %vm121, %v785, %v789
    %v791 = vrot.slane %v655, 7
    %v792 = vsel %vm121, %v787, %v791
    %v793 = vrot.slane %v656, 7
    %v794 = vsel %vm121, %v789, %v793
    %v795 = vrot.slane %v657, 7
    %v796 = vsel %vm121, %v791, %v795
    %v797 = vrot.slane %v658, 7
    %v798 = vsel %vm121, %v793, %v797
    %v799 = vrot.slane %v659, 7
    %v800 = vsel %vm121, %v795, %v799
    %v813 = vsel %vm44, %v756, 0
    %v815 = vsel %vm44, %v760, 0
    %v817 = vsel %vm44, %v764, 0
    %v819 = vsel %vm44, %v768, 0
    %v821 = vsel %vm44, %v772, 0
    %v823 = vsel %vm44, %v776, 0
    %v825 = vsel %vm44, %v780, 0
    %v827 = vsel %vm44, %v784, 0
    %v829 = vsel %vm44, %v788, 0
    %v831 = vsel %vm44, %v792, 0
    %v833 = vsel %vm44, %v796, 0
    %v835 = vsel %vm44, %v800, 0
    %837 = vmatprep.subr.mxu0 %v716
    %838 = vmatpush1.msra.mxu0 %v715
    %839 = vmatprep.subr.mxu0 %v714
    %840 = vmatpush1.msra.mxu0 %v713
    %841 = vmatprep.subr.mxu0 %v712
    %842 = vmatpush1.msra.mxu0 %v711
    %843 = vmatprep.subr.mxu0 %v710
    %844 = vmatpush1.msra.mxu0 %v709
    %845 = vmatprep.subr.mxu0 %v708
    %846 = vmatpush1.msra.mxu0 %v707
    %847 = vmatprep.subr.mxu0 %v706
    %848 = vmatpush1.msra.mxu0 %v705
    %849 = vmatprep.subr.mxu0 %v704
    %850 = vmatpush1.msra.mxu0 %v703
    %851 = vmatprep.subr.mxu0 %v702
    %852 = vmatpush1.msra.mxu0 %v701
    %853 = vmatprep.subr.mxu0 %v700
    %854 = vmatpush1.msra.mxu0 %v699
    %855 = vmatprep.subr.mxu0 %v698
    %856 = vmatpush1.msra.mxu0 %v697
    %857 = vmatprep.subr.mxu0 %v696
    %858 = vmatpush1.msra.mxu0 %v695
    %859 = vmatprep.subr.mxu0 %v694
    %860 = vmatpush1.msra.mxu0 %v693
    %861 = vmatprep.subr.mxu0 %v692
    %862 = vmatpush1.msra.mxu0 %v691
    %863 = vmatprep.subr.mxu0 %v690
    %864 = vmatpush1.msra.mxu0 %v689
    %865 = vmatprep.subr.mxu0 %v688
    %866 = vmatpush1.msra.mxu0 %v687
    %867 = vmatprep.subr.mxu0 %v686
    %868 = vmatpush1.msra.mxu0 %v685
    %869 = vmatprep.subr.mxu0 0.0
    %870 = vmatpush2.msra.mxu0 0.0
    %871 = vmatprep.subr.mxu0 0.0
    %872 = vmatpush2.msra.mxu0 0.0
    %873 = vmatprep.subr.mxu0 0.0
    %874 = vmatpush2.msra.mxu0 0.0
    %875 = vmatprep.subr.mxu0 0.0
    %876 = vmatpush2.msra.mxu0 0.0
    %877 = vmatprep.subr.mxu0 0.0
    %878 = vmatpush2.msra.mxu0 0.0
    %879 = vmatprep.subr.mxu0 0.0
    %880 = vmatpush2.msra.mxu0 0.0
    %881 = vmatprep.subr.mxu0 0.0
    %882 = vmatpush2.msra.mxu0 0.0
    %883 = vmatprep.subr.mxu0 0.0
    %884 = vmatpush2.msra.mxu0 0.0
    %885 = vmatprep.subr.mxu0 0.0
    %886 = vmatpush2.msra.mxu0 0.0
    %887 = vmatprep.subr.mxu0 0.0
    %888 = vmatpush2.msra.mxu0 0.0
    %889 = vmatprep.subr.mxu0 0.0
    %890 = vmatpush2.msra.mxu0 0.0
    %891 = vmatprep.subr.mxu0 0.0
    %892 = vmatpush2.msra.mxu0 0.0
    %893 = vmatprep.subr.mxu0 %v724
    %894 = vmatpush2.msra.mxu0 %v723
    %895 = vmatprep.subr.mxu0 %v722
    %896 = vmatpush2.msra.mxu0 %v721
    %897 = vmatprep.subr.mxu0 %v720
    %898 = vmatpush2.msra.mxu0 %v719
    %899 = vmatprep.subr.mxu0 %v718
    %900 = vmatpush2.msra.mxu0 %v717
    %901 = vmatprep.mubr.f32.mxu0 %v813
    %902 = vmatmul.mubr.f32.gmra.mxu0 %v753
    %v903 = vpop.f32.mrf.mxu0
    %v904 = vadd.f32 0.0, %v903
    %v905 = vpop.f32.mrf.mxu0
    %v906 = vadd.f32 0.0, %v905
    %907 = vmatprep.mubr.f32.mxu0 %v815
    %908 = vmatmul.mubr.f32.gmra.mxu0 %v758
    %v909 = vpop.f32.mrf.mxu0
    %v910 = vadd.f32 0.0, %v909
    %v911 = vpop.f32.mrf.mxu0
    %v912 = vadd.f32 0.0, %v911
    %913 = vmatprep.mubr.f32.mxu0 %v817
    %914 = vmatmul.mubr.f32.gmra.mxu0 %v762
    %v915 = vpop.f32.mrf.mxu0
    %v916 = vadd.f32 0.0, %v915
    %v917 = vpop.f32.mrf.mxu0
    %v918 = vadd.f32 0.0, %v917
    %919 = vmatprep.mubr.f32.mxu0 %v819
    %920 = vmatmul.mubr.f32.gmra.mxu0 %v766
    %v921 = vpop.f32.mrf.mxu0
    %v922 = vadd.f32 0.0, %v921
    %v923 = vpop.f32.mrf.mxu0
    %v924 = vadd.f32 0.0, %v923
    %925 = vmatprep.mubr.f32.mxu0 %v821
    %926 = vmatmul.mubr.f32.gmra.mxu0 %v770
    %v927 = vpop.f32.mrf.mxu0
    %v928 = vadd.f32 0.0, %v927
    %v929 = vpop.f32.mrf.mxu0
    %v930 = vadd.f32 0.0, %v929
    %931 = vmatprep.mubr.f32.mxu0 %v823
    %932 = vmatmul.mubr.f32.gmra.mxu0 %v774
    %v933 = vpop.f32.mrf.mxu0
    %v934 = vadd.f32 0.0, %v933
    %v935 = vpop.f32.mrf.mxu0
    %v936 = vadd.f32 0.0, %v935
    %937 = vmatprep.mubr.f32.mxu0 %v825
    %938 = vmatmul.mubr.f32.gmra.mxu0 %v778
    %v939 = vpop.f32.mrf.mxu0
    %v940 = vadd.f32 0.0, %v939
    %v941 = vpop.f32.mrf.mxu0
    %v942 = vadd.f32 0.0, %v941
    %943 = vmatprep.mubr.f32.mxu0 %v827
    %944 = vmatmul.mubr.f32.gmra.mxu0 %v782
    %v945 = vpop.f32.mrf.mxu0
    %v946 = vadd.f32 0.0, %v945
    %v947 = vpop.f32.mrf.mxu0
    %v948 = vadd.f32 0.0, %v947
    %949 = vmatprep.mubr.f32.mxu0 %v829
    %950 = vmatmul.mubr.f32.gmra.mxu0 %v786
    %v951 = vpop.f32.mrf.mxu0
    %v952 = vadd.f32 0.0, %v951
    %v953 = vpop.f32.mrf.mxu0
    %v954 = vadd.f32 0.0, %v953
    %955 = vmatprep.mubr.f32.mxu0 %v831
    %956 = vmatmul.mubr.f32.gmra.mxu0 %v790
    %v957 = vpop.f32.mrf.mxu0
    %v958 = vadd.f32 0.0, %v957
    %v959 = vpop.f32.mrf.mxu0
    %v960 = vadd.f32 0.0, %v959
    %961 = vmatprep.mubr.f32.mxu0 %v833
    %962 = vmatmul.mubr.f32.gmra.mxu0 %v794
    %v963 = vpop.f32.mrf.mxu0
    %v964 = vadd.f32 0.0, %v963
    %v965 = vpop.f32.mrf.mxu0
    %v966 = vadd.f32 0.0, %v965
    %967 = vmatprep.mubr.f32.mxu0 %v835
    %968 = vmatmul.mubr.f32.gmra.mxu0 %v798
    %v969 = vpop.f32.mrf.mxu0
    %v970 = vadd.f32 0.0, %v969
    %v971 = vpop.f32.mrf.mxu0
    %v972 = vadd.f32 0.0, %v971
    %973 = vdwg.mxu0
    %v974 = vadd.f32 %v660, %v904
    %v975 = vadd.f32 %v661, %v906
    %v976 = vadd.f32 %v662, %v910
    %v977 = vadd.f32 %v663, %v912
    %v978 = vadd.f32 %v664, %v916
    %v979 = vadd.f32 %v665, %v918
    %v980 = vadd.f32 %v666, %v922
    %v981 = vadd.f32 %v667, %v924
    %v982 = vadd.f32 %v668, %v928
    %v983 = vadd.f32 %v669, %v930
    %v984 = vadd.f32 %v670, %v934
    %v985 = vadd.f32 %v671, %v936
    %v986 = vadd.f32 %v672, %v940
    %v987 = vadd.f32 %v673, %v942
    %v988 = vadd.f32 %v674, %v946
    %v989 = vadd.f32 %v675, %v948
    %v990 = vadd.f32 %v676, %v952
    %v991 = vadd.f32 %v677, %v954
    %v992 = vadd.f32 %v678, %v958
    %v993 = vadd.f32 %v679, %v960
    %v994 = vadd.f32 %v680, %v964
    %v995 = vadd.f32 %v681, %v966
    %v996 = vadd.f32 %v682, %v970
    %v997 = vadd.f32 %v683, %v972
    %998 = vst [vmem:[%s4] sm:$0xff] %v974
    %999 = vst.msk [vmem:[%s4 + $0x8] sm:$0xff] %vm44, %v975
    %1000 = vst [vmem:[%s4 + $0x10] sm:$0xff] %v976
    %1001 = vst.msk [vmem:[%s4 + $0x18] sm:$0xff] %vm44, %v977
    %1002 = vst [vmem:[%s4 + $0x20] sm:$0xff] %v978
    %1003 = vst.msk [vmem:[%s4 + $0x28] sm:$0xff] %vm44, %v979
    %1004 = vst [vmem:[%s4 + $0x30] sm:$0xff] %v980
    %1005 = vst.msk [vmem:[%s4 + $0x38] sm:$0xff] %vm44, %v981
    %1006 = vst [vmem:[%s4 + $0x40] sm:$0xff] %v982
    %1007 = vst.msk [vmem:[%s4 + $0x48] sm:$0xff] %vm44, %v983
    %1008 = vst [vmem:[%s4 + $0x50] sm:$0xff] %v984
    %1009 = vst.msk [vmem:[%s4 + $0x58] sm:$0xff] %vm44, %v985
    %1010 = vst [vmem:[%s4 + $0x60] sm:$0xff] %v986
    %1011 = vst.msk [vmem:[%s4 + $0x68] sm:$0xff] %vm44, %v987
    %1012 = vst [vmem:[%s4 + $0x70] sm:$0xff] %v988
    %1013 = vst.msk [vmem:[%s4 + $0x78] sm:$0xff] %vm44, %v989
    %1014 = vst [vmem:[%s4 + $0x80] sm:$0xff] %v990
    %1015 = vst.msk [vmem:[%s4 + $0x88] sm:$0xff] %vm44, %v991
    %1016 = vst [vmem:[%s4 + $0x90] sm:$0xff] %v992
    %1017 = vst.msk [vmem:[%s4 + $0x98] sm:$0xff] %vm44, %v993
    %1018 = vst [vmem:[%s4 + $0xa0] sm:$0xff] %v994
    %1019 = vst.msk [vmem:[%s4 + $0xa8] sm:$0xff] %vm44, %v995
    %1020 = vst [vmem:[%s4 + $0xb0] sm:$0xff] %v996
    %1021 = vst.msk [vmem:[%s4 + $0xb8] sm:$0xff] %vm44, %v997
    %v1022 = vld [vmem:[#allocation2] sm:$0xc0]
    %v1023 = vld [vmem:[#allocation2 + $0x8] sm:$0xc0]
    %v1024 = vld [vmem:[#allocation2 + $0x10] sm:$0xff]
    %v1025 = vld [vmem:[#allocation2 + $0x18] sm:$0xff]
    %v1026 = vld [vmem:[#allocation2 + $0x20] sm:$0xff]
    %v1027 = vld [vmem:[#allocation2 + $0x28] sm:$0xff]
    %v1028 = vld [vmem:[#allocation2 + $0x30] sm:$0xff]
    %v1029 = vld [vmem:[#allocation2 + $0x38] sm:$0xff]
    %v1030 = vld [vmem:[#allocation2 + $0x40] sm:$0xff]
    %v1031 = vld [vmem:[#allocation2 + $0x48] sm:$0xff]
    %v1032 = vld [vmem:[#allocation2 + $0x50] sm:$0xff]
    %v1033 = vld [vmem:[#allocation2 + $0x58] sm:$0xff]
    %v1034 = vld [vmem:[#allocation2 + $0x60] sm:$0xff]
    %v1035 = vld [vmem:[#allocation2 + $0x68] sm:$0xff]
    %v1036 = vld [vmem:[#allocation2 + $0x70] sm:$0xff]
    %v1037 = vld [vmem:[#allocation2 + $0x78] sm:$0xff]
    %v1038 = vld [vmem:[#allocation2 + $0x80] sm:$0xff]
    %v1039 = vld [vmem:[#allocation2 + $0x88] sm:$0xff]
    %v1040 = vld [vmem:[#allocation2 + $0x90] sm:$0xff]
    %v1041 = vld [vmem:[#allocation2 + $0x98] sm:$0xff]
    %v1042 = vld [vmem:[#allocation2 + $0xa0] sm:$0xff]
    %v1043 = vld [vmem:[#allocation2 + $0xa8] sm:$0xff]
    %v1044 = vld [vmem:[#allocation2 + $0xb0] sm:$0xff]
    %v1045 = vld [vmem:[#allocation2 + $0xb8] sm:$0xff]
    %v1046 = vld [vmem:[#allocation2 + $0xc0] sm:$0x3f]
    %v1047 = vld [vmem:[#allocation2 + $0xc8] sm:$0x3f]
    %v1048 = vld [vmem:[%s4] sm:$0xff]
    %v1049 = vld [vmem:[%s4 + $0x8] sm:$0xff]
    %v1050 = vld [vmem:[%s4 + $0x10] sm:$0xff]
    %v1051 = vld [vmem:[%s4 + $0x18] sm:$0xff]
    %v1052 = vld [vmem:[%s4 + $0x20] sm:$0xff]
    %v1053 = vld [vmem:[%s4 + $0x28] sm:$0xff]
    %v1054 = vld [vmem:[%s4 + $0x30] sm:$0xff]
    %v1055 = vld [vmem:[%s4 + $0x38] sm:$0xff]
    %v1056 = vld [vmem:[%s4 + $0x40] sm:$0xff]
    %v1057 = vld [vmem:[%s4 + $0x48] sm:$0xff]
    %v1058 = vld [vmem:[%s4 + $0x50] sm:$0xff]
    %v1059 = vld [vmem:[%s4 + $0x58] sm:$0xff]
    %v1060 = vld [vmem:[%s4 + $0x60] sm:$0xff]
    %v1061 = vld [vmem:[%s4 + $0x68] sm:$0xff]
    %v1062 = vld [vmem:[%s4 + $0x70] sm:$0xff]
    %v1063 = vld [vmem:[%s4 + $0x78] sm:$0xff]
    %v1064 = vld [vmem:[%s4 + $0x80] sm:$0xff]
    %v1065 = vld [vmem:[%s4 + $0x88] sm:$0xff]
    %v1066 = vld [vmem:[%s4 + $0x90] sm:$0xff]
    %v1067 = vld [vmem:[%s4 + $0x98] sm:$0xff]
    %v1068 = vld [vmem:[%s4 + $0xa0] sm:$0xff]
    %v1069 = vld [vmem:[%s4 + $0xa8] sm:$0xff]
    %v1070 = vld [vmem:[%s4 + $0xb0] sm:$0xff]
    %v1071 = vld [vmem:[%s4 + $0xb8] sm:$0xff]
    %s1072 = scalar_lea.vmem [#allocation3], 640
    %v1073 = vld [vmem:[%s1072] sm:$0xff]
    %v1074 = vld [vmem:[%s1072 + $0x8] sm:$0xff]
    %v1075 = vld [vmem:[%s1072 + $0x10] sm:$0xff]
    %v1076 = vld [vmem:[%s1072 + $0x18] sm:$0xff]
    %v1077 = vld [vmem:[%s1072 + $0x20] sm:$0xff]
    %v1078 = vld [vmem:[%s1072 + $0x28] sm:$0xff]
    %v1079 = vld [vmem:[%s1072 + $0x30] sm:$0xff]
    %v1080 = vld [vmem:[%s1072 + $0x38] sm:$0xff]
    %v1081 = vld [vmem:[%s1072 + $0x40] sm:$0xff]
    %v1082 = vld [vmem:[%s1072 + $0x48] sm:$0xff]
    %v1083 = vld [vmem:[%s1072 + $0x50] sm:$0xff]
    %v1084 = vld [vmem:[%s1072 + $0x58] sm:$0xff]
    %v1085 = vld [vmem:[%s1072 + $0x60] sm:$0xff]
    %v1086 = vld [vmem:[%s1072 + $0x68] sm:$0xff]
    %v1087 = vld [vmem:[%s1072 + $0x70] sm:$0xff]
    %v1088 = vld [vmem:[%s1072 + $0x78] sm:$0xff]
    %v1089 = vld [vmem:[%s1072 + $0x80] sm:$0xff]
    %v1090 = vld [vmem:[%s1072 + $0x88] sm:$0xff]
    %v1091 = vld [vmem:[%s1072 + $0x90] sm:$0xff]
    %v1092 = vld [vmem:[%s1072 + $0x98] sm:$0xff]
    %v1093 = vld [vmem:[%s1072 + $0xa0] sm:$0xff]
    %v1094 = vld [vmem:[%s1072 + $0xa8] sm:$0xff]
    %v1095 = vld [vmem:[%s1072 + $0xb0] sm:$0xff]
    %v1096 = vld [vmem:[%s1072 + $0xb8] sm:$0xff]
    %v1097 = vld [vmem:[%s1072 + $0xc0] sm:$0xff]
    %v1098 = vld [vmem:[%s1072 + $0xc8] sm:$0xff]
    %v1099 = vld [vmem:[%s1072 + $0xd0] sm:$0xff]
    %v1100 = vld [vmem:[%s1072 + $0xd8] sm:$0xff]
    %v1101 = vld [vmem:[%s1072 + $0xe0] sm:$0xff]
    %v1102 = vld [vmem:[%s1072 + $0xe8] sm:$0xff]
    %v1103 = vld [vmem:[%s1072 + $0xf0] sm:$0xff]
    %v1104 = vld [vmem:[%s1072 + $0xf8] sm:$0xff]
    %v1105 = vld [vmem:[%s1072 + $0x100] sm:$0xff]
    %v1106 = vld [vmem:[%s1072 + $0x108] sm:$0xff]
    %v1107 = vld [vmem:[%s1072 + $0x110] sm:$0xff]
    %v1108 = vld [vmem:[%s1072 + $0x118] sm:$0xff]
    %v1109 = vld [vmem:[%s1072 + $0x120] sm:$0xff]
    %v1110 = vld [vmem:[%s1072 + $0x128] sm:$0xff]
    %v1111 = vld [vmem:[%s1072 + $0x130] sm:$0xff]
    %v1112 = vld [vmem:[%s1072 + $0x138] sm:$0xff]
    %vm1139 = vcmask 1041408
    %v1140 = vrot.slane %v1022, 6
    %v1141 = vrot.slane %v1024, 6
    %v1142 = vsel %vm1139, %v1140, %v1141
    %v1143 = vrot.slane %v1023, 6
    %v1144 = vrot.slane %v1025, 6
    %v1145 = vsel %vm1139, %v1143, %v1144
    %v1146 = vrot.slane %v1026, 6
    %v1147 = vsel %vm1139, %v1141, %v1146
    %v1148 = vrot.slane %v1027, 6
    %v1149 = vsel %vm1139, %v1144, %v1148
    %v1150 = vrot.slane %v1028, 6
    %v1151 = vsel %vm1139, %v1146, %v1150
    %v1152 = vrot.slane %v1029, 6
    %v1153 = vsel %vm1139, %v1148, %v1152
    %v1154 = vrot.slane %v1030, 6
    %v1155 = vsel %vm1139, %v1150, %v1154
    %v1156 = vrot.slane %v1031, 6
    %v1157 = vsel %vm1139, %v1152, %v1156
    %v1158 = vrot.slane %v1032, 6
    %v1159 = vsel %vm1139, %v1154, %v1158
    %v1160 = vrot.slane %v1033, 6
    %v1161 = vsel %vm1139, %v1156, %v1160
    %v1162 = vrot.slane %v1034, 6
    %v1163 = vsel %vm1139, %v1158, %v1162
    %v1164 = vrot.slane %v1035, 6
    %v1165 = vsel %vm1139, %v1160, %v1164
    %v1166 = vrot.slane %v1036, 6
    %v1167 = vsel %vm1139, %v1162, %v1166
    %v1168 = vrot.slane %v1037, 6
    %v1169 = vsel %vm1139, %v1164, %v1168
    %v1170 = vrot.slane %v1038, 6
    %v1171 = vsel %vm1139, %v1166, %v1170
    %v1172 = vrot.slane %v1039, 6
    %v1173 = vsel %vm1139, %v1168, %v1172
    %v1174 = vrot.slane %v1040, 6
    %v1175 = vsel %vm1139, %v1170, %v1174
    %v1176 = vrot.slane %v1041, 6
    %v1177 = vsel %vm1139, %v1172, %v1176
    %v1178 = vrot.slane %v1042, 6
    %v1179 = vsel %vm1139, %v1174, %v1178
    %v1180 = vrot.slane %v1043, 6
    %v1181 = vsel %vm1139, %v1176, %v1180
    %v1182 = vrot.slane %v1044, 6
    %v1183 = vsel %vm1139, %v1178, %v1182
    %v1184 = vrot.slane %v1045, 6
    %v1185 = vsel %vm1139, %v1180, %v1184
    %v1186 = vrot.slane %v1046, 6
    %v1187 = vsel %vm1139, %v1182, %v1186
    %v1188 = vrot.slane %v1047, 6
    %v1189 = vsel %vm1139, %v1184, %v1188
    %v1202 = vsel %vm44, %v1145, 0
    %v1204 = vsel %vm44, %v1149, 0
    %v1206 = vsel %vm44, %v1153, 0
    %v1208 = vsel %vm44, %v1157, 0
    %v1210 = vsel %vm44, %v1161, 0
    %v1212 = vsel %vm44, %v1165, 0
    %v1214 = vsel %vm44, %v1169, 0
    %v1216 = vsel %vm44, %v1173, 0
    %v1218 = vsel %vm44, %v1177, 0
    %v1220 = vsel %vm44, %v1181, 0
    %v1222 = vsel %vm44, %v1185, 0
    %v1224 = vsel %vm44, %v1189, 0
    %1226 = vmatprep.subr.mxu0 %v1104
    %1227 = vmatpush1.msra.mxu0 %v1103
    %1228 = vmatprep.subr.mxu0 %v1102
    %1229 = vmatpush1.msra.mxu0 %v1101
    %1230 = vmatprep.subr.mxu0 %v1100
    %1231 = vmatpush1.msra.mxu0 %v1099
    %1232 = vmatprep.subr.mxu0 %v1098
    %1233 = vmatpush1.msra.mxu0 %v1097
    %1234 = vmatprep.subr.mxu0 %v1096
    %1235 = vmatpush1.msra.mxu0 %v1095
    %1236 = vmatprep.subr.mxu0 %v1094
    %1237 = vmatpush1.msra.mxu0 %v1093
    %1238 = vmatprep.subr.mxu0 %v1092
    %1239 = vmatpush1.msra.mxu0 %v1091
    %1240 = vmatprep.subr.mxu0 %v1090
    %1241 = vmatpush1.msra.mxu0 %v1089
    %1242 = vmatprep.subr.mxu0 %v1088
    %1243 = vmatpush1.msra.mxu0 %v1087
    %1244 = vmatprep.subr.mxu0 %v1086
    %1245 = vmatpush1.msra.mxu0 %v1085
    %1246 = vmatprep.subr.mxu0 %v1084
    %1247 = vmatpush1.msra.mxu0 %v1083
    %1248 = vmatprep.subr.mxu0 %v1082
    %1249 = vmatpush1.msra.mxu0 %v1081
    %1250 = vmatprep.subr.mxu0 %v1080
    %1251 = vmatpush1.msra.mxu0 %v1079
    %1252 = vmatprep.subr.mxu0 %v1078
    %1253 = vmatpush1.msra.mxu0 %v1077
    %1254 = vmatprep.subr.mxu0 %v1076
    %1255 = vmatpush1.msra.mxu0 %v1075
    %1256 = vmatprep.subr.mxu0 %v1074
    %1257 = vmatpush1.msra.mxu0 %v1073
    %1258 = vmatprep.subr.mxu0 0.0
    %1259 = vmatpush2.msra.mxu0 0.0
    %1260 = vmatprep.subr.mxu0 0.0
    %1261 = vmatpush2.msra.mxu0 0.0
    %1262 = vmatprep.subr.mxu0 0.0
    %1263 = vmatpush2.msra.mxu0 0.0
    %1264 = vmatprep.subr.mxu0 0.0
    %1265 = vmatpush2.msra.mxu0 0.0
    %1266 = vmatprep.subr.mxu0 0.0
    %1267 = vmatpush2.msra.mxu0 0.0
    %1268 = vmatprep.subr.mxu0 0.0
    %1269 = vmatpush2.msra.mxu0 0.0
    %1270 = vmatprep.subr.mxu0 0.0
    %1271 = vmatpush2.msra.mxu0 0.0
    %1272 = vmatprep.subr.mxu0 0.0
    %1273 = vmatpush2.msra.mxu0 0.0
    %1274 = vmatprep.subr.mxu0 0.0
    %1275 = vmatpush2.msra.mxu0 0.0
    %1276 = vmatprep.subr.mxu0 0.0
    %1277 = vmatpush2.msra.mxu0 0.0
    %1278 = vmatprep.subr.mxu0 0.0
    %1279 = vmatpush2.msra.mxu0 0.0
    %1280 = vmatprep.subr.mxu0 0.0
    %1281 = vmatpush2.msra.mxu0 0.0
    %1282 = vmatprep.subr.mxu0 %v1112
    %1283 = vmatpush2.msra.mxu0 %v1111
    %1284 = vmatprep.subr.mxu0 %v1110
    %1285 = vmatpush2.msra.mxu0 %v1109
    %1286 = vmatprep.subr.mxu0 %v1108
    %1287 = vmatpush2.msra.mxu0 %v1107
    %1288 = vmatprep.subr.mxu0 %v1106
    %1289 = vmatpush2.msra.mxu0 %v1105
    %1290 = vmatprep.mubr.f32.mxu0 %v1202
    %1291 = vmatmul.mubr.f32.gmra.mxu0 %v1142
    %v1292 = vpop.f32.mrf.mxu0
    %v1293 = vadd.f32 0.0, %v1292
    %v1294 = vpop.f32.mrf.mxu0
    %v1295 = vadd.f32 0.0, %v1294
    %1296 = vmatprep.mubr.f32.mxu0 %v1204
    %1297 = vmatmul.mubr.f32.gmra.mxu0 %v1147
    %v1298 = vpop.f32.mrf.mxu0
    %v1299 = vadd.f32 0.0, %v1298
    %v1300 = vpop.f32.mrf.mxu0
    %v1301 = vadd.f32 0.0, %v1300
    %1302 = vmatprep.mubr.f32.mxu0 %v1206
    %1303 = vmatmul.mubr.f32.gmra.mxu0 %v1151
    %v1304 = vpop.f32.mrf.mxu0
    %v1305 = vadd.f32 0.0, %v1304
    %v1306 = vpop.f32.mrf.mxu0
    %v1307 = vadd.f32 0.0, %v1306
    %1308 = vmatprep.mubr.f32.mxu0 %v1208
    %1309 = vmatmul.mubr.f32.gmra.mxu0 %v1155
    %v1310 = vpop.f32.mrf.mxu0
    %v1311 = vadd.f32 0.0, %v1310
    %v1312 = vpop.f32.mrf.mxu0
    %v1313 = vadd.f32 0.0, %v1312
    %1314 = vmatprep.mubr.f32.mxu0 %v1210
    %1315 = vmatmul.mubr.f32.gmra.mxu0 %v1159
    %v1316 = vpop.f32.mrf.mxu0
    %v1317 = vadd.f32 0.0, %v1316
    %v1318 = vpop.f32.mrf.mxu0
    %v1319 = vadd.f32 0.0, %v1318
    %1320 = vmatprep.mubr.f32.mxu0 %v1212
    %1321 = vmatmul.mubr.f32.gmra.mxu0 %v1163
    %v1322 = vpop.f32.mrf.mxu0
    %v1323 = vadd.f32 0.0, %v1322
    %v1324 = vpop.f32.mrf.mxu0
    %v1325 = vadd.f32 0.0, %v1324
    %1326 = vmatprep.mubr.f32.mxu0 %v1214
    %1327 = vmatmul.mubr.f32.gmra.mxu0 %v1167
    %v1328 = vpop.f32.mrf.mxu0
    %v1329 = vadd.f32 0.0, %v1328
    %v1330 = vpop.f32.mrf.mxu0
    %v1331 = vadd.f32 0.0, %v1330
    %1332 = vmatprep.mubr.f32.mxu0 %v1216
    %1333 = vmatmul.mubr.f32.gmra.mxu0 %v1171
    %v1334 = vpop.f32.mrf.mxu0
    %v1335 = vadd.f32 0.0, %v1334
    %v1336 = vpop.f32.mrf.mxu0
    %v1337 = vadd.f32 0.0, %v1336
    %1338 = vmatprep.mubr.f32.mxu0 %v1218
    %1339 = vmatmul.mubr.f32.gmra.mxu0 %v1175
    %v1340 = vpop.f32.mrf.mxu0
    %v1341 = vadd.f32 0.0, %v1340
    %v1342 = vpop.f32.mrf.mxu0
    %v1343 = vadd.f32 0.0, %v1342
    %1344 = vmatprep.mubr.f32.mxu0 %v1220
    %1345 = vmatmul.mubr.f32.gmra.mxu0 %v1179
    %v1346 = vpop.f32.mrf.mxu0
    %v1347 = vadd.f32 0.0, %v1346
    %v1348 = vpop.f32.mrf.mxu0
    %v1349 = vadd.f32 0.0, %v1348
    %1350 = vmatprep.mubr.f32.mxu0 %v1222
    %1351 = vmatmul.mubr.f32.gmra.mxu0 %v1183
    %v1352 = vpop.f32.mrf.mxu0
    %v1353 = vadd.f32 0.0, %v1352
    %v1354 = vpop.f32.mrf.mxu0
    %v1355 = vadd.f32 0.0, %v1354
    %1356 = vmatprep.mubr.f32.mxu0 %v1224
    %1357 = vmatmul.mubr.f32.gmra.mxu0 %v1187
    %v1358 = vpop.f32.mrf.mxu0
    %v1359 = vadd.f32 0.0, %v1358
    %v1360 = vpop.f32.mrf.mxu0
    %v1361 = vadd.f32 0.0, %v1360
    %1362 = vdwg.mxu0
    %v1363 = vadd.f32 %v1048, %v1293
    %v1364 = vadd.f32 %v1049, %v1295
    %v1365 = vadd.f32 %v1050, %v1299
    %v1366 = vadd.f32 %v1051, %v1301
    %v1367 = vadd.f32 %v1052, %v1305
    %v1368 = vadd.f32 %v1053, %v1307
    %v1369 = vadd.f32 %v1054, %v1311
    %v1370 = vadd.f32 %v1055, %v1313
    %v1371 = vadd.f32 %v1056, %v1317
    %v1372 = vadd.f32 %v1057, %v1319
    %v1373 = vadd.f32 %v1058, %v1323
    %v1374 = vadd.f32 %v1059, %v1325
    %v1375 = vadd.f32 %v1060, %v1329
    %v1376 = vadd.f32 %v1061, %v1331
    %v1377 = vadd.f32 %v1062, %v1335
    %v1378 = vadd.f32 %v1063, %v1337
    %v1379 = vadd.f32 %v1064, %v1341
    %v1380 = vadd.f32 %v1065, %v1343
    %v1381 = vadd.f32 %v1066, %v1347
    %v1382 = vadd.f32 %v1067, %v1349
    %v1383 = vadd.f32 %v1068, %v1353
    %v1384 = vadd.f32 %v1069, %v1355
    %v1385 = vadd.f32 %v1070, %v1359
    %v1386 = vadd.f32 %v1071, %v1361
    %1387 = vst [vmem:[%s4] sm:$0xff] %v1363
    %1388 = vst.msk [vmem:[%s4 + $0x8] sm:$0xff] %vm44, %v1364
    %1389 = vst [vmem:[%s4 + $0x10] sm:$0xff] %v1365
    %1390 = vst.msk [vmem:[%s4 + $0x18] sm:$0xff] %vm44, %v1366
    %1391 = vst [vmem:[%s4 + $0x20] sm:$0xff] %v1367
    %1392 = vst.msk [vmem:[%s4 + $0x28] sm:$0xff] %vm44, %v1368
    %1393 = vst [vmem:[%s4 + $0x30] sm:$0xff] %v1369
    %1394 = vst.msk [vmem:[%s4 + $0x38] sm:$0xff] %vm44, %v1370
    %1395 = vst [vmem:[%s4 + $0x40] sm:$0xff] %v1371
    %1396 = vst.msk [vmem:[%s4 + $0x48] sm:$0xff] %vm44, %v1372
    %1397 = vst [vmem:[%s4 + $0x50] sm:$0xff] %v1373
    %1398 = vst.msk [vmem:[%s4 + $0x58] sm:$0xff] %vm44, %v1374
    %1399 = vst [vmem:[%s4 + $0x60] sm:$0xff] %v1375
    %1400 = vst.msk [vmem:[%s4 + $0x68] sm:$0xff] %vm44, %v1376
    %1401 = vst [vmem:[%s4 + $0x70] sm:$0xff] %v1377
    %1402 = vst.msk [vmem:[%s4 + $0x78] sm:$0xff] %vm44, %v1378
    %1403 = vst [vmem:[%s4 + $0x80] sm:$0xff] %v1379
    %1404 = vst.msk [vmem:[%s4 + $0x88] sm:$0xff] %vm44, %v1380
    %1405 = vst [vmem:[%s4 + $0x90] sm:$0xff] %v1381
    %1406 = vst.msk [vmem:[%s4 + $0x98] sm:$0xff] %vm44, %v1382
    %1407 = vst [vmem:[%s4 + $0xa0] sm:$0xff] %v1383
    %1408 = vst.msk [vmem:[%s4 + $0xa8] sm:$0xff] %vm44, %v1384
    %1409 = vst [vmem:[%s4 + $0xb0] sm:$0xff] %v1385
    %1410 = vst.msk [vmem:[%s4 + $0xb8] sm:$0xff] %vm44, %v1386
    %v1411 = vld [vmem:[#allocation2] sm:$0xe0]
    %v1412 = vld [vmem:[#allocation2 + $0x8] sm:$0xe0]
    %v1413 = vld [vmem:[#allocation2 + $0x10] sm:$0xff]
    %v1414 = vld [vmem:[#allocation2 + $0x18] sm:$0xff]
    %v1415 = vld [vmem:[#allocation2 + $0x20] sm:$0xff]
    %v1416 = vld [vmem:[#allocation2 + $0x28] sm:$0xff]
    %v1417 = vld [vmem:[#allocation2 + $0x30] sm:$0xff]
    %v1418 = vld [vmem:[#allocation2 + $0x38] sm:$0xff]
    %v1419 = vld [vmem:[#allocation2 + $0x40] sm:$0xff]
    %v1420 = vld [vmem:[#allocation2 + $0x48] sm:$0xff]
    %v1421 = vld [vmem:[#allocation2 + $0x50] sm:$0xff]
    %v1422 = vld [vmem:[#allocation2 + $0x58] sm:$0xff]
    %v1423 = vld [vmem:[#allocation2 + $0x60] sm:$0xff]
    %v1424 = vld [vmem:[#allocation2 + $0x68] sm:$0xff]
    %v1425 = vld [vmem:[#allocation2 + $0x70] sm:$0xff]
    %v1426 = vld [vmem:[#allocation2 + $0x78] sm:$0xff]
    %v1427 = vld [vmem:[#allocation2 + $0x80] sm:$0xff]
    %v1428 = vld [vmem:[#allocation2 + $0x88] sm:$0xff]
    %v1429 = vld [vmem:[#allocation2 + $0x90] sm:$0xff]
    %v1430 = vld [vmem:[#allocation2 + $0x98] sm:$0xff]
    %v1431 = vld [vmem:[#allocation2 + $0xa0] sm:$0xff]
    %v1432 = vld [vmem:[#allocation2 + $0xa8] sm:$0xff]
    %v1433 = vld [vmem:[#allocation2 + $0xb0] sm:$0xff]
    %v1434 = vld [vmem:[#allocation2 + $0xb8] sm:$0xff]
    %v1435 = vld [vmem:[#allocation2 + $0xc0] sm:$0x1f]
    %v1436 = vld [vmem:[#allocation2 + $0xc8] sm:$0x1f]
    %v1437 = vld [vmem:[%s4] sm:$0xff]
    %v1438 = vld [vmem:[%s4 + $0x8] sm:$0xff]
    %v1439 = vld [vmem:[%s4 + $0x10] sm:$0xff]
    %v1440 = vld [vmem:[%s4 + $0x18] sm:$0xff]
    %v1441 = vld [vmem:[%s4 + $0x20] sm:$0xff]
    %v1442 = vld [vmem:[%s4 + $0x28] sm:$0xff]
    %v1443 = vld [vmem:[%s4 + $0x30] sm:$0xff]
    %v1444 = vld [vmem:[%s4 + $0x38] sm:$0xff]
    %v1445 = vld [vmem:[%s4 + $0x40] sm:$0xff]
    %v1446 = vld [vmem:[%s4 + $0x48] sm:$0xff]
    %v1447 = vld [vmem:[%s4 + $0x50] sm:$0xff]
    %v1448 = vld [vmem:[%s4 + $0x58] sm:$0xff]
    %v1449 = vld [vmem:[%s4 + $0x60] sm:$0xff]
    %v1450 = vld [vmem:[%s4 + $0x68] sm:$0xff]
    %v1451 = vld [vmem:[%s4 + $0x70] sm:$0xff]
    %v1452 = vld [vmem:[%s4 + $0x78] sm:$0xff]
    %v1453 = vld [vmem:[%s4 + $0x80] sm:$0xff]
    %v1454 = vld [vmem:[%s4 + $0x88] sm:$0xff]
    %v1455 = vld [vmem:[%s4 + $0x90] sm:$0xff]
    %v1456 = vld [vmem:[%s4 + $0x98] sm:$0xff]
    %v1457 = vld [vmem:[%s4 + $0xa0] sm:$0xff]
    %v1458 = vld [vmem:[%s4 + $0xa8] sm:$0xff]
    %v1459 = vld [vmem:[%s4 + $0xb0] sm:$0xff]
    %v1460 = vld [vmem:[%s4 + $0xb8] sm:$0xff]
    %s1461 = scalar_lea.vmem [#allocation3], 960
    %v1462 = vld [vmem:[%s1461] sm:$0xff]
    %v1463 = vld [vmem:[%s1461 + $0x8] sm:$0xff]
    %v1464 = vld [vmem:[%s1461 + $0x10] sm:$0xff]
    %v1465 = vld [vmem:[%s1461 + $0x18] sm:$0xff]
    %v1466 = vld [vmem:[%s1461 + $0x20] sm:$0xff]
    %v1467 = vld [vmem:[%s1461 + $0x28] sm:$0xff]
    %v1468 = vld [vmem:[%s1461 + $0x30] sm:$0xff]
    %v1469 = vld [vmem:[%s1461 + $0x38] sm:$0xff]
    %v1470 = vld [vmem:[%s1461 + $0x40] sm:$0xff]
    %v1471 = vld [vmem:[%s1461 + $0x48] sm:$0xff]
    %v1472 = vld [vmem:[%s1461 + $0x50] sm:$0xff]
    %v1473 = vld [vmem:[%s1461 + $0x58] sm:$0xff]
    %v1474 = vld [vmem:[%s1461 + $0x60] sm:$0xff]
    %v1475 = vld [vmem:[%s1461 + $0x68] sm:$0xff]
    %v1476 = vld [vmem:[%s1461 + $0x70] sm:$0xff]
    %v1477 = vld [vmem:[%s1461 + $0x78] sm:$0xff]
    %v1478 = vld [vmem:[%s1461 + $0x80] sm:$0xff]
    %v1479 = vld [vmem:[%s1461 + $0x88] sm:$0xff]
    %v1480 = vld [vmem:[%s1461 + $0x90] sm:$0xff]
    %v1481 = vld [vmem:[%s1461 + $0x98] sm:$0xff]
    %v1482 = vld [vmem:[%s1461 + $0xa0] sm:$0xff]
    %v1483 = vld [vmem:[%s1461 + $0xa8] sm:$0xff]
    %v1484 = vld [vmem:[%s1461 + $0xb0] sm:$0xff]
    %v1485 = vld [vmem:[%s1461 + $0xb8] sm:$0xff]
    %v1486 = vld [vmem:[%s1461 + $0xc0] sm:$0xff]
    %v1487 = vld [vmem:[%s1461 + $0xc8] sm:$0xff]
    %v1488 = vld [vmem:[%s1461 + $0xd0] sm:$0xff]
    %v1489 = vld [vmem:[%s1461 + $0xd8] sm:$0xff]
    %v1490 = vld [vmem:[%s1461 + $0xe0] sm:$0xff]
    %v1491 = vld [vmem:[%s1461 + $0xe8] sm:$0xff]
    %v1492 = vld [vmem:[%s1461 + $0xf0] sm:$0xff]
    %v1493 = vld [vmem:[%s1461 + $0xf8] sm:$0xff]
    %v1494 = vld [vmem:[%s1461 + $0x100] sm:$0xff]
    %v1495 = vld [vmem:[%s1461 + $0x108] sm:$0xff]
    %v1496 = vld [vmem:[%s1461 + $0x110] sm:$0xff]
    %v1497 = vld [vmem:[%s1461 + $0x118] sm:$0xff]
    %v1498 = vld [vmem:[%s1461 + $0x120] sm:$0xff]
    %v1499 = vld [vmem:[%s1461 + $0x128] sm:$0xff]
    %v1500 = vld [vmem:[%s1461 + $0x130] sm:$0xff]
    %v1501 = vld [vmem:[%s1461 + $0x138] sm:$0xff]
    %vm1528 = vcmask 1042432
    %v1529 = vrot.slane %v1411, 5
    %v1530 = vrot.slane %v1413, 5
    %v1531 = vsel %vm1528, %v1529, %v1530
    %v1532 = vrot.slane %v1412, 5
    %v1533 = vrot.slane %v1414, 5
    %v1534 = vsel %vm1528, %v1532, %v1533
    %v1535 = vrot.slane %v1415, 5
    %v1536 = vsel %vm1528, %v1530, %v1535
    %v1537 = vrot.slane %v1416, 5
    %v1538 = vsel %vm1528, %v1533, %v1537
    %v1539 = vrot.slane %v1417, 5
    %v1540 = vsel %vm1528, %v1535, %v1539
    %v1541 = vrot.slane %v1418, 5
    %v1542 = vsel %vm1528, %v1537, %v1541
    %v1543 = vrot.slane %v1419, 5
    %v1544 = vsel %vm1528, %v1539, %v1543
    %v1545 = vrot.slane %v1420, 5
    %v1546 = vsel %vm1528, %v1541, %v1545
    %v1547 = vrot.slane %v1421, 5
    %v1548 = vsel %vm1528, %v1543, %v1547
    %v1549 = vrot.slane %v1422, 5
    %v1550 = vsel %vm1528, %v1545, %v1549
    %v1551 = vrot.slane %v1423, 5
    %v1552 = vsel %vm1528, %v1547, %v1551
    %v1553 = vrot.slane %v1424, 5
    %v1554 = vsel %vm1528, %v1549, %v1553
    %v1555 = vrot.slane %v1425, 5
    %v1556 = vsel %vm1528, %v1551, %v1555
    %v1557 = vrot.slane %v1426, 5
    %v1558 = vsel %vm1528, %v1553, %v1557
    %v1559 = vrot.slane %v1427, 5
    %v1560 = vsel %vm1528, %v1555, %v1559
    %v1561 = vrot.slane %v1428, 5
    %v1562 = vsel %vm1528, %v1557, %v1561
    %v1563 = vrot.slane %v1429, 5
    %v1564 = vsel %vm1528, %v1559, %v1563
    %v1565 = vrot.slane %v1430, 5
    %v1566 = vsel %vm1528, %v1561, %v1565
    %v1567 = vrot.slane %v1431, 5
    %v1568 = vsel %vm1528, %v1563, %v1567
    %v1569 = vrot.slane %v1432, 5
    %v1570 = vsel %vm1528, %v1565, %v1569
    %v1571 = vrot.slane %v1433, 5
    %v1572 = vsel %vm1528, %v1567, %v1571
    %v1573 = vrot.slane %v1434, 5
    %v1574 = vsel %vm1528, %v1569, %v1573
    %v1575 = vrot.slane %v1435, 5
    %v1576 = vsel %vm1528, %v1571, %v1575
    %v1577 = vrot.slane %v1436, 5
    %v1578 = vsel %vm1528, %v1573, %v1577
    %v1591 = vsel %vm44, %v1534, 0
    %v1593 = vsel %vm44, %v1538, 0
    %v1595 = vsel %vm44, %v1542, 0
    %v1597 = vsel %vm44, %v1546, 0
    %v1599 = vsel %vm44, %v1550, 0
    %v1601 = vsel %vm44, %v1554, 0
    %v1603 = vsel %vm44, %v1558, 0
    %v1605 = vsel %vm44, %v1562, 0
    %v1607 = vsel %vm44, %v1566, 0
    %v1609 = vsel %vm44, %v1570, 0
    %v1611 = vsel %vm44, %v1574, 0
    %v1613 = vsel %vm44, %v1578, 0
    %1615 = vmatprep.subr.mxu0 %v1493
    %1616 = vmatpush1.msra.mxu0 %v1492
    %1617 = vmatprep.subr.mxu0 %v1491
    %1618 = vmatpush1.msra.mxu0 %v1490
    %1619 = vmatprep.subr.mxu0 %v1489
    %1620 = vmatpush1.msra.mxu0 %v1488
    %1621 = vmatprep.subr.mxu0 %v1487
    %1622 = vmatpush1.msra.mxu0 %v1486
    %1623 = vmatprep.subr.mxu0 %v1485
    %1624 = vmatpush1.msra.mxu0 %v1484
    %1625 = vmatprep.subr.mxu0 %v1483
    %1626 = vmatpush1.msra.mxu0 %v1482
    %1627 = vmatprep.subr.mxu0 %v1481
    %1628 = vmatpush1.msra.mxu0 %v1480
    %1629 = vmatprep.subr.mxu0 %v1479
    %1630 = vmatpush1.msra.mxu0 %v1478
    %1631 = vmatprep.subr.mxu0 %v1477
    %1632 = vmatpush1.msra.mxu0 %v1476
    %1633 = vmatprep.subr.mxu0 %v1475
    %1634 = vmatpush1.msra.mxu0 %v1474
    %1635 = vmatprep.subr.mxu0 %v1473
    %1636 = vmatpush1.msra.mxu0 %v1472
    %1637 = vmatprep.subr.mxu0 %v1471
    %1638 = vmatpush1.msra.mxu0 %v1470
    %1639 = vmatprep.subr.mxu0 %v1469
    %1640 = vmatpush1.msra.mxu0 %v1468
    %1641 = vmatprep.subr.mxu0 %v1467
    %1642 = vmatpush1.msra.mxu0 %v1466
    %1643 = vmatprep.subr.mxu0 %v1465
    %1644 = vmatpush1.msra.mxu0 %v1464
    %1645 = vmatprep.subr.mxu0 %v1463
    %1646 = vmatpush1.msra.mxu0 %v1462
    %1647 = vmatprep.subr.mxu0 0.0
    %1648 = vmatpush2.msra.mxu0 0.0
    %1649 = vmatprep.subr.mxu0 0.0
    %1650 = vmatpush2.msra.mxu0 0.0
    %1651 = vmatprep.subr.mxu0 0.0
    %1652 = vmatpush2.msra.mxu0 0.0
    %1653 = vmatprep.subr.mxu0 0.0
    %1654 = vmatpush2.msra.mxu0 0.0
    %1655 = vmatprep.subr.mxu0 0.0
    %1656 = vmatpush2.msra.mxu0 0.0
    %1657 = vmatprep.subr.mxu0 0.0
    %1658 = vmatpush2.msra.mxu0 0.0
    %1659 = vmatprep.subr.mxu0 0.0
    %1660 = vmatpush2.msra.mxu0 0.0
    %1661 = vmatprep.subr.mxu0 0.0
    %1662 = vmatpush2.msra.mxu0 0.0
    %1663 = vmatprep.subr.mxu0 0.0
    %1664 = vmatpush2.msra.mxu0 0.0
    %1665 = vmatprep.subr.mxu0 0.0
    %1666 = vmatpush2.msra.mxu0 0.0
    %1667 = vmatprep.subr.mxu0 0.0
    %1668 = vmatpush2.msra.mxu0 0.0
    %1669 = vmatprep.subr.mxu0 0.0
    %1670 = vmatpush2.msra.mxu0 0.0
    %1671 = vmatprep.subr.mxu0 %v1501
    %1672 = vmatpush2.msra.mxu0 %v1500
    %1673 = vmatprep.subr.mxu0 %v1499
    %1674 = vmatpush2.msra.mxu0 %v1498
    %1675 = vmatprep.subr.mxu0 %v1497
    %1676 = vmatpush2.msra.mxu0 %v1496
    %1677 = vmatprep.subr.mxu0 %v1495
    %1678 = vmatpush2.msra.mxu0 %v1494
    %1679 = vmatprep.mubr.f32.mxu0 %v1591
    %1680 = vmatmul.mubr.f32.gmra.mxu0 %v1531
    %v1681 = vpop.f32.mrf.mxu0
    %v1682 = vadd.f32 0.0, %v1681
    %v1683 = vpop.f32.mrf.mxu0
    %v1684 = vadd.f32 0.0, %v1683
    %1685 = vmatprep.mubr.f32.mxu0 %v1593
    %1686 = vmatmul.mubr.f32.gmra.mxu0 %v1536
    %v1687 = vpop.f32.mrf.mxu0
    %v1688 = vadd.f32 0.0, %v1687
    %v1689 = vpop.f32.mrf.mxu0
    %v1690 = vadd.f32 0.0, %v1689
    %1691 = vmatprep.mubr.f32.mxu0 %v1595
    %1692 = vmatmul.mubr.f32.gmra.mxu0 %v1540
    %v1693 = vpop.f32.mrf.mxu0
    %v1694 = vadd.f32 0.0, %v1693
    %v1695 = vpop.f32.mrf.mxu0
    %v1696 = vadd.f32 0.0, %v1695
    %1697 = vmatprep.mubr.f32.mxu0 %v1597
    %1698 = vmatmul.mubr.f32.gmra.mxu0 %v1544
    %v1699 = vpop.f32.mrf.mxu0
    %v1700 = vadd.f32 0.0, %v1699
    %v1701 = vpop.f32.mrf.mxu0
    %v1702 = vadd.f32 0.0, %v1701
    %1703 = vmatprep.mubr.f32.mxu0 %v1599
    %1704 = vmatmul.mubr.f32.gmra.mxu0 %v1548
    %v1705 = vpop.f32.mrf.mxu0
    %v1706 = vadd.f32 0.0, %v1705
    %v1707 = vpop.f32.mrf.mxu0
    %v1708 = vadd.f32 0.0, %v1707
    %1709 = vmatprep.mubr.f32.mxu0 %v1601
    %1710 = vmatmul.mubr.f32.gmra.mxu0 %v1552
    %v1711 = vpop.f32.mrf.mxu0
    %v1712 = vadd.f32 0.0, %v1711
    %v1713 = vpop.f32.mrf.mxu0
    %v1714 = vadd.f32 0.0, %v1713
    %1715 = vmatprep.mubr.f32.mxu0 %v1603
    %1716 = vmatmul.mubr.f32.gmra.mxu0 %v1556
    %v1717 = vpop.f32.mrf.mxu0
    %v1718 = vadd.f32 0.0, %v1717
    %v1719 = vpop.f32.mrf.mxu0
    %v1720 = vadd.f32 0.0, %v1719
    %1721 = vmatprep.mubr.f32.mxu0 %v1605
    %1722 = vmatmul.mubr.f32.gmra.mxu0 %v1560
    %v1723 = vpop.f32.mrf.mxu0
    %v1724 = vadd.f32 0.0, %v1723
    %v1725 = vpop.f32.mrf.mxu0
    %v1726 = vadd.f32 0.0, %v1725
    %1727 = vmatprep.mubr.f32.mxu0 %v1607
    %1728 = vmatmul.mubr.f32.gmra.mxu0 %v1564
    %v1729 = vpop.f32.mrf.mxu0
    %v1730 = vadd.f32 0.0, %v1729
    %v1731 = vpop.f32.mrf.mxu0
    %v1732 = vadd.f32 0.0, %v1731
    %1733 = vmatprep.mubr.f32.mxu0 %v1609
    %1734 = vmatmul.mubr.f32.gmra.mxu0 %v1568
    %v1735 = vpop.f32.mrf.mxu0
    %v1736 = vadd.f32 0.0, %v1735
    %v1737 = vpop.f32.mrf.mxu0
    %v1738 = vadd.f32 0.0, %v1737
    %1739 = vmatprep.mubr.f32.mxu0 %v1611
    %1740 = vmatmul.mubr.f32.gmra.mxu0 %v1572
    %v1741 = vpop.f32.mrf.mxu0
    %v1742 = vadd.f32 0.0, %v1741
    %v1743 = vpop.f32.mrf.mxu0
    %v1744 = vadd.f32 0.0, %v1743
    %1745 = vmatprep.mubr.f32.mxu0 %v1613
    %1746 = vmatmul.mubr.f32.gmra.mxu0 %v1576
    %v1747 = vpop.f32.mrf.mxu0
    %v1748 = vadd.f32 0.0, %v1747
    %v1749 = vpop.f32.mrf.mxu0
    %v1750 = vadd.f32 0.0, %v1749
    %1751 = vdwg.mxu0
    %v1752 = vadd.f32 %v1437, %v1682
    %v1753 = vadd.f32 %v1438, %v1684
    %v1754 = vadd.f32 %v1439, %v1688
    %v1755 = vadd.f32 %v1440, %v1690
    %v1756 = vadd.f32 %v1441, %v1694
    %v1757 = vadd.f32 %v1442, %v1696
    %v1758 = vadd.f32 %v1443, %v1700
    %v1759 = vadd.f32 %v1444, %v1702
    %v1760 = vadd.f32 %v1445, %v1706
    %v1761 = vadd.f32 %v1446, %v1708
    %v1762 = vadd.f32 %v1447, %v1712
    %v1763 = vadd.f32 %v1448, %v1714
    %v1764 = vadd.f32 %v1449, %v1718
    %v1765 = vadd.f32 %v1450, %v1720
    %v1766 = vadd.f32 %v1451, %v1724
    %v1767 = vadd.f32 %v1452, %v1726
    %v1768 = vadd.f32 %v1453, %v1730
    %v1769 = vadd.f32 %v1454, %v1732
    %v1770 = vadd.f32 %v1455, %v1736
    %v1771 = vadd.f32 %v1456, %v1738
    %v1772 = vadd.f32 %v1457, %v1742
    %v1773 = vadd.f32 %v1458, %v1744
    %v1774 = vadd.f32 %v1459, %v1748
    %v1775 = vadd.f32 %v1460, %v1750
    %1776 = vst [vmem:[%s4] sm:$0xff] %v1752
    %1777 = vst.msk [vmem:[%s4 + $0x8] sm:$0xff] %vm44, %v1753
    %1778 = vst [vmem:[%s4 + $0x10] sm:$0xff] %v1754
    %1779 = vst.msk [vmem:[%s4 + $0x18] sm:$0xff] %vm44, %v1755
    %1780 = vst [vmem:[%s4 + $0x20] sm:$0xff] %v1756
    %1781 = vst.msk [vmem:[%s4 + $0x28] sm:$0xff] %vm44, %v1757
    %1782 = vst [vmem:[%s4 + $0x30] sm:$0xff] %v1758
    %1783 = vst.msk [vmem:[%s4 + $0x38] sm:$0xff] %vm44, %v1759
    %1784 = vst [vmem:[%s4 + $0x40] sm:$0xff] %v1760
    %1785 = vst.msk [vmem:[%s4 + $0x48] sm:$0xff] %vm44, %v1761
    %1786 = vst [vmem:[%s4 + $0x50] sm:$0xff] %v1762
    %1787 = vst.msk [vmem:[%s4 + $0x58] sm:$0xff] %vm44, %v1763
    %1788 = vst [vmem:[%s4 + $0x60] sm:$0xff] %v1764
    %1789 = vst.msk [vmem:[%s4 + $0x68] sm:$0xff] %vm44, %v1765
    %1790 = vst [vmem:[%s4 + $0x70] sm:$0xff] %v1766
    %1791 = vst.msk [vmem:[%s4 + $0x78] sm:$0xff] %vm44, %v1767
    %1792 = vst [vmem:[%s4 + $0x80] sm:$0xff] %v1768
    %1793 = vst.msk [vmem:[%s4 + $0x88] sm:$0xff] %vm44, %v1769
    %1794 = vst [vmem:[%s4 + $0x90] sm:$0xff] %v1770
    %1795 = vst.msk [vmem:[%s4 + $0x98] sm:$0xff] %vm44, %v1771
    %1796 = vst [vmem:[%s4 + $0xa0] sm:$0xff] %v1772
    %1797 = vst.msk [vmem:[%s4 + $0xa8] sm:$0xff] %vm44, %v1773
    %1798 = vst [vmem:[%s4 + $0xb0] sm:$0xff] %v1774
    %1799 = vst.msk [vmem:[%s4 + $0xb8] sm:$0xff] %vm44, %v1775
    %v1800 = vld [vmem:[#allocation2] sm:$0xf0]
    %v1801 = vld [vmem:[#allocation2 + $0x8] sm:$0xf0]
    %v1802 = vld [vmem:[#allocation2 + $0x10] sm:$0xff]
    %v1803 = vld [vmem:[#allocation2 + $0x18] sm:$0xff]
    %v1804 = vld [vmem:[#allocation2 + $0x20] sm:$0xff]
    %v1805 = vld [vmem:[#allocation2 + $0x28] sm:$0xff]
    %v1806 = vld [vmem:[#allocation2 + $0x30] sm:$0xff]
    %v1807 = vld [vmem:[#allocation2 + $0x38] sm:$0xff]
    %v1808 = vld [vmem:[#allocation2 + $0x40] sm:$0xff]
    %v1809 = vld [vmem:[#allocation2 + $0x48] sm:$0xff]
    %v1810 = vld [vmem:[#allocation2 + $0x50] sm:$0xff]
    %v1811 = vld [vmem:[#allocation2 + $0x58] sm:$0xff]
    %v1812 = vld [vmem:[#allocation2 + $0x60] sm:$0xff]
    %v1813 = vld [vmem:[#allocation2 + $0x68] sm:$0xff]
    %v1814 = vld [vmem:[#allocation2 + $0x70] sm:$0xff]
    %v1815 = vld [vmem:[#allocation2 + $0x78] sm:$0xff]
    %v1816 = vld [vmem:[#allocation2 + $0x80] sm:$0xff]
    %v1817 = vld [vmem:[#allocation2 + $0x88] sm:$0xff]
    %v1818 = vld [vmem:[#allocation2 + $0x90] sm:$0xff]
    %v1819 = vld [vmem:[#allocation2 + $0x98] sm:$0xff]
    %v1820 = vld [vmem:[#allocation2 + $0xa0] sm:$0xff]
    %v1821 = vld [vmem:[#allocation2 + $0xa8] sm:$0xff]
    %v1822 = vld [vmem:[#allocation2 + $0xb0] sm:$0xff]
    %v1823 = vld [vmem:[#allocation2 + $0xb8] sm:$0xff]
    %v1824 = vld [vmem:[#allocation2 + $0xc0] sm:$0xf]
    %v1825 = vld [vmem:[#allocation2 + $0xc8] sm:$0xf]
    %v1826 = vld [vmem:[%s4] sm:$0xff]
    %v1827 = vld [vmem:[%s4 + $0x8] sm:$0xff]
    %v1828 = vld [vmem:[%s4 + $0x10] sm:$0xff]
    %v1829 = vld [vmem:[%s4 + $0x18] sm:$0xff]
    %v1830 = vld [vmem:[%s4 + $0x20] sm:$0xff]
    %v1831 = vld [vmem:[%s4 + $0x28] sm:$0xff]
    %v1832 = vld [vmem:[%s4 + $0x30] sm:$0xff]
    %v1833 = vld [vmem:[%s4 + $0x38] sm:$0xff]
    %v1834 = vld [vmem:[%s4 + $0x40] sm:$0xff]
    %v1835 = vld [vmem:[%s4 + $0x48] sm:$0xff]
    %v1836 = vld [vmem:[%s4 + $0x50] sm:$0xff]
    %v1837 = vld [vmem:[%s4 + $0x58] sm:$0xff]
    %v1838 = vld [vmem:[%s4 + $0x60] sm:$0xff]
    %v1839 = vld [vmem:[%s4 + $0x68] sm:$0xff]
    %v1840 = vld [vmem:[%s4 + $0x70] sm:$0xff]
    %v1841 = vld [vmem:[%s4 + $0x78] sm:$0xff]
    %v1842 = vld [vmem:[%s4 + $0x80] sm:$0xff]
    %v1843 = vld [vmem:[%s4 + $0x88] sm:$0xff]
    %v1844 = vld [vmem:[%s4 + $0x90] sm:$0xff]
    %v1845 = vld [vmem:[%s4 + $0x98] sm:$0xff]
    %v1846 = vld [vmem:[%s4 + $0xa0] sm:$0xff]
    %v1847 = vld [vmem:[%s4 + $0xa8] sm:$0xff]
    %v1848 = vld [vmem:[%s4 + $0xb0] sm:$0xff]
    %v1849 = vld [vmem:[%s4 + $0xb8] sm:$0xff]
    %s1850 = scalar_lea.vmem [#allocation3], 1280
    %v1851 = vld [vmem:[%s1850] sm:$0xff]
    %v1852 = vld [vmem:[%s1850 + $0x8] sm:$0xff]
    %v1853 = vld [vmem:[%s1850 + $0x10] sm:$0xff]
    %v1854 = vld [vmem:[%s1850 + $0x18] sm:$0xff]
    %v1855 = vld [vmem:[%s1850 + $0x20] sm:$0xff]
    %v1856 = vld [vmem:[%s1850 + $0x28] sm:$0xff]
    %v1857 = vld [vmem:[%s1850 + $0x30] sm:$0xff]
    %v1858 = vld [vmem:[%s1850 + $0x38] sm:$0xff]
    %v1859 = vld [vmem:[%s1850 + $0x40] sm:$0xff]
    %v1860 = vld [vmem:[%s1850 + $0x48] sm:$0xff]
    %v1861 = vld [vmem:[%s1850 + $0x50] sm:$0xff]
    %v1862 = vld [vmem:[%s1850 + $0x58] sm:$0xff]
    %v1863 = vld [vmem:[%s1850 + $0x60] sm:$0xff]
    %v1864 = vld [vmem:[%s1850 + $0x68] sm:$0xff]
    %v1865 = vld [vmem:[%s1850 + $0x70] sm:$0xff]
    %v1866 = vld [vmem:[%s1850 + $0x78] sm:$0xff]
    %v1867 = vld [vmem:[%s1850 + $0x80] sm:$0xff]
    %v1868 = vld [vmem:[%s1850 + $0x88] sm:$0xff]
    %v1869 = vld [vmem:[%s1850 + $0x90] sm:$0xff]
    %v1870 = vld [vmem:[%s1850 + $0x98] sm:$0xff]
    %v1871 = vld [vmem:[%s1850 + $0xa0] sm:$0xff]
    %v1872 = vld [vmem:[%s1850 + $0xa8] sm:$0xff]
    %v1873 = vld [vmem:[%s1850 + $0xb0] sm:$0xff]
    %v1874 = vld [vmem:[%s1850 + $0xb8] sm:$0xff]
    %v1875 = vld [vmem:[%s1850 + $0xc0] sm:$0xff]
    %v1876 = vld [vmem:[%s1850 + $0xc8] sm:$0xff]
    %v1877 = vld [vmem:[%s1850 + $0xd0] sm:$0xff]
    %v1878 = vld [vmem:[%s1850 + $0xd8] sm:$0xff]
    %v1879 = vld [vmem:[%s1850 + $0xe0] sm:$0xff]
    %v1880 = vld [vmem:[%s1850 + $0xe8] sm:$0xff]
    %v1881 = vld [vmem:[%s1850 + $0xf0] sm:$0xff]
    %v1882 = vld [vmem:[%s1850 + $0xf8] sm:$0xff]
    %v1883 = vld [vmem:[%s1850 + $0x100] sm:$0xff]
    %v1884 = vld [vmem:[%s1850 + $0x108] sm:$0xff]
    %v1885 = vld [vmem:[%s1850 + $0x110] sm:$0xff]
    %v1886 = vld [vmem:[%s1850 + $0x118] sm:$0xff]
    %v1887 = vld [vmem:[%s1850 + $0x120] sm:$0xff]
    %v1888 = vld [vmem:[%s1850 + $0x128] sm:$0xff]
    %v1889 = vld [vmem:[%s1850 + $0x130] sm:$0xff]
    %v1890 = vld [vmem:[%s1850 + $0x138] sm:$0xff]
    %vm1917 = vcmask 1043456
    %v1918 = vrot.slane %v1800, 4
    %v1919 = vrot.slane %v1802, 4
    %v1920 = vsel %vm1917, %v1918, %v1919
    %v1921 = vrot.slane %v1801, 4
    %v1922 = vrot.slane %v1803, 4
    %v1923 = vsel %vm1917, %v1921, %v1922
    %v1924 = vrot.slane %v1804, 4
    %v1925 = vsel %vm1917, %v1919, %v1924
    %v1926 = vrot.slane %v1805, 4
    %v1927 = vsel %vm1917, %v1922, %v1926
    %v1928 = vrot.slane %v1806, 4
    %v1929 = vsel %vm1917, %v1924, %v1928
    %v1930 = vrot.slane %v1807, 4
    %v1931 = vsel %vm1917, %v1926, %v1930
    %v1932 = vrot.slane %v1808, 4
    %v1933 = vsel %vm1917, %v1928, %v1932
    %v1934 = vrot.slane %v1809, 4
    %v1935 = vsel %vm1917, %v1930, %v1934
    %v1936 = vrot.slane %v1810, 4
    %v1937 = vsel %vm1917, %v1932, %v1936
    %v1938 = vrot.slane %v1811, 4
    %v1939 = vsel %vm1917, %v1934, %v1938
    %v1940 = vrot.slane %v1812, 4
    %v1941 = vsel %vm1917, %v1936, %v1940
    %v1942 = vrot.slane %v1813, 4
    %v1943 = vsel %vm1917, %v1938, %v1942
    %v1944 = vrot.slane %v1814, 4
    %v1945 = vsel %vm1917, %v1940, %v1944
    %v1946 = vrot.slane %v1815, 4
    %v1947 = vsel %vm1917, %v1942, %v1946
    %v1948 = vrot.slane %v1816, 4
    %v1949 = vsel %vm1917, %v1944, %v1948
    %v1950 = vrot.slane %v1817, 4
    %v1951 = vsel %vm1917, %v1946, %v1950
    %v1952 = vrot.slane %v1818, 4
    %v1953 = vsel %vm1917, %v1948, %v1952
    %v1954 = vrot.slane %v1819, 4
    %v1955 = vsel %vm1917, %v1950, %v1954
    %v1956 = vrot.slane %v1820, 4
    %v1957 = vsel %vm1917, %v1952, %v1956
    %v1958 = vrot.slane %v1821, 4
    %v1959 = vsel %vm1917, %v1954, %v1958
    %v1960 = vrot.slane %v1822, 4
    %v1961 = vsel %vm1917, %v1956, %v1960
    %v1962 = vrot.slane %v1823, 4
    %v1963 = vsel %vm1917, %v1958, %v1962
    %v1964 = vrot.slane %v1824, 4
    %v1965 = vsel %vm1917, %v1960, %v1964
    %v1966 = vrot.slane %v1825, 4
    %v1967 = vsel %vm1917, %v1962, %v1966
    %v1980 = vsel %vm44, %v1923, 0
    %v1982 = vsel %vm44, %v1927, 0
    %v1984 = vsel %vm44, %v1931, 0
    %v1986 = vsel %vm44, %v1935, 0
    %v1988 = vsel %vm44, %v1939, 0
    %v1990 = vsel %vm44, %v1943, 0
    %v1992 = vsel %vm44, %v1947, 0
    %v1994 = vsel %vm44, %v1951, 0
    %v1996 = vsel %vm44, %v1955, 0
    %v1998 = vsel %vm44, %v1959, 0
    %v2000 = vsel %vm44, %v1963, 0
    %v2002 = vsel %vm44, %v1967, 0
    %2004 = vmatprep.subr.mxu0 %v1882
    %2005 = vmatpush1.msra.mxu0 %v1881
    %2006 = vmatprep.subr.mxu0 %v1880
    %2007 = vmatpush1.msra.mxu0 %v1879
    %2008 = vmatprep.subr.mxu0 %v1878
    %2009 = vmatpush1.msra.mxu0 %v1877
    %2010 = vmatprep.subr.mxu0 %v1876
    %2011 = vmatpush1.msra.mxu0 %v1875
    %2012 = vmatprep.subr.mxu0 %v1874
    %2013 = vmatpush1.msra.mxu0 %v1873
    %2014 = vmatprep.subr.mxu0 %v1872
    %2015 = vmatpush1.msra.mxu0 %v1871
    %2016 = vmatprep.subr.mxu0 %v1870
    %2017 = vmatpush1.msra.mxu0 %v1869
    %2018 = vmatprep.subr.mxu0 %v1868
    %2019 = vmatpush1.msra.mxu0 %v1867
    %2020 = vmatprep.subr.mxu0 %v1866
    %2021 = vmatpush1.msra.mxu0 %v1865
    %2022 = vmatprep.subr.mxu0 %v1864
    %2023 = vmatpush1.msra.mxu0 %v1863
    %2024 = vmatprep.subr.mxu0 %v1862
    %2025 = vmatpush1.msra.mxu0 %v1861
    %2026 = vmatprep.subr.mxu0 %v1860
    %2027 = vmatpush1.msra.mxu0 %v1859
    %2028 = vmatprep.subr.mxu0 %v1858
    %2029 = vmatpush1.msra.mxu0 %v1857
    %2030 = vmatprep.subr.mxu0 %v1856
    %2031 = vmatpush1.msra.mxu0 %v1855
    %2032 = vmatprep.subr.mxu0 %v1854
    %2033 = vmatpush1.msra.mxu0 %v1853
    %2034 = vmatprep.subr.mxu0 %v1852
    %2035 = vmatpush1.msra.mxu0 %v1851
    %2036 = vmatprep.subr.mxu0 0.0
    %2037 = vmatpush2.msra.mxu0 0.0
    %2038 = vmatprep.subr.mxu0 0.0
    %2039 = vmatpush2.msra.mxu0 0.0
    %2040 = vmatprep.subr.mxu0 0.0
    %2041 = vmatpush2.msra.mxu0 0.0
    %2042 = vmatprep.subr.mxu0 0.0
    %2043 = vmatpush2.msra.mxu0 0.0
    %2044 = vmatprep.subr.mxu0 0.0
    %2045 = vmatpush2.msra.mxu0 0.0
    %2046 = vmatprep.subr.mxu0 0.0
    %2047 = vmatpush2.msra.mxu0 0.0
    %2048 = vmatprep.subr.mxu0 0.0
    %2049 = vmatpush2.msra.mxu0 0.0
    %2050 = vmatprep.subr.mxu0 0.0
    %2051 = vmatpush2.msra.mxu0 0.0
    %2052 = vmatprep.subr.mxu0 0.0
    %2053 = vmatpush2.msra.mxu0 0.0
    %2054 = vmatprep.subr.mxu0 0.0
    %2055 = vmatpush2.msra.mxu0 0.0
    %2056 = vmatprep.subr.mxu0 0.0
    %2057 = vmatpush2.msra.mxu0 0.0
    %2058 = vmatprep.subr.mxu0 0.0
    %2059 = vmatpush2.msra.mxu0 0.0
    %2060 = vmatprep.subr.mxu0 %v1890
    %2061 = vmatpush2.msra.mxu0 %v1889
    %2062 = vmatprep.subr.mxu0 %v1888
    %2063 = vmatpush2.msra.mxu0 %v1887
    %2064 = vmatprep.subr.mxu0 %v1886
    %2065 = vmatpush2.msra.mxu0 %v1885
    %2066 = vmatprep.subr.mxu0 %v1884
    %2067 = vmatpush2.msra.mxu0 %v1883
    %2068 = vmatprep.mubr.f32.mxu0 %v1980
    %2069 = vmatmul.mubr.f32.gmra.mxu0 %v1920
    %v2070 = vpop.f32.mrf.mxu0
    %v2071 = vadd.f32 0.0, %v2070
    %v2072 = vpop.f32.mrf.mxu0
    %v2073 = vadd.f32 0.0, %v2072
    %2074 = vmatprep.mubr.f32.mxu0 %v1982
    %2075 = vmatmul.mubr.f32.gmra.mxu0 %v1925
    %v2076 = vpop.f32.mrf.mxu0
    %v2077 = vadd.f32 0.0, %v2076
    %v2078 = vpop.f32.mrf.mxu0
    %v2079 = vadd.f32 0.0, %v2078
    %2080 = vmatprep.mubr.f32.mxu0 %v1984
    %2081 = vmatmul.mubr.f32.gmra.mxu0 %v1929
    %v2082 = vpop.f32.mrf.mxu0
    %v2083 = vadd.f32 0.0, %v2082
    %v2084 = vpop.f32.mrf.mxu0
    %v2085 = vadd.f32 0.0, %v2084
    %2086 = vmatprep.mubr.f32.mxu0 %v1986
    %2087 = vmatmul.mubr.f32.gmra.mxu0 %v1933
    %v2088 = vpop.f32.mrf.mxu0
    %v2089 = vadd.f32 0.0, %v2088
    %v2090 = vpop.f32.mrf.mxu0
    %v2091 = vadd.f32 0.0, %v2090
    %2092 = vmatprep.mubr.f32.mxu0 %v1988
    %2093 = vmatmul.mubr.f32.gmra.mxu0 %v1937
    %v2094 = vpop.f32.mrf.mxu0
    %v2095 = vadd.f32 0.0, %v2094
    %v2096 = vpop.f32.mrf.mxu0
    %v2097 = vadd.f32 0.0, %v2096
    %2098 = vmatprep.mubr.f32.mxu0 %v1990
    %2099 = vmatmul.mubr.f32.gmra.mxu0 %v1941
    %v2100 = vpop.f32.mrf.mxu0
    %v2101 = vadd.f32 0.0, %v2100
    %v2102 = vpop.f32.mrf.mxu0
    %v2103 = vadd.f32 0.0, %v2102
    %2104 = vmatprep.mubr.f32.mxu0 %v1992
    %2105 = vmatmul.mubr.f32.gmra.mxu0 %v1945
    %v2106 = vpop.f32.mrf.mxu0
    %v2107 = vadd.f32 0.0, %v2106
    %v2108 = vpop.f32.mrf.mxu0
    %v2109 = vadd.f32 0.0, %v2108
    %2110 = vmatprep.mubr.f32.mxu0 %v1994
    %2111 = vmatmul.mubr.f32.gmra.mxu0 %v1949
    %v2112 = vpop.f32.mrf.mxu0
    %v2113 = vadd.f32 0.0, %v2112
    %v2114 = vpop.f32.mrf.mxu0
    %v2115 = vadd.f32 0.0, %v2114
    %2116 = vmatprep.mubr.f32.mxu0 %v1996
    %2117 = vmatmul.mubr.f32.gmra.mxu0 %v1953
    %v2118 = vpop.f32.mrf.mxu0
    %v2119 = vadd.f32 0.0, %v2118
    %v2120 = vpop.f32.mrf.mxu0
    %v2121 = vadd.f32 0.0, %v2120
    %2122 = vmatprep.mubr.f32.mxu0 %v1998
    %2123 = vmatmul.mubr.f32.gmra.mxu0 %v1957
    %v2124 = vpop.f32.mrf.mxu0
    %v2125 = vadd.f32 0.0, %v2124
    %v2126 = vpop.f32.mrf.mxu0
    %v2127 = vadd.f32 0.0, %v2126
    %2128 = vmatprep.mubr.f32.mxu0 %v2000
    %2129 = vmatmul.mubr.f32.gmra.mxu0 %v1961
    %v2130 = vpop.f32.mrf.mxu0
    %v2131 = vadd.f32 0.0, %v2130
    %v2132 = vpop.f32.mrf.mxu0
    %v2133 = vadd.f32 0.0, %v2132
    %2134 = vmatprep.mubr.f32.mxu0 %v2002
    %2135 = vmatmul.mubr.f32.gmra.mxu0 %v1965
    %v2136 = vpop.f32.mrf.mxu0
    %v2137 = vadd.f32 0.0, %v2136
    %v2138 = vpop.f32.mrf.mxu0
    %v2139 = vadd.f32 0.0, %v2138
    %2140 = vdwg.mxu0
    %v2141 = vadd.f32 %v1826, %v2071
    %v2142 = vadd.f32 %v1827, %v2073
    %v2143 = vadd.f32 %v1828, %v2077
    %v2144 = vadd.f32 %v1829, %v2079
    %v2145 = vadd.f32 %v1830, %v2083
    %v2146 = vadd.f32 %v1831, %v2085
    %v2147 = vadd.f32 %v1832, %v2089
    %v2148 = vadd.f32 %v1833, %v2091
    %v2149 = vadd.f32 %v1834, %v2095
    %v2150 = vadd.f32 %v1835, %v2097
    %v2151 = vadd.f32 %v1836, %v2101
    %v2152 = vadd.f32 %v1837, %v2103
    %v2153 = vadd.f32 %v1838, %v2107
    %v2154 = vadd.f32 %v1839, %v2109
    %v2155 = vadd.f32 %v1840, %v2113
    %v2156 = vadd.f32 %v1841, %v2115
    %v2157 = vadd.f32 %v1842, %v2119
    %v2158 = vadd.f32 %v1843, %v2121
    %v2159 = vadd.f32 %v1844, %v2125
    %v2160 = vadd.f32 %v1845, %v2127
    %v2161 = vadd.f32 %v1846, %v2131
    %v2162 = vadd.f32 %v1847, %v2133
    %v2163 = vadd.f32 %v1848, %v2137
    %v2164 = vadd.f32 %v1849, %v2139
    %2165 = vst [vmem:[%s4] sm:$0xff] %v2141
    %2166 = vst.msk [vmem:[%s4 + $0x8] sm:$0xff] %vm44, %v2142
    %2167 = vst [vmem:[%s4 + $0x10] sm:$0xff] %v2143
    %2168 = vst.msk [vmem:[%s4 + $0x18] sm:$0xff] %vm44, %v2144
    %2169 = vst [vmem:[%s4 + $0x20] sm:$0xff] %v2145
    %2170 = vst.msk [vmem:[%s4 + $0x28] sm:$0xff] %vm44, %v2146
    %2171 = vst [vmem:[%s4 + $0x30] sm:$0xff] %v2147
    %2172 = vst.msk [vmem:[%s4 + $0x38] sm:$0xff] %vm44, %v2148
    %2173 = vst [vmem:[%s4 + $0x40] sm:$0xff] %v2149
    %2174 = vst.msk [vmem:[%s4 + $0x48] sm:$0xff] %vm44, %v2150
    %2175 = vst [vmem:[%s4 + $0x50] sm:$0xff] %v2151
    %2176 = vst.msk [vmem:[%s4 + $0x58] sm:$0xff] %vm44, %v2152
    %2177 = vst [vmem:[%s4 + $0x60] sm:$0xff] %v2153
    %2178 = vst.msk [vmem:[%s4 + $0x68] sm:$0xff] %vm44, %v2154
    %2179 = vst [vmem:[%s4 + $0x70] sm:$0xff] %v2155
    %2180 = vst.msk [vmem:[%s4 + $0x78] sm:$0xff] %vm44, %v2156
    %2181 = vst [vmem:[%s4 + $0x80] sm:$0xff] %v2157
    %2182 = vst.msk [vmem:[%s4 + $0x88] sm:$0xff] %vm44, %v2158
    %2183 = vst [vmem:[%s4 + $0x90] sm:$0xff] %v2159
    %2184 = vst.msk [vmem:[%s4 + $0x98] sm:$0xff] %vm44, %v2160
    %2185 = vst [vmem:[%s4 + $0xa0] sm:$0xff] %v2161
    %2186 = vst.msk [vmem:[%s4 + $0xa8] sm:$0xff] %vm44, %v2162
    %2187 = vst [vmem:[%s4 + $0xb0] sm:$0xff] %v2163
    %2188 = vst.msk [vmem:[%s4 + $0xb8] sm:$0xff] %vm44, %v2164
    %v2189 = vld [vmem:[#allocation2] sm:$0xf8]
    %v2190 = vld [vmem:[#allocation2 + $0x8] sm:$0xf8]
    %v2191 = vld [vmem:[#allocation2 + $0x10] sm:$0xff]
    %v2192 = vld [vmem:[#allocation2 + $0x18] sm:$0xff]
    %v2193 = vld [vmem:[#allocation2 + $0x20] sm:$0xff]
    %v2194 = vld [vmem:[#allocation2 + $0x28] sm:$0xff]
    %v2195 = vld [vmem:[#allocation2 + $0x30] sm:$0xff]
    %v2196 = vld [vmem:[#allocation2 + $0x38] sm:$0xff]
    %v2197 = vld [vmem:[#allocation2 + $0x40] sm:$0xff]
    %v2198 = vld [vmem:[#allocation2 + $0x48] sm:$0xff]
    %v2199 = vld [vmem:[#allocation2 + $0x50] sm:$0xff]
    %v2200 = vld [vmem:[#allocation2 + $0x58] sm:$0xff]
    %v2201 = vld [vmem:[#allocation2 + $0x60] sm:$0xff]
    %v2202 = vld [vmem:[#allocation2 + $0x68] sm:$0xff]
    %v2203 = vld [vmem:[#allocation2 + $0x70] sm:$0xff]
    %v2204 = vld [vmem:[#allocation2 + $0x78] sm:$0xff]
    %v2205 = vld [vmem:[#allocation2 + $0x80] sm:$0xff]
    %v2206 = vld [vmem:[#allocation2 + $0x88] sm:$0xff]
    %v2207 = vld [vmem:[#allocation2 + $0x90] sm:$0xff]
    %v2208 = vld [vmem:[#allocation2 + $0x98] sm:$0xff]
    %v2209 = vld [vmem:[#allocation2 + $0xa0] sm:$0xff]
    %v2210 = vld [vmem:[#allocation2 + $0xa8] sm:$0xff]
    %v2211 = vld [vmem:[#allocation2 + $0xb0] sm:$0xff]
    %v2212 = vld [vmem:[#allocation2 + $0xb8] sm:$0xff]
    %v2213 = vld [vmem:[#allocation2 + $0xc0] sm:$0x7]
    %v2214 = vld [vmem:[#allocation2 + $0xc8] sm:$0x7]
    %v2215 = vld [vmem:[%s4] sm:$0xff]
    %v2216 = vld [vmem:[%s4 + $0x8] sm:$0xff]
    %v2217 = vld [vmem:[%s4 + $0x10] sm:$0xff]
    %v2218 = vld [vmem:[%s4 + $0x18] sm:$0xff]
    %v2219 = vld [vmem:[%s4 + $0x20] sm:$0xff]
    %v2220 = vld [vmem:[%s4 + $0x28] sm:$0xff]
    %v2221 = vld [vmem:[%s4 + $0x30] sm:$0xff]
    %v2222 = vld [vmem:[%s4 + $0x38] sm:$0xff]
    %v2223 = vld [vmem:[%s4 + $0x40] sm:$0xff]
    %v2224 = vld [vmem:[%s4 + $0x48] sm:$0xff]
    %v2225 = vld [vmem:[%s4 + $0x50] sm:$0xff]
    %v2226 = vld [vmem:[%s4 + $0x58] sm:$0xff]
    %v2227 = vld [vmem:[%s4 + $0x60] sm:$0xff]
    %v2228 = vld [vmem:[%s4 + $0x68] sm:$0xff]
    %v2229 = vld [vmem:[%s4 + $0x70] sm:$0xff]
    %v2230 = vld [vmem:[%s4 + $0x78] sm:$0xff]
    %v2231 = vld [vmem:[%s4 + $0x80] sm:$0xff]
    %v2232 = vld [vmem:[%s4 + $0x88] sm:$0xff]
    %v2233 = vld [vmem:[%s4 + $0x90] sm:$0xff]
    %v2234 = vld [vmem:[%s4 + $0x98] sm:$0xff]
    %v2235 = vld [vmem:[%s4 + $0xa0] sm:$0xff]
    %v2236 = vld [vmem:[%s4 + $0xa8] sm:$0xff]
    %v2237 = vld [vmem:[%s4 + $0xb0] sm:$0xff]
    %v2238 = vld [vmem:[%s4 + $0xb8] sm:$0xff]
    %s2239 = scalar_lea.vmem [#allocation3], 1600
    %v2240 = vld [vmem:[%s2239] sm:$0xff]
    %v2241 = vld [vmem:[%s2239 + $0x8] sm:$0xff]
    %v2242 = vld [vmem:[%s2239 + $0x10] sm:$0xff]
    %v2243 = vld [vmem:[%s2239 + $0x18] sm:$0xff]
    %v2244 = vld [vmem:[%s2239 + $0x20] sm:$0xff]
    %v2245 = vld [vmem:[%s2239 + $0x28] sm:$0xff]
    %v2246 = vld [vmem:[%s2239 + $0x30] sm:$0xff]
    %v2247 = vld [vmem:[%s2239 + $0x38] sm:$0xff]
    %v2248 = vld [vmem:[%s2239 + $0x40] sm:$0xff]
    %v2249 = vld [vmem:[%s2239 + $0x48] sm:$0xff]
    %v2250 = vld [vmem:[%s2239 + $0x50] sm:$0xff]
    %v2251 = vld [vmem:[%s2239 + $0x58] sm:$0xff]
    %v2252 = vld [vmem:[%s2239 + $0x60] sm:$0xff]
    %v2253 = vld [vmem:[%s2239 + $0x68] sm:$0xff]
    %v2254 = vld [vmem:[%s2239 + $0x70] sm:$0xff]
    %v2255 = vld [vmem:[%s2239 + $0x78] sm:$0xff]
    %v2256 = vld [vmem:[%s2239 + $0x80] sm:$0xff]
    %v2257 = vld [vmem:[%s2239 + $0x88] sm:$0xff]
    %v2258 = vld [vmem:[%s2239 + $0x90] sm:$0xff]
    %v2259 = vld [vmem:[%s2239 + $0x98] sm:$0xff]
    %v2260 = vld [vmem:[%s2239 + $0xa0] sm:$0xff]
    %v2261 = vld [vmem:[%s2239 + $0xa8] sm:$0xff]
    %v2262 = vld [vmem:[%s2239 + $0xb0] sm:$0xff]
    %v2263 = vld [vmem:[%s2239 + $0xb8] sm:$0xff]
    %v2264 = vld [vmem:[%s2239 + $0xc0] sm:$0xff]
    %v2265 = vld [vmem:[%s2239 + $0xc8] sm:$0xff]
    %v2266 = vld [vmem:[%s2239 + $0xd0] sm:$0xff]
    %v2267 = vld [vmem:[%s2239 + $0xd8] sm:$0xff]
    %v2268 = vld [vmem:[%s2239 + $0xe0] sm:$0xff]
    %v2269 = vld [vmem:[%s2239 + $0xe8] sm:$0xff]
    %v2270 = vld [vmem:[%s2239 + $0xf0] sm:$0xff]
    %v2271 = vld [vmem:[%s2239 + $0xf8] sm:$0xff]
    %v2272 = vld [vmem:[%s2239 + $0x100] sm:$0xff]
    %v2273 = vld [vmem:[%s2239 + $0x108] sm:$0xff]
    %v2274 = vld [vmem:[%s2239 + $0x110] sm:$0xff]
    %v2275 = vld [vmem:[%s2239 + $0x118] sm:$0xff]
    %v2276 = vld [vmem:[%s2239 + $0x120] sm:$0xff]
    %v2277 = vld [vmem:[%s2239 + $0x128] sm:$0xff]
    %v2278 = vld [vmem:[%s2239 + $0x130] sm:$0xff]
    %v2279 = vld [vmem:[%s2239 + $0x138] sm:$0xff]
    %vm2306 = vcmask 1044480
    %v2307 = vrot.slane %v2189, 3
    %v2308 = vrot.slane %v2191, 3
    %v2309 = vsel %vm2306, %v2307, %v2308
    %v2310 = vrot.slane %v2190, 3
    %v2311 = vrot.slane %v2192, 3
    %v2312 = vsel %vm2306, %v2310, %v2311
    %v2313 = vrot.slane %v2193, 3
    %v2314 = vsel %vm2306, %v2308, %v2313
    %v2315 = vrot.slane %v2194, 3
    %v2316 = vsel %vm2306, %v2311, %v2315
    %v2317 = vrot.slane %v2195, 3
    %v2318 = vsel %vm2306, %v2313, %v2317
    %v2319 = vrot.slane %v2196, 3
    %v2320 = vsel %vm2306, %v2315, %v2319
    %v2321 = vrot.slane %v2197, 3
    %v2322 = vsel %vm2306, %v2317, %v2321
    %v2323 = vrot.slane %v2198, 3
    %v2324 = vsel %vm2306, %v2319, %v2323
    %v2325 = vrot.slane %v2199, 3
    %v2326 = vsel %vm2306, %v2321, %v2325
    %v2327 = vrot.slane %v2200, 3
    %v2328 = vsel %vm2306, %v2323, %v2327
    %v2329 = vrot.slane %v2201, 3
    %v2330 = vsel %vm2306, %v2325, %v2329
    %v2331 = vrot.slane %v2202, 3
    %v2332 = vsel %vm2306, %v2327, %v2331
    %v2333 = vrot.slane %v2203, 3
    %v2334 = vsel %vm2306, %v2329, %v2333
    %v2335 = vrot.slane %v2204, 3
    %v2336 = vsel %vm2306, %v2331, %v2335
    %v2337 = vrot.slane %v2205, 3
    %v2338 = vsel %vm2306, %v2333, %v2337
    %v2339 = vrot.slane %v2206, 3
    %v2340 = vsel %vm2306, %v2335, %v2339
    %v2341 = vrot.slane %v2207, 3
    %v2342 = vsel %vm2306, %v2337, %v2341
    %v2343 = vrot.slane %v2208, 3
    %v2344 = vsel %vm2306, %v2339, %v2343
    %v2345 = vrot.slane %v2209, 3
    %v2346 = vsel %vm2306, %v2341, %v2345
    %v2347 = vrot.slane %v2210, 3
    %v2348 = vsel %vm2306, %v2343, %v2347
    %v2349 = vrot.slane %v2211, 3
    %v2350 = vsel %vm2306, %v2345, %v2349
    %v2351 = vrot.slane %v2212, 3
    %v2352 = vsel %vm2306, %v2347, %v2351
    %v2353 = vrot.slane %v2213, 3
    %v2354 = vsel %vm2306, %v2349, %v2353
    %v2355 = vrot.slane %v2214, 3
    %v2356 = vsel %vm2306, %v2351, %v2355
    %v2369 = vsel %vm44, %v2312, 0
    %v2371 = vsel %vm44, %v2316, 0
    %v2373 = vsel %vm44, %v2320, 0
    %v2375 = vsel %vm44, %v2324, 0
    %v2377 = vsel %vm44, %v2328, 0
    %v2379 = vsel %vm44, %v2332, 0
    %v2381 = vsel %vm44, %v2336, 0
    %v2383 = vsel %vm44, %v2340, 0
    %v2385 = vsel %vm44, %v2344, 0
    %v2387 = vsel %vm44, %v2348, 0
    %v2389 = vsel %vm44, %v2352, 0
    %v2391 = vsel %vm44, %v2356, 0
    %2393 = vmatprep.subr.mxu0 %v2271
    %2394 = vmatpush1.msra.mxu0 %v2270
    %2395 = vmatprep.subr.mxu0 %v2269
    %2396 = vmatpush1.msra.mxu0 %v2268
    %2397 = vmatprep.subr.mxu0 %v2267
    %2398 = vmatpush1.msra.mxu0 %v2266
    %2399 = vmatprep.subr.mxu0 %v2265
    %2400 = vmatpush1.msra.mxu0 %v2264
    %2401 = vmatprep.subr.mxu0 %v2263
    %2402 = vmatpush1.msra.mxu0 %v2262
    %2403 = vmatprep.subr.mxu0 %v2261
    %2404 = vmatpush1.msra.mxu0 %v2260
    %2405 = vmatprep.subr.mxu0 %v2259
    %2406 = vmatpush1.msra.mxu0 %v2258
    %2407 = vmatprep.subr.mxu0 %v2257
    %2408 = vmatpush1.msra.mxu0 %v2256
    %2409 = vmatprep.subr.mxu0 %v2255
    %2410 = vmatpush1.msra.mxu0 %v2254
    %2411 = vmatprep.subr.mxu0 %v2253
    %2412 = vmatpush1.msra.mxu0 %v2252
    %2413 = vmatprep.subr.mxu0 %v2251
    %2414 = vmatpush1.msra.mxu0 %v2250
    %2415 = vmatprep.subr.mxu0 %v2249
    %2416 = vmatpush1.msra.mxu0 %v2248
    %2417 = vmatprep.subr.mxu0 %v2247
    %2418 = vmatpush1.msra.mxu0 %v2246
    %2419 = vmatprep.subr.mxu0 %v2245
    %2420 = vmatpush1.msra.mxu0 %v2244
    %2421 = vmatprep.subr.mxu0 %v2243
    %2422 = vmatpush1.msra.mxu0 %v2242
    %2423 = vmatprep.subr.mxu0 %v2241
    %2424 = vmatpush1.msra.mxu0 %v2240
    %2425 = vmatprep.subr.mxu0 0.0
    %2426 = vmatpush2.msra.mxu0 0.0
    %2427 = vmatprep.subr.mxu0 0.0
    %2428 = vmatpush2.msra.mxu0 0.0
    %2429 = vmatprep.subr.mxu0 0.0
    %2430 = vmatpush2.msra.mxu0 0.0
    %2431 = vmatprep.subr.mxu0 0.0
    %2432 = vmatpush2.msra.mxu0 0.0
    %2433 = vmatprep.subr.mxu0 0.0
    %2434 = vmatpush2.msra.mxu0 0.0
    %2435 = vmatprep.subr.mxu0 0.0
    %2436 = vmatpush2.msra.mxu0 0.0
    %2437 = vmatprep.subr.mxu0 0.0
    %2438 = vmatpush2.msra.mxu0 0.0
    %2439 = vmatprep.subr.mxu0 0.0
    %2440 = vmatpush2.msra.mxu0 0.0
    %2441 = vmatprep.subr.mxu0 0.0
    %2442 = vmatpush2.msra.mxu0 0.0
    %2443 = vmatprep.subr.mxu0 0.0
    %2444 = vmatpush2.msra.mxu0 0.0
    %2445 = vmatprep.subr.mxu0 0.0
    %2446 = vmatpush2.msra.mxu0 0.0
    %2447 = vmatprep.subr.mxu0 0.0
    %2448 = vmatpush2.msra.mxu0 0.0
    %2449 = vmatprep.subr.mxu0 %v2279
    %2450 = vmatpush2.msra.mxu0 %v2278
    %2451 = vmatprep.subr.mxu0 %v2277
    %2452 = vmatpush2.msra.mxu0 %v2276
    %2453 = vmatprep.subr.mxu0 %v2275
    %2454 = vmatpush2.msra.mxu0 %v2274
    %2455 = vmatprep.subr.mxu0 %v2273
    %2456 = vmatpush2.msra.mxu0 %v2272
    %2457 = vmatprep.mubr.f32.mxu0 %v2369
    %2458 = vmatmul.mubr.f32.gmra.mxu0 %v2309
    %v2459 = vpop.f32.mrf.mxu0
    %v2460 = vadd.f32 0.0, %v2459
    %v2461 = vpop.f32.mrf.mxu0
    %v2462 = vadd.f32 0.0, %v2461
    %2463 = vmatprep.mubr.f32.mxu0 %v2371
    %2464 = vmatmul.mubr.f32.gmra.mxu0 %v2314
    %v2465 = vpop.f32.mrf.mxu0
    %v2466 = vadd.f32 0.0, %v2465
    %v2467 = vpop.f32.mrf.mxu0
    %v2468 = vadd.f32 0.0, %v2467
    %2469 = vmatprep.mubr.f32.mxu0 %v2373
    %2470 = vmatmul.mubr.f32.gmra.mxu0 %v2318
    %v2471 = vpop.f32.mrf.mxu0
    %v2472 = vadd.f32 0.0, %v2471
    %v2473 = vpop.f32.mrf.mxu0
    %v2474 = vadd.f32 0.0, %v2473
    %2475 = vmatprep.mubr.f32.mxu0 %v2375
    %2476 = vmatmul.mubr.f32.gmra.mxu0 %v2322
    %v2477 = vpop.f32.mrf.mxu0
    %v2478 = vadd.f32 0.0, %v2477
    %v2479 = vpop.f32.mrf.mxu0
    %v2480 = vadd.f32 0.0, %v2479
    %2481 = vmatprep.mubr.f32.mxu0 %v2377
    %2482 = vmatmul.mubr.f32.gmra.mxu0 %v2326
    %v2483 = vpop.f32.mrf.mxu0
    %v2484 = vadd.f32 0.0, %v2483
    %v2485 = vpop.f32.mrf.mxu0
    %v2486 = vadd.f32 0.0, %v2485
    %2487 = vmatprep.mubr.f32.mxu0 %v2379
    %2488 = vmatmul.mubr.f32.gmra.mxu0 %v2330
    %v2489 = vpop.f32.mrf.mxu0
    %v2490 = vadd.f32 0.0, %v2489
    %v2491 = vpop.f32.mrf.mxu0
    %v2492 = vadd.f32 0.0, %v2491
    %2493 = vmatprep.mubr.f32.mxu0 %v2381
    %2494 = vmatmul.mubr.f32.gmra.mxu0 %v2334
    %v2495 = vpop.f32.mrf.mxu0
    %v2496 = vadd.f32 0.0, %v2495
    %v2497 = vpop.f32.mrf.mxu0
    %v2498 = vadd.f32 0.0, %v2497
    %2499 = vmatprep.mubr.f32.mxu0 %v2383
    %2500 = vmatmul.mubr.f32.gmra.mxu0 %v2338
    %v2501 = vpop.f32.mrf.mxu0
    %v2502 = vadd.f32 0.0, %v2501
    %v2503 = vpop.f32.mrf.mxu0
    %v2504 = vadd.f32 0.0, %v2503
    %2505 = vmatprep.mubr.f32.mxu0 %v2385
    %2506 = vmatmul.mubr.f32.gmra.mxu0 %v2342
    %v2507 = vpop.f32.mrf.mxu0
    %v2508 = vadd.f32 0.0, %v2507
    %v2509 = vpop.f32.mrf.mxu0
    %v2510 = vadd.f32 0.0, %v2509
    %2511 = vmatprep.mubr.f32.mxu0 %v2387
    %2512 = vmatmul.mubr.f32.gmra.mxu0 %v2346
    %v2513 = vpop.f32.mrf.mxu0
    %v2514 = vadd.f32 0.0, %v2513
    %v2515 = vpop.f32.mrf.mxu0
    %v2516 = vadd.f32 0.0, %v2515
    %2517 = vmatprep.mubr.f32.mxu0 %v2389
    %2518 = vmatmul.mubr.f32.gmra.mxu0 %v2350
    %v2519 = vpop.f32.mrf.mxu0
    %v2520 = vadd.f32 0.0, %v2519
    %v2521 = vpop.f32.mrf.mxu0
    %v2522 = vadd.f32 0.0, %v2521
    %2523 = vmatprep.mubr.f32.mxu0 %v2391
    %2524 = vmatmul.mubr.f32.gmra.mxu0 %v2354
    %v2525 = vpop.f32.mrf.mxu0
    %v2526 = vadd.f32 0.0, %v2525
    %v2527 = vpop.f32.mrf.mxu0
    %v2528 = vadd.f32 0.0, %v2527
    %2529 = vdwg.mxu0
    %v2530 = vadd.f32 %v2215, %v2460
    %v2531 = vadd.f32 %v2216, %v2462
    %v2532 = vadd.f32 %v2217, %v2466
    %v2533 = vadd.f32 %v2218, %v2468
    %v2534 = vadd.f32 %v2219, %v2472
    %v2535 = vadd.f32 %v2220, %v2474
    %v2536 = vadd.f32 %v2221, %v2478
    %v2537 = vadd.f32 %v2222, %v2480
    %v2538 = vadd.f32 %v2223, %v2484
    %v2539 = vadd.f32 %v2224, %v2486
    %v2540 = vadd.f32 %v2225, %v2490
    %v2541 = vadd.f32 %v2226, %v2492
    %v2542 = vadd.f32 %v2227, %v2496
    %v2543 = vadd.f32 %v2228, %v2498
    %v2544 = vadd.f32 %v2229, %v2502
    %v2545 = vadd.f32 %v2230, %v2504
    %v2546 = vadd.f32 %v2231, %v2508
    %v2547 = vadd.f32 %v2232, %v2510
    %v2548 = vadd.f32 %v2233, %v2514
    %v2549 = vadd.f32 %v2234, %v2516
    %v2550 = vadd.f32 %v2235, %v2520
    %v2551 = vadd.f32 %v2236, %v2522
    %v2552 = vadd.f32 %v2237, %v2526
    %v2553 = vadd.f32 %v2238, %v2528
    %2554 = vst [vmem:[%s4] sm:$0xff] %v2530
    %2555 = vst.msk [vmem:[%s4 + $0x8] sm:$0xff] %vm44, %v2531
    %2556 = vst [vmem:[%s4 + $0x10] sm:$0xff] %v2532
    %2557 = vst.msk [vmem:[%s4 + $0x18] sm:$0xff] %vm44, %v2533
    %2558 = vst [vmem:[%s4 + $0x20] sm:$0xff] %v2534
    %2559 = vst.msk [vmem:[%s4 + $0x28] sm:$0xff] %vm44, %v2535
    %2560 = vst [vmem:[%s4 + $0x30] sm:$0xff] %v2536
    %2561 = vst.msk [vmem:[%s4 + $0x38] sm:$0xff] %vm44, %v2537
    %2562 = vst [vmem:[%s4 + $0x40] sm:$0xff] %v2538
    %2563 = vst.msk [vmem:[%s4 + $0x48] sm:$0xff] %vm44, %v2539
    %2564 = vst [vmem:[%s4 + $0x50] sm:$0xff] %v2540
    %2565 = vst.msk [vmem:[%s4 + $0x58] sm:$0xff] %vm44, %v2541
    %2566 = vst [vmem:[%s4 + $0x60] sm:$0xff] %v2542
    %2567 = vst.msk [vmem:[%s4 + $0x68] sm:$0xff] %vm44, %v2543
    %2568 = vst [vmem:[%s4 + $0x70] sm:$0xff] %v2544
    %2569 = vst.msk [vmem:[%s4 + $0x78] sm:$0xff] %vm44, %v2545
    %2570 = vst [vmem:[%s4 + $0x80] sm:$0xff] %v2546
    %2571 = vst.msk [vmem:[%s4 + $0x88] sm:$0xff] %vm44, %v2547
    %2572 = vst [vmem:[%s4 + $0x90] sm:$0xff] %v2548
    %2573 = vst.msk [vmem:[%s4 + $0x98] sm:$0xff] %vm44, %v2549
    %2574 = vst [vmem:[%s4 + $0xa0] sm:$0xff] %v2550
    %2575 = vst.msk [vmem:[%s4 + $0xa8] sm:$0xff] %vm44, %v2551
    %2576 = vst [vmem:[%s4 + $0xb0] sm:$0xff] %v2552
    %2577 = vst.msk [vmem:[%s4 + $0xb8] sm:$0xff] %vm44, %v2553
    %v2578 = vld [vmem:[#allocation2] sm:$0xfc]
    %v2579 = vld [vmem:[#allocation2 + $0x8] sm:$0xfc]
    %v2580 = vld [vmem:[#allocation2 + $0x10] sm:$0xff]
    %v2581 = vld [vmem:[#allocation2 + $0x18] sm:$0xff]
    %v2582 = vld [vmem:[#allocation2 + $0x20] sm:$0xff]
    %v2583 = vld [vmem:[#allocation2 + $0x28] sm:$0xff]
    %v2584 = vld [vmem:[#allocation2 + $0x30] sm:$0xff]
    %v2585 = vld [vmem:[#allocation2 + $0x38] sm:$0xff]
    %v2586 = vld [vmem:[#allocation2 + $0x40] sm:$0xff]
    %v2587 = vld [vmem:[#allocation2 + $0x48] sm:$0xff]
    %v2588 = vld [vmem:[#allocation2 + $0x50] sm:$0xff]
    %v2589 = vld [vmem:[#allocation2 + $0x58] sm:$0xff]
    %v2590 = vld [vmem:[#allocation2 + $0x60] sm:$0xff]
    %v2591 = vld [vmem:[#allocation2 + $0x68] sm:$0xff]
    %v2592 = vld [vmem:[#allocation2 + $0x70] sm:$0xff]
    %v2593 = vld [vmem:[#allocation2 + $0x78] sm:$0xff]
    %v2594 = vld [vmem:[#allocation2 + $0x80] sm:$0xff]
    %v2595 = vld [vmem:[#allocation2 + $0x88] sm:$0xff]
    %v2596 = vld [vmem:[#allocation2 + $0x90] sm:$0xff]
    %v2597 = vld [vmem:[#allocation2 + $0x98] sm:$0xff]
    %v2598 = vld [vmem:[#allocation2 + $0xa0] sm:$0xff]
    %v2599 = vld [vmem:[#allocation2 + $0xa8] sm:$0xff]
    %v2600 = vld [vmem:[#allocation2 + $0xb0] sm:$0xff]
    %v2601 = vld [vmem:[#allocation2 + $0xb8] sm:$0xff]
    %v2602 = vld [vmem:[#allocation2 + $0xc0] sm:$0x3]
    %v2603 = vld [vmem:[#allocation2 + $0xc8] sm:$0x3]
    %v2604 = vld [vmem:[%s4] sm:$0xff]
    %v2605 = vld [vmem:[%s4 + $0x8] sm:$0xff]
    %v2606 = vld [vmem:[%s4 + $0x10] sm:$0xff]
    %v2607 = vld [vmem:[%s4 + $0x18] sm:$0xff]
    %v2608 = vld [vmem:[%s4 + $0x20] sm:$0xff]
    %v2609 = vld [vmem:[%s4 + $0x28] sm:$0xff]
    %v2610 = vld [vmem:[%s4 + $0x30] sm:$0xff]
    %v2611 = vld [vmem:[%s4 + $0x38] sm:$0xff]
    %v2612 = vld [vmem:[%s4 + $0x40] sm:$0xff]
    %v2613 = vld [vmem:[%s4 + $0x48] sm:$0xff]
    %v2614 = vld [vmem:[%s4 + $0x50] sm:$0xff]
    %v2615 = vld [vmem:[%s4 + $0x58] sm:$0xff]
    %v2616 = vld [vmem:[%s4 + $0x60] sm:$0xff]
    %v2617 = vld [vmem:[%s4 + $0x68] sm:$0xff]
    %v2618 = vld [vmem:[%s4 + $0x70] sm:$0xff]
    %v2619 = vld [vmem:[%s4 + $0x78] sm:$0xff]
    %v2620 = vld [vmem:[%s4 + $0x80] sm:$0xff]
    %v2621 = vld [vmem:[%s4 + $0x88] sm:$0xff]
    %v2622 = vld [vmem:[%s4 + $0x90] sm:$0xff]
    %v2623 = vld [vmem:[%s4 + $0x98] sm:$0xff]
    %v2624 = vld [vmem:[%s4 + $0xa0] sm:$0xff]
    %v2625 = vld [vmem:[%s4 + $0xa8] sm:$0xff]
    %v2626 = vld [vmem:[%s4 + $0xb0] sm:$0xff]
    %v2627 = vld [vmem:[%s4 + $0xb8] sm:$0xff]
    %s2628 = scalar_lea.vmem [#allocation3], 1920
    %v2629 = vld [vmem:[%s2628] sm:$0xff]
    %v2630 = vld [vmem:[%s2628 + $0x8] sm:$0xff]
    %v2631 = vld [vmem:[%s2628 + $0x10] sm:$0xff]
    %v2632 = vld [vmem:[%s2628 + $0x18] sm:$0xff]
    %v2633 = vld [vmem:[%s2628 + $0x20] sm:$0xff]
    %v2634 = vld [vmem:[%s2628 + $0x28] sm:$0xff]
    %v2635 = vld [vmem:[%s2628 + $0x30] sm:$0xff]
    %v2636 = vld [vmem:[%s2628 + $0x38] sm:$0xff]
    %v2637 = vld [vmem:[%s2628 + $0x40] sm:$0xff]
    %v2638 = vld [vmem:[%s2628 + $0x48] sm:$0xff]
    %v2639 = vld [vmem:[%s2628 + $0x50] sm:$0xff]
    %v2640 = vld [vmem:[%s2628 + $0x58] sm:$0xff]
    %v2641 = vld [vmem:[%s2628 + $0x60] sm:$0xff]
    %v2642 = vld [vmem:[%s2628 + $0x68] sm:$0xff]
    %v2643 = vld [vmem:[%s2628 + $0x70] sm:$0xff]
    %v2644 = vld [vmem:[%s2628 + $0x78] sm:$0xff]
    %v2645 = vld [vmem:[%s2628 + $0x80] sm:$0xff]
    %v2646 = vld [vmem:[%s2628 + $0x88] sm:$0xff]
    %v2647 = vld [vmem:[%s2628 + $0x90] sm:$0xff]
    %v2648 = vld [vmem:[%s2628 + $0x98] sm:$0xff]
    %v2649 = vld [vmem:[%s2628 + $0xa0] sm:$0xff]
    %v2650 = vld [vmem:[%s2628 + $0xa8] sm:$0xff]
    %v2651 = vld [vmem:[%s2628 + $0xb0] sm:$0xff]
    %v2652 = vld [vmem:[%s2628 + $0xb8] sm:$0xff]
    %v2653 = vld [vmem:[%s2628 + $0xc0] sm:$0xff]
    %v2654 = vld [vmem:[%s2628 + $0xc8] sm:$0xff]
    %v2655 = vld [vmem:[%s2628 + $0xd0] sm:$0xff]
    %v2656 = vld [vmem:[%s2628 + $0xd8] sm:$0xff]
    %v2657 = vld [vmem:[%s2628 + $0xe0] sm:$0xff]
    %v2658 = vld [vmem:[%s2628 + $0xe8] sm:$0xff]
    %v2659 = vld [vmem:[%s2628 + $0xf0] sm:$0xff]
    %v2660 = vld [vmem:[%s2628 + $0xf8] sm:$0xff]
    %v2661 = vld [vmem:[%s2628 + $0x100] sm:$0xff]
    %v2662 = vld [vmem:[%s2628 + $0x108] sm:$0xff]
    %v2663 = vld [vmem:[%s2628 + $0x110] sm:$0xff]
    %v2664 = vld [vmem:[%s2628 + $0x118] sm:$0xff]
    %v2665 = vld [vmem:[%s2628 + $0x120] sm:$0xff]
    %v2666 = vld [vmem:[%s2628 + $0x128] sm:$0xff]
    %v2667 = vld [vmem:[%s2628 + $0x130] sm:$0xff]
    %v2668 = vld [vmem:[%s2628 + $0x138] sm:$0xff]
    %vm2695 = vcmask 1045504
    %v2696 = vrot.slane %v2578, 2
    %v2697 = vrot.slane %v2580, 2
    %v2698 = vsel %vm2695, %v2696, %v2697
    %v2699 = vrot.slane %v2579, 2
    %v2700 = vrot.slane %v2581, 2
    %v2701 = vsel %vm2695, %v2699, %v2700
    %v2702 = vrot.slane %v2582, 2
    %v2703 = vsel %vm2695, %v2697, %v2702
    %v2704 = vrot.slane %v2583, 2
    %v2705 = vsel %vm2695, %v2700, %v2704
    %v2706 = vrot.slane %v2584, 2
    %v2707 = vsel %vm2695, %v2702, %v2706
    %v2708 = vrot.slane %v2585, 2
    %v2709 = vsel %vm2695, %v2704, %v2708
    %v2710 = vrot.slane %v2586, 2
    %v2711 = vsel %vm2695, %v2706, %v2710
    %v2712 = vrot.slane %v2587, 2
    %v2713 = vsel %vm2695, %v2708, %v2712
    %v2714 = vrot.slane %v2588, 2
    %v2715 = vsel %vm2695, %v2710, %v2714
    %v2716 = vrot.slane %v2589, 2
    %v2717 = vsel %vm2695, %v2712, %v2716
    %v2718 = vrot.slane %v2590, 2
    %v2719 = vsel %vm2695, %v2714, %v2718
    %v2720 = vrot.slane %v2591, 2
    %v2721 = vsel %vm2695, %v2716, %v2720
    %v2722 = vrot.slane %v2592, 2
    %v2723 = vsel %vm2695, %v2718, %v2722
    %v2724 = vrot.slane %v2593, 2
    %v2725 = vsel %vm2695, %v2720, %v2724
    %v2726 = vrot.slane %v2594, 2
    %v2727 = vsel %vm2695, %v2722, %v2726
    %v2728 = vrot.slane %v2595, 2
    %v2729 = vsel %vm2695, %v2724, %v2728
    %v2730 = vrot.slane %v2596, 2
    %v2731 = vsel %vm2695, %v2726, %v2730
    %v2732 = vrot.slane %v2597, 2
    %v2733 = vsel %vm2695, %v2728, %v2732
    %v2734 = vrot.slane %v2598, 2
    %v2735 = vsel %vm2695, %v2730, %v2734
    %v2736 = vrot.slane %v2599, 2
    %v2737 = vsel %vm2695, %v2732, %v2736
    %v2738 = vrot.slane %v2600, 2
    %v2739 = vsel %vm2695, %v2734, %v2738
    %v2740 = vrot.slane %v2601, 2
    %v2741 = vsel %vm2695, %v2736, %v2740
    %v2742 = vrot.slane %v2602, 2
    %v2743 = vsel %vm2695, %v2738, %v2742
    %v2744 = vrot.slane %v2603, 2
    %v2745 = vsel %vm2695, %v2740, %v2744
    %v2758 = vsel %vm44, %v2701, 0
    %v2760 = vsel %vm44, %v2705, 0
    %v2762 = vsel %vm44, %v2709, 0
    %v2764 = vsel %vm44, %v2713, 0
    %v2766 = vsel %vm44, %v2717, 0
    %v2768 = vsel %vm44, %v2721, 0
    %v2770 = vsel %vm44, %v2725, 0
    %v2772 = vsel %vm44, %v2729, 0
    %v2774 = vsel %vm44, %v2733, 0
    %v2776 = vsel %vm44, %v2737, 0
    %v2778 = vsel %vm44, %v2741, 0
    %v2780 = vsel %vm44, %v2745, 0
    %2782 = vmatprep.subr.mxu0 %v2660
    %2783 = vmatpush1.msra.mxu0 %v2659
    %2784 = vmatprep.subr.mxu0 %v2658
    %2785 = vmatpush1.msra.mxu0 %v2657
    %2786 = vmatprep.subr.mxu0 %v2656
    %2787 = vmatpush1.msra.mxu0 %v2655
    %2788 = vmatprep.subr.mxu0 %v2654
    %2789 = vmatpush1.msra.mxu0 %v2653
    %2790 = vmatprep.subr.mxu0 %v2652
    %2791 = vmatpush1.msra.mxu0 %v2651
    %2792 = vmatprep.subr.mxu0 %v2650
    %2793 = vmatpush1.msra.mxu0 %v2649
    %2794 = vmatprep.subr.mxu0 %v2648
    %2795 = vmatpush1.msra.mxu0 %v2647
    %2796 = vmatprep.subr.mxu0 %v2646
    %2797 = vmatpush1.msra.mxu0 %v2645
    %2798 = vmatprep.subr.mxu0 %v2644
    %2799 = vmatpush1.msra.mxu0 %v2643
    %2800 = vmatprep.subr.mxu0 %v2642
    %2801 = vmatpush1.msra.mxu0 %v2641
    %2802 = vmatprep.subr.mxu0 %v2640
    %2803 = vmatpush1.msra.mxu0 %v2639
    %2804 = vmatprep.subr.mxu0 %v2638
    %2805 = vmatpush1.msra.mxu0 %v2637
    %2806 = vmatprep.subr.mxu0 %v2636
    %2807 = vmatpush1.msra.mxu0 %v2635
    %2808 = vmatprep.subr.mxu0 %v2634
    %2809 = vmatpush1.msra.mxu0 %v2633
    %2810 = vmatprep.subr.mxu0 %v2632
    %2811 = vmatpush1.msra.mxu0 %v2631
    %2812 = vmatprep.subr.mxu0 %v2630
    %2813 = vmatpush1.msra.mxu0 %v2629
    %2814 = vmatprep.subr.mxu0 0.0
    %2815 = vmatpush2.msra.mxu0 0.0
    %2816 = vmatprep.subr.mxu0 0.0
    %2817 = vmatpush2.msra.mxu0 0.0
    %2818 = vmatprep.subr.mxu0 0.0
    %2819 = vmatpush2.msra.mxu0 0.0
    %2820 = vmatprep.subr.mxu0 0.0
    %2821 = vmatpush2.msra.mxu0 0.0
    %2822 = vmatprep.subr.mxu0 0.0
    %2823 = vmatpush2.msra.mxu0 0.0
    %2824 = vmatprep.subr.mxu0 0.0
    %2825 = vmatpush2.msra.mxu0 0.0
    %2826 = vmatprep.subr.mxu0 0.0
    %2827 = vmatpush2.msra.mxu0 0.0
    %2828 = vmatprep.subr.mxu0 0.0
    %2829 = vmatpush2.msra.mxu0 0.0
    %2830 = vmatprep.subr.mxu0 0.0
    %2831 = vmatpush2.msra.mxu0 0.0
    %2832 = vmatprep.subr.mxu0 0.0
    %2833 = vmatpush2.msra.mxu0 0.0
    %2834 = vmatprep.subr.mxu0 0.0
    %2835 = vmatpush2.msra.mxu0 0.0
    %2836 = vmatprep.subr.mxu0 0.0
    %2837 = vmatpush2.msra.mxu0 0.0
    %2838 = vmatprep.subr.mxu0 %v2668
    %2839 = vmatpush2.msra.mxu0 %v2667
    %2840 = vmatprep.subr.mxu0 %v2666
    %2841 = vmatpush2.msra.mxu0 %v2665
    %2842 = vmatprep.subr.mxu0 %v2664
    %2843 = vmatpush2.msra.mxu0 %v2663
    %2844 = vmatprep.subr.mxu0 %v2662
    %2845 = vmatpush2.msra.mxu0 %v2661
    %2846 = vmatprep.mubr.f32.mxu0 %v2758
    %2847 = vmatmul.mubr.f32.gmra.mxu0 %v2698
    %v2848 = vpop.f32.mrf.mxu0
    %v2849 = vadd.f32 0.0, %v2848
    %v2850 = vpop.f32.mrf.mxu0
    %v2851 = vadd.f32 0.0, %v2850
    %2852 = vmatprep.mubr.f32.mxu0 %v2760
    %2853 = vmatmul.mubr.f32.gmra.mxu0 %v2703
    %v2854 = vpop.f32.mrf.mxu0
    %v2855 = vadd.f32 0.0, %v2854
    %v2856 = vpop.f32.mrf.mxu0
    %v2857 = vadd.f32 0.0, %v2856
    %2858 = vmatprep.mubr.f32.mxu0 %v2762
    %2859 = vmatmul.mubr.f32.gmra.mxu0 %v2707
    %v2860 = vpop.f32.mrf.mxu0
    %v2861 = vadd.f32 0.0, %v2860
    %v2862 = vpop.f32.mrf.mxu0
    %v2863 = vadd.f32 0.0, %v2862
    %2864 = vmatprep.mubr.f32.mxu0 %v2764
    %2865 = vmatmul.mubr.f32.gmra.mxu0 %v2711
    %v2866 = vpop.f32.mrf.mxu0
    %v2867 = vadd.f32 0.0, %v2866
    %v2868 = vpop.f32.mrf.mxu0
    %v2869 = vadd.f32 0.0, %v2868
    %2870 = vmatprep.mubr.f32.mxu0 %v2766
    %2871 = vmatmul.mubr.f32.gmra.mxu0 %v2715
    %v2872 = vpop.f32.mrf.mxu0
    %v2873 = vadd.f32 0.0, %v2872
    %v2874 = vpop.f32.mrf.mxu0
    %v2875 = vadd.f32 0.0, %v2874
    %2876 = vmatprep.mubr.f32.mxu0 %v2768
    %2877 = vmatmul.mubr.f32.gmra.mxu0 %v2719
    %v2878 = vpop.f32.mrf.mxu0
    %v2879 = vadd.f32 0.0, %v2878
    %v2880 = vpop.f32.mrf.mxu0
    %v2881 = vadd.f32 0.0, %v2880
    %2882 = vmatprep.mubr.f32.mxu0 %v2770
    %2883 = vmatmul.mubr.f32.gmra.mxu0 %v2723
    %v2884 = vpop.f32.mrf.mxu0
    %v2885 = vadd.f32 0.0, %v2884
    %v2886 = vpop.f32.mrf.mxu0
    %v2887 = vadd.f32 0.0, %v2886
    %2888 = vmatprep.mubr.f32.mxu0 %v2772
    %2889 = vmatmul.mubr.f32.gmra.mxu0 %v2727
    %v2890 = vpop.f32.mrf.mxu0
    %v2891 = vadd.f32 0.0, %v2890
    %v2892 = vpop.f32.mrf.mxu0
    %v2893 = vadd.f32 0.0, %v2892
    %2894 = vmatprep.mubr.f32.mxu0 %v2774
    %2895 = vmatmul.mubr.f32.gmra.mxu0 %v2731
    %v2896 = vpop.f32.mrf.mxu0
    %v2897 = vadd.f32 0.0, %v2896
    %v2898 = vpop.f32.mrf.mxu0
    %v2899 = vadd.f32 0.0, %v2898
    %2900 = vmatprep.mubr.f32.mxu0 %v2776
    %2901 = vmatmul.mubr.f32.gmra.mxu0 %v2735
    %v2902 = vpop.f32.mrf.mxu0
    %v2903 = vadd.f32 0.0, %v2902
    %v2904 = vpop.f32.mrf.mxu0
    %v2905 = vadd.f32 0.0, %v2904
    %2906 = vmatprep.mubr.f32.mxu0 %v2778
    %2907 = vmatmul.mubr.f32.gmra.mxu0 %v2739
    %v2908 = vpop.f32.mrf.mxu0
    %v2909 = vadd.f32 0.0, %v2908
    %v2910 = vpop.f32.mrf.mxu0
    %v2911 = vadd.f32 0.0, %v2910
    %2912 = vmatprep.mubr.f32.mxu0 %v2780
    %2913 = vmatmul.mubr.f32.gmra.mxu0 %v2743
    %v2914 = vpop.f32.mrf.mxu0
    %v2915 = vadd.f32 0.0, %v2914
    %v2916 = vpop.f32.mrf.mxu0
    %v2917 = vadd.f32 0.0, %v2916
    %2918 = vdwg.mxu0
    %v2919 = vadd.f32 %v2604, %v2849
    %v2920 = vadd.f32 %v2605, %v2851
    %v2921 = vadd.f32 %v2606, %v2855
    %v2922 = vadd.f32 %v2607, %v2857
    %v2923 = vadd.f32 %v2608, %v2861
    %v2924 = vadd.f32 %v2609, %v2863
    %v2925 = vadd.f32 %v2610, %v2867
    %v2926 = vadd.f32 %v2611, %v2869
    %v2927 = vadd.f32 %v2612, %v2873
    %v2928 = vadd.f32 %v2613, %v2875
    %v2929 = vadd.f32 %v2614, %v2879
    %v2930 = vadd.f32 %v2615, %v2881
    %v2931 = vadd.f32 %v2616, %v2885
    %v2932 = vadd.f32 %v2617, %v2887
    %v2933 = vadd.f32 %v2618, %v2891
    %v2934 = vadd.f32 %v2619, %v2893
    %v2935 = vadd.f32 %v2620, %v2897
    %v2936 = vadd.f32 %v2621, %v2899
    %v2937 = vadd.f32 %v2622, %v2903
    %v2938 = vadd.f32 %v2623, %v2905
    %v2939 = vadd.f32 %v2624, %v2909
    %v2940 = vadd.f32 %v2625, %v2911
    %v2941 = vadd.f32 %v2626, %v2915
    %v2942 = vadd.f32 %v2627, %v2917
    %2943 = vst [vmem:[%s4] sm:$0xff] %v2919
    %2944 = vst.msk [vmem:[%s4 + $0x8] sm:$0xff] %vm44, %v2920
    %2945 = vst [vmem:[%s4 + $0x10] sm:$0xff] %v2921
    %2946 = vst.msk [vmem:[%s4 + $0x18] sm:$0xff] %vm44, %v2922
    %2947 = vst [vmem:[%s4 + $0x20] sm:$0xff] %v2923
    %2948 = vst.msk [vmem:[%s4 + $0x28] sm:$0xff] %vm44, %v2924
    %2949 = vst [vmem:[%s4 + $0x30] sm:$0xff] %v2925
    %2950 = vst.msk [vmem:[%s4 + $0x38] sm:$0xff] %vm44, %v2926
    %2951 = vst [vmem:[%s4 + $0x40] sm:$0xff] %v2927
    %2952 = vst.msk [vmem:[%s4 + $0x48] sm:$0xff] %vm44, %v2928
    %2953 = vst [vmem:[%s4 + $0x50] sm:$0xff] %v2929
    %2954 = vst.msk [vmem:[%s4 + $0x58] sm:$0xff] %vm44, %v2930
    %2955 = vst [vmem:[%s4 + $0x60] sm:$0xff] %v2931
    %2956 = vst.msk [vmem:[%s4 + $0x68] sm:$0xff] %vm44, %v2932
    %2957 = vst [vmem:[%s4 + $0x70] sm:$0xff] %v2933
    %2958 = vst.msk [vmem:[%s4 + $0x78] sm:$0xff] %vm44, %v2934
    %2959 = vst [vmem:[%s4 + $0x80] sm:$0xff] %v2935
    %2960 = vst.msk [vmem:[%s4 + $0x88] sm:$0xff] %vm44, %v2936
    %2961 = vst [vmem:[%s4 + $0x90] sm:$0xff] %v2937
    %2962 = vst.msk [vmem:[%s4 + $0x98] sm:$0xff] %vm44, %v2938
    %2963 = vst [vmem:[%s4 + $0xa0] sm:$0xff] %v2939
    %2964 = vst.msk [vmem:[%s4 + $0xa8] sm:$0xff] %vm44, %v2940
    %2965 = vst [vmem:[%s4 + $0xb0] sm:$0xff] %v2941
    %2966 = vst.msk [vmem:[%s4 + $0xb8] sm:$0xff] %vm44, %v2942
    // Predicated region
    $region26: #{out_model_forward.1} parent=1 // pred_check
      _
    $region27: #{out_model_forward.1} parent=1 // pred_check_branch
      %2968 = sbr.rel (0) target = $region29
    $region28: #{out_model_forward.1} parent=1 // pred_region
      _
    $region29: #{out_model_forward.1} parent=1 // pred_fallthru
      _
    // Predicated region
    $region30: #{out_model_forward.1} parent=1 // pred_check
      _
    $region31: #{out_model_forward.1} parent=1 // pred_check_branch
      %2970 = sbr.rel (0) target = $region33
    $region32: #{out_model_forward.1} parent=1 // pred_region
      _
    $region33: #{out_model_forward.1} parent=1 // pred_fallthru
      _
    %2971 = vsyncpa [#allocation4], 1
    %2972 = vsyncpa [#allocation6], 1

</llo_original>
